<compile_context>
chip_gen: v7x
topology: tpu7x:2x2x1
jax: 0.10.0
libtpu: 0.0.40
codegen_flags: <defaults>
</compile_context>

<pallas_src>
import functools

import jax
import jax.numpy as jnp
from jax.experimental import pallas as pl
from jax.experimental.pallas import tpu as pltpu

HIDDEN = 2048                 # faithful to nn.Linear(2048, 2048)
NUM_LAYERS = 8                # module uses 128; kept small so the demo inits/runs quickly
BATCH = 8
WEIGHT_DTYPE = jnp.float32    # flip to jnp.bfloat16 for ~2x HBM-bandwidth win (relax assert)


def _fused_mlp_kernel(x_ref, w_ref, b_ref, o_ref, act_ref):
    """One fused pass over all stacked Linear layers.

    Grid: (L, N//tile, K//tile); L outermost, K-reduction innermost.
    act_ref: (2, nblk, B, tile) f32 VMEM ping-pong holding the activation.
    """
    l = pl.program_id(0)
    j = pl.program_id(1)          # output (N) tile
    k = pl.program_id(2)          # reduction (K) tile
    num_k = pl.num_programs(2)

    batch, tile = act_ref.shape[2], act_ref.shape[3]
    src = l % 2                   # slot holding this layer's input activation
    dst = 1 - src                 # slot receiving this layer's output activation

    # One-time copy of the initial activation into ping-pong slot 0.
    @pl.when((l == 0) & (j == 0) & (k == 0))
    def _():
        act_ref[0] = x_ref[...].astype(jnp.float32)

    # Seed this (layer, N-tile) accumulator with the bias on the first K step.
    @pl.when(k == 0)
    def _():
        act_ref[dst, j] = jnp.broadcast_to(
            b_ref[0].astype(jnp.float32), (batch, tile))

    # (B, tile) @ (tile, tile) on the MXU, f32 accumulation, result resident in VMEM.
    x_blk = act_ref[src, k].astype(w_ref.dtype)
    act_ref[dst, j] += jnp.dot(x_blk, w_ref[0],
                               preferred_element_type=jnp.float32)

    # Expose the finished tile; only the last layer's values survive in HBM.
    @pl.when(k == num_k - 1)
    def _():
        o_ref[...] = act_ref[dst, j].astype(o_ref.dtype)


def fused_mlp(x, ws, bs, *, tile=1024, vmem_limit_bytes=32 * 1024 * 1024):
    """y = (...((x @ w_0 + b_0) @ w_1 + b_1)...)  with ws:(L, K, N), bs:(L, N), K == N."""
    B, K = x.shape
    L, K2, N = ws.shape
    assert K == K2 == N, "fused activation ping-pong assumes square Linear layers"
    assert N % tile == 0, "HIDDEN must be divisible by the tile size"
    nblk = N // tile

    # Pre-tile the (tiny, 64 KiB) activation so in-kernel indexing is on leading dims,
    # and reshape the bias so its blocks are lane-dense (1, tile).
    x_tiled = x.reshape(B, nblk, tile).transpose(1, 0, 2)     # (nblk, B, tile)
    bs3 = bs.reshape(L, 1, N)

    grid = (L, nblk, nblk)        # (layer, output N-tile, K-reduction tile)
    return pl.pallas_call(
        _fused_mlp_kernel,
        out_shape=jax.ShapeDtypeStruct((B, N), x.dtype),
        grid_spec=pltpu.PrefetchScalarGridSpec(
            num_scalar_prefetch=0,
            grid=grid,
            in_specs=[
                # initial activation: one block, resident for the whole grid
                pl.BlockSpec((nblk, B, tile), lambda l, j, k: (0, 0, 0)),
                # weight tile of layer l: 4 MiB f32 blocks, streamed continuously
                pl.BlockSpec((1, tile, tile), lambda l, j, k: (l, k, j)),
                # bias tile of layer l
                pl.BlockSpec((1, 1, tile), lambda l, j, k: (l, 0, j)),
            ],
            out_specs=pl.BlockSpec((B, tile), lambda l, j, k: (0, j)),
            scratch_shapes=[
                pltpu.VMEM((2, nblk, B, tile), jnp.float32),   # activation ping-pong
            ],
        ),
        compiler_params=pltpu.CompilerParams(
            # Every axis carries a dependency through the VMEM-resident activation,
            # so no axis may be sharded across TensorCores.
            dimension_semantics=("arbitrary", "arbitrary", "arbitrary"),
            # ~8.4 MiB actually used; 32 MiB cap is safe on v5e / v6e / v7x.
            vmem_limit_bytes=vmem_limit_bytes,
        ),
    )(x_tiled, ws, bs3)


def init_params(key, num_layers=NUM_LAYERS, hidden=HIDDEN, dtype=WEIGHT_DTYPE):
    """Params mimicking PyTorch Linear default init U(-1/sqrt(in), 1/sqrt(in)).

    Weights are stored already transposed to (in, out) for the kernel's x @ W + b hot path.
    """
    bound = 1.0 / jnp.sqrt(jnp.float32(hidden))
    kw, kb = jax.random.split(key)
    ws = jax.random.uniform(kw, (num_layers, hidden, hidden), jnp.float32,
                            minval=-bound, maxval=bound).astype(dtype)
    bs = jax.random.uniform(kb, (num_layers, hidden), jnp.float32,
                            minval=-bound, maxval=bound).astype(dtype)
    # NOTE: self.fc = nn.Linear(2048, 1) exists in __init__ but is unused in forward,
    # so it is intentionally not materialized here.
    return ws, bs


@functools.partial(jax.jit, static_argnames=("tile",))
def simple_linear_model_forward(x, ws, bs, *, tile=1024):
    """Forward: x passes sequentially through all stacked Linear layers (no activation fn)."""
    return fused_mlp(x, ws, bs, tile=tile)


if __name__ == "__main__":
    key = jax.random.PRNGKey(0)
    kx, kp = jax.random.split(key)

    x = jax.random.normal(kx, (BATCH, HIDDEN), jnp.float32)
    ws, bs = init_params(kp)

    y = simple_linear_model_forward(x, ws, bs)
    jax.block_until_ready(y)

    # sanity check against plain-JAX reference
    ref = x
    for i in range(NUM_LAYERS):
        ref = ref @ ws[i].astype(jnp.float32) + bs[i].astype(jnp.float32)
    assert y.shape == (BATCH, HIDDEN)
    assert jnp.allclose(y, ref, rtol=1e-4, atol=1e-4)

    print("KERNEL_OK")
</pallas_src>

<mosaic_0001>
module attributes {stable_mosaic.version = 11 : i64} {
  func.func @_fused_mlp_kernel(%arg0: i32, %arg1: i32, %arg2: i32, %arg3: memref<2x8x1024xf32, #tpu.memory_space<vmem>>, %arg4: memref<1x1024x1024xf32, #tpu.memory_space<vmem>>, %arg5: memref<1x1x1024xf32, #tpu.memory_space<vmem>>, %arg6: memref<8x1024xf32, #tpu.memory_space<vmem>>, %arg7: memref<2x2x8x1024xf32, #tpu.memory_space<vmem>>) attributes {dimension_semantics = [#tpu.dimension_semantics<arbitrary>, #tpu.dimension_semantics<arbitrary>, #tpu.dimension_semantics<arbitrary>], iteration_bounds = array<i64: 8, 2, 2>, scalar_prefetch = 0 : i64, scratch_operands = 1 : i64, tpu.core_type = #tpu.core_type<tc>, window_params = [{pipeline_mode = #tpu.pipeline_mode<synchronous>, transform_indices = @transform_0, window_bounds = array<i64: 2, 8, 1024>}, {transform_indices = @transform_1, window_bounds = array<i64: 1, 1024, 1024>}, {transform_indices = @transform_2, window_bounds = array<i64: 1, 1, 1024>}, {transform_indices = @transform_3, window_bounds = array<i64: 8, 1024>}]} {
    %c2_i32 = arith.constant 2 : i32
    %c0_i32 = arith.constant 0 : i32
    %0 = arith.cmpi eq, %c2_i32, %c0_i32 : i32
    %c1_i32 = arith.constant 1 : i32
    %1 = arith.select %0, %c1_i32, %c2_i32 : i32
    %2 = arith.remsi %arg0, %1 : i32
    %c0_i32_0 = arith.constant 0 : i32
    %3 = arith.cmpi ne, %2, %c0_i32_0 : i32
    %c0_i32_1 = arith.constant 0 : i32
    %4 = arith.cmpi slt, %2, %c0_i32_1 : i32
    %c0_i32_2 = arith.constant 0 : i32
    %5 = arith.cmpi slt, %1, %c0_i32_2 : i32
    %6 = arith.xori %4, %5 : i1
    %7 = arith.andi %6, %3 : i1
    %8 = arith.addi %2, %1 : i32
    %9 = arith.select %7, %8, %2 : i32
    %c1_i32_3 = arith.constant 1 : i32
    %10 = arith.subi %c1_i32_3, %9 : i32
    %c0_i32_4 = arith.constant 0 : i32
    %11 = arith.cmpi eq, %arg0, %c0_i32_4 : i32
    %c0_i32_5 = arith.constant 0 : i32
    %12 = arith.cmpi eq, %arg1, %c0_i32_5 : i32
    %13 = arith.andi %11, %12 : i1
    %c0_i32_6 = arith.constant 0 : i32
    %14 = arith.cmpi eq, %arg2, %c0_i32_6 : i32
    %15 = arith.andi %13, %14 : i1
    %16 = arith.extui %15 : i1 to i32
    %c0_i32_7 = arith.constant 0 : i32
    %17 = arith.cmpi ne, %16, %c0_i32_7 : i32
    scf.if %17 {
      %c0_20 = arith.constant 0 : index
      %c0_21 = arith.constant 0 : index
      %c0_22 = arith.constant 0 : index
      %41 = vector.load %arg3[%c0_20, %c0_21, %c0_22] : memref<2x8x1024xf32, #tpu.memory_space<vmem>>, vector<2x8x1024xf32>
      %c0_23 = arith.constant 0 : index
      %c0_24 = arith.constant 0 : index
      %c0_25 = arith.constant 0 : index
      %c0_26 = arith.constant 0 : index
      %42 = vector.load %arg7[%c0_23, %c0_24, %c0_25, %c0_26] : memref<2x2x8x1024xf32, #tpu.memory_space<vmem>>, vector<1x2x8x1024xf32>
      %43 = vector.shape_cast %42 : vector<1x2x8x1024xf32> to vector<2x8x1024xf32>
      %44 = vector.shape_cast %41 : vector<2x8x1024xf32> to vector<1x2x8x1024xf32>
      tpu.vector_store %arg7[%c0_23, %c0_24, %c0_25, %c0_26], %44 {strides = array<i32>} : memref<2x2x8x1024xf32, #tpu.memory_space<vmem>>, vector<1x2x8x1024xf32>,
    } else {
    }
    %c0_i32_8 = arith.constant 0 : i32
    %18 = arith.cmpi eq, %arg2, %c0_i32_8 : i32
    %19 = arith.extui %18 : i1 to i32
    %c0_i32_9 = arith.constant 0 : i32
    %20 = arith.cmpi ne, %19, %c0_i32_9 : i32
    scf.if %20 {
      %c0_20 = arith.constant 0 : index
      %c0_21 = arith.constant 0 : index
      %c0_22 = arith.constant 0 : index
      %41 = vector.load %arg5[%c0_20, %c0_21, %c0_22] : memref<1x1x1024xf32, #tpu.memory_space<vmem>>, vector<1x1x1024xf32>
      %42 = vector.shape_cast %41 : vector<1x1x1024xf32> to vector<1x1024xf32>
      %43 = vector.shape_cast %42 : vector<1x1024xf32> to vector<1x1024xf32>
      %44 = vector.broadcast %43 : vector<1x1024xf32> to vector<8x1024xf32>
      %45 = arith.index_cast %10 : i32 to index
      %46 = arith.index_cast %arg1 : i32 to index
      %c0_23 = arith.constant 0 : index
      %c0_24 = arith.constant 0 : index
      %47 = vector.load %arg7[%45, %46, %c0_23, %c0_24] : memref<2x2x8x1024xf32, #tpu.memory_space<vmem>>, vector<1x1x8x1024xf32>
      %48 = vector.shape_cast %47 : vector<1x1x8x1024xf32> to vector<8x1024xf32>
      %49 = vector.shape_cast %44 : vector<8x1024xf32> to vector<1x1x8x1024xf32>
      tpu.vector_store %arg7[%45, %46, %c0_23, %c0_24], %49 {strides = array<i32>} : memref<2x2x8x1024xf32, #tpu.memory_space<vmem>>, vector<1x1x8x1024xf32>,
    } else {
    }
    %21 = arith.index_cast %9 : i32 to index
    %22 = arith.index_cast %arg2 : i32 to index
    %c0 = arith.constant 0 : index
    %c0_10 = arith.constant 0 : index
    %23 = vector.load %arg7[%21, %22, %c0, %c0_10] : memref<2x2x8x1024xf32, #tpu.memory_space<vmem>>, vector<1x1x8x1024xf32>
    %24 = vector.shape_cast %23 : vector<1x1x8x1024xf32> to vector<8x1024xf32>
    %25 = arith.index_cast %10 : i32 to index
    %26 = arith.index_cast %arg1 : i32 to index
    %c0_11 = arith.constant 0 : index
    %c0_12 = arith.constant 0 : index
    %27 = vector.load %arg7[%25, %26, %c0_11, %c0_12] : memref<2x2x8x1024xf32, #tpu.memory_space<vmem>>, vector<1x1x8x1024xf32>
    %28 = vector.shape_cast %27 : vector<1x1x8x1024xf32> to vector<8x1024xf32>
    %c0_13 = arith.constant 0 : index
    %c0_14 = arith.constant 0 : index
    %c0_15 = arith.constant 0 : index
    %29 = vector.load %arg4[%c0_13, %c0_14, %c0_15] : memref<1x1024x1024xf32, #tpu.memory_space<vmem>>, vector<1x1024x1024xf32>
    %30 = vector.shape_cast %29 : vector<1x1024x1024xf32> to vector<1024x1024xf32>
    %cst = arith.constant dense<0.000000e+00> : vector<8x1024xf32>
    %31 = tpu.matmul %24, %30, %cst {dimension_numbers = #tpu.dot_dimension_numbers<[1], [0], [0], [1], [0, 0, 1, 1], [], []>} : vector<8x1024xf32>, vector<1024x1024xf32>, vector<8x1024xf32> -> vector<8x1024xf32>
    %32 = arith.addf %28, %31 : vector<8x1024xf32>
    %33 = arith.index_cast %10 : i32 to index
    %34 = arith.index_cast %arg1 : i32 to index
    %c0_16 = arith.constant 0 : index
    %c0_17 = arith.constant 0 : index
    %35 = vector.load %arg7[%33, %34, %c0_16, %c0_17] : memref<2x2x8x1024xf32, #tpu.memory_space<vmem>>, vector<1x1x8x1024xf32>
    %36 = vector.shape_cast %35 : vector<1x1x8x1024xf32> to vector<8x1024xf32>
    %37 = vector.shape_cast %32 : vector<8x1024xf32> to vector<1x1x8x1024xf32>
    tpu.vector_store %arg7[%33, %34, %c0_16, %c0_17], %37 {strides = array<i32>} : memref<2x2x8x1024xf32, #tpu.memory_space<vmem>>, vector<1x1x8x1024xf32>,
    %c1_i32_18 = arith.constant 1 : i32
    %38 = arith.cmpi eq, %arg2, %c1_i32_18 : i32
    %39 = arith.extui %38 : i1 to i32
    %c0_i32_19 = arith.constant 0 : i32
    %40 = arith.cmpi ne, %39, %c0_i32_19 : i32
    scf.if %40 {
      %41 = arith.index_cast %10 : i32 to index
      %42 = arith.index_cast %arg1 : i32 to index
      %c0_20 = arith.constant 0 : index
      %c0_21 = arith.constant 0 : index
      %43 = vector.load %arg7[%41, %42, %c0_20, %c0_21] : memref<2x2x8x1024xf32, #tpu.memory_space<vmem>>, vector<1x1x8x1024xf32>
      %44 = vector.shape_cast %43 : vector<1x1x8x1024xf32> to vector<8x1024xf32>
      %c0_22 = arith.constant 0 : index
      %c0_23 = arith.constant 0 : index
      %45 = vector.load %arg6[%c0_22, %c0_23] : memref<8x1024xf32, #tpu.memory_space<vmem>>, vector<8x1024xf32>
      tpu.vector_store %arg6[%c0_22, %c0_23], %44 {strides = array<i32>} : memref<8x1024xf32, #tpu.memory_space<vmem>>, vector<8x1024xf32>,
    } else {
    }
    return
  }
  func.func @transform_0(%arg0: i32, %arg1: i32, %arg2: i32) -> (i32, i32, i32) {
    %c0_i32 = arith.constant 0 : i32
    %c0_i32_0 = arith.constant 0 : i32
    %c0_i32_1 = arith.constant 0 : i32
    %c0_i32_2 = arith.constant 0 : i32
    return %c0_i32, %c0_i32_0, %c0_i32_1 : i32, i32, i32
  }
  func.func @transform_1(%arg0: i32, %arg1: i32, %arg2: i32) -> (i32, i32, i32) {
    %c0_i32 = arith.constant 0 : i32
    return %arg0, %arg2, %arg1 : i32, i32, i32
  }
  func.func @transform_2(%arg0: i32, %arg1: i32, %arg2: i32) -> (i32, i32, i32) {
    %c0_i32 = arith.constant 0 : i32
    %c0_i32_0 = arith.constant 0 : i32
    return %arg0, %c0_i32, %arg1 : i32, i32, i32
  }
  func.func @transform_3(%arg0: i32, %arg1: i32, %arg2: i32) -> (i32, i32) {
    %c0_i32 = arith.constant 0 : i32
    %c0_i32_0 = arith.constant 0 : i32
    return %c0_i32, %arg1 : i32, i32
  }
}

</mosaic_0001>

<llo_original>
// kernel: simple_linear_model_forward.1
$region0: #{simple_linear_model_forward.1}
  #allocation0 [shape = 'u32[]', space=smem, size = 0x4, offset = 0x4, fixed_abs, tag = 'smem constant byte address 0x4 - core index']
  #allocation1 [shape = 'u32[144,128]{1,0:T(1,128)}', space=vmem, size = 0x12000, scoped, tag = 'internal scratch']
  #allocation2 [shape = 'f32[2,2,8,1024]{3,2,1,0:T(8,128)}', space=vmem, size = 0x20000, scoped, tag = 'scratch operand']
  %s0 = inlined_call_operand.hbm [shape: f32[2,8,1024], index: 0, kind: input, shape index: {}]
  %s1 = inlined_call_operand.hbm [shape: f32[8,2048,2048], index: 1, kind: input, shape index: {}]
  %s2 = inlined_call_operand.vmem [shape: f32[8,1,2048], index: 2, kind: input, shape index: {}]
  %s3 = inlined_call_operand.hbm [shape: f32[8,2048], index: 3, kind: output, shape index: {}]
  %s4 = sld [smem:[#allocation0]]
  $region65: #{simple_linear_model_forward.1} parent=0
    _
  %s6 = ssub.s32 1, %s4
  %s7 = scalar_select 0, %s6, %s4
  $region1: #{simple_linear_model_forward.1} parent=0
    #allocation3 [shape = 'u8[65536]{0}', space=vmem, size = 0x10000, scoped, tag = 'input window, operand 0, single buffered']
    #allocation4 [shape = 's32[2]{0}', space=sflag, size = 0x8, scoped, tag = 'scoped memory for simple_linear_model_forward.1']
    #allocation5 [shape = 's32[2]{0}', space=sflag, size = 0x8, scoped, tag = 'scoped memory for simple_linear_model_forward.1']
    #allocation6 [shape = 'u8[8388608]{0}', space=vmem, size = 0x800000, scoped, tag = 'input window, operand 1']
    #allocation7 [shape = 's32[2]{0}', space=sflag, size = 0x8, scoped, tag = 'scoped memory for simple_linear_model_forward.1']
    #allocation8 [shape = 'u8[65536]{0}', space=vmem, size = 0x10000, scoped, tag = 'output window, operand 0']
    %8 = vsyncpa [#allocation4], 0
    %9 = vsyncpa [#allocation7], 0
    %s10 = scalar_lea.sflag [#allocation7], 1
    %11 = vsyncpa %s10, 0
    %12 = vsyncpa [#allocation5], 0
    %s13 = scalar_lea.sflag [#allocation5], 1
    %14 = vsyncpa %s13, 0
    loop: start=0, step=1, limit=34
    $region2: #{simple_linear_model_forward.1} parent=1 // loop_pre_header
      _
    $region3: #{simple_linear_model_forward.1} parent=1 // loop_header
      %s16 = sphi 0, %s20
      %p17 = scmp.ge.s32.totalorder %s16, 34
      %s23 = sphi 0, %s42
      %s24 = sphi 0, %s38
      %s25 = sphi 0, %s34
      %s26 = sphi 0, %s23
      %s27 = sphi 0, %s24
      %s28 = sphi 0, %s25
      %s29 = sphi 0, %s26
      %s30 = sphi 0, %s27
      %s31 = sphi 0, %s28
      %s43 = sphi 0, %s43
      %s45 = sphi 0, %s43
      %s46 = sphi 0, %s45
      %s60 = sphi 0, %s46
      %s70 = sphi 0, %s72
      %s73 = sphi 0, %s70
      %s74 = sphi 0, %s73
      %s90 = sphi 0, %s74
      %s98 = sphi 0, %s100
      %s101 = sphi 0, %s98
      %s102 = sphi 0, %s101
      %s118 = sphi 0, %s102
      %s124 = sphi 0, %s126
      %s127 = sphi 0, %s124
      %s128 = sphi 0, %s127
      %s144 = sphi 0, %s128
    $region4: #{simple_linear_model_forward.1} parent=1 // loop_header_branch
      %19 = sbr.rel (%p17) target = $region8
    $region5: #{simple_linear_model_forward.1} parent=1 // loop_body
      %s21 = ssub.s32 %s16, 1
      %s22 = ssub.s32 %s16, 2
      %s32 = sadd.s32 1, %s25
      %p33 = scmp.ge.s32.totalorder %s32, 2
      %s34 = scalar_select %p33, 0, %s32
      %s35 = sadd.s32 1, %s24
      %s36 = scalar_select %p33, %s35, %s24
      %p37 = scmp.ge.s32.totalorder %s36, 2
      %s38 = scalar_select %p37, 0, %s36
      %s39 = sadd.s32 1, %s23
      %s40 = scalar_select %p37, %s39, %s23
      %p41 = scmp.ge.s32.totalorder %s40, 8
      %s42 = scalar_select %p41, 0, %s40
      %s44 = sadd.s32 %s43, 1
      %p47 = scmp.eq.s32.totalorder %s16, 31
      %p48 = scmp.ne.s32.totalorder %s43, %s45
      %p49 = scmp.eq.s32.totalorder %s16, 0
      %p50 = por %p48, %p49
      %p51 = scmp.ne.s32.totalorder %s43, %s45
      %p52 = scmp.eq.s32.totalorder %s21, 31
      %p53 = por %p51, %p52
      %p54 = scmp.ne.s32.totalorder %s45, %s46
      %p55 = scmp.eq.s32.totalorder %s21, 0
      %p56 = por %p54, %p55
      %p57 = scmp.ne.s32.totalorder %s45, %s46
      %p58 = scmp.eq.s32.totalorder %s22, 31
      %p59 = por %p57, %p58
      %p61 = scmp.ne.s32.totalorder %s46, %s60
      %p62 = scmp.eq.s32.totalorder %s22, 0
      %p63 = por %p61, %p62
      %s64 = ssub.s32 %s23, %s42
      %s65 = ssub.s32 %s25, %s34
      %s66 = sor.u32 %s64, %s65
      %s67 = ssub.s32 %s24, %s38
      %s68 = sor.u32 %s66, %s67
      %p69 = scmp.eq.s32.totalorder %s68, 0
      %s71 = sadd.s32 %s70, 1
      %s72 = scalar_select %p69, %s70, %s71
      %p75 = pneg %p69
      %p76 = scmp.eq.s32.totalorder %s16, 31
      %p77 = por %p75, %p76
      %p78 = scmp.ne.s32.totalorder %s70, %s73
      %p79 = scmp.eq.s32.totalorder %s16, 0
      %p80 = por %p78, %p79
      %p81 = scmp.ne.s32.totalorder %s70, %s73
      %p82 = scmp.eq.s32.totalorder %s21, 31
      %p83 = por %p81, %p82
      %p84 = scmp.ne.s32.totalorder %s73, %s74
      %p85 = scmp.eq.s32.totalorder %s21, 0
      %p86 = por %p84, %p85
      %p87 = scmp.ne.s32.totalorder %s73, %s74
      %p88 = scmp.eq.s32.totalorder %s22, 31
      %p89 = por %p87, %p88
      %p91 = scmp.ne.s32.totalorder %s74, %s90
      %p92 = scmp.eq.s32.totalorder %s22, 0
      %p93 = por %p91, %p92
      %s94 = ssub.s32 %s23, %s42
      %s95 = ssub.s32 %s24, %s38
      %s96 = sor.u32 %s94, %s95
      %p97 = scmp.eq.s32.totalorder %s96, 0
      %s99 = sadd.s32 %s98, 1
      %s100 = scalar_select %p97, %s98, %s99
      %p103 = pneg %p97
      %p104 = scmp.eq.s32.totalorder %s16, 31
      %p105 = por %p103, %p104
      %p106 = scmp.ne.s32.totalorder %s98, %s101
      %p107 = scmp.eq.s32.totalorder %s16, 0
      %p108 = por %p106, %p107
      %p109 = scmp.ne.s32.totalorder %s98, %s101
      %p110 = scmp.eq.s32.totalorder %s21, 31
      %p111 = por %p109, %p110
      %p112 = scmp.ne.s32.totalorder %s101, %s102
      %p113 = scmp.eq.s32.totalorder %s21, 0
      %p114 = por %p112, %p113
      %p115 = scmp.ne.s32.totalorder %s101, %s102
      %p116 = scmp.eq.s32.totalorder %s22, 31
      %p117 = por %p115, %p116
      %p119 = scmp.ne.s32.totalorder %s102, %s118
      %p120 = scmp.eq.s32.totalorder %s22, 0
      %p121 = por %p119, %p120
      %s122 = ssub.s32 %s24, %s38
      %p123 = scmp.eq.s32.totalorder %s122, 0
      %s125 = sadd.s32 %s124, 1
      %s126 = scalar_select %p123, %s124, %s125
      %p129 = pneg %p123
      %p130 = scmp.eq.s32.totalorder %s16, 31
      %p131 = por %p129, %p130
      %p132 = scmp.ne.s32.totalorder %s124, %s127
      %p133 = scmp.eq.s32.totalorder %s16, 0
      %p134 = por %p132, %p133
      %p135 = scmp.ne.s32.totalorder %s124, %s127
      %p136 = scmp.eq.s32.totalorder %s21, 31
      %p137 = por %p135, %p136
      %p138 = scmp.ne.s32.totalorder %s127, %s128
      %p139 = scmp.eq.s32.totalorder %s21, 0
      %p140 = por %p138, %p139
      %p141 = scmp.ne.s32.totalorder %s127, %s128
      %p142 = scmp.eq.s32.totalorder %s22, 31
      %p143 = por %p141, %p142
      %p145 = scmp.ne.s32.totalorder %s128, %s144
      %p146 = scmp.eq.s32.totalorder %s22, 0
      %p147 = por %p145, %p146
      %p148 = scmp.le.s32.totalorder 1, %s16
      %p149 = scmp.lt.s32.totalorder %s16, 33
      %p150 = pnand %p148, %p149
      %p151 = pneg %p150
      // Predicated region
      $region9: #{simple_linear_model_forward.1} parent=5 // pred_check
        _
      $region10: #{simple_linear_model_forward.1} parent=5 // pred_check_branch
        %153 = sbr.rel (%p150) target = $region12
      $region11: #{simple_linear_model_forward.1} parent=5 // pred_region
        %s154 = ssub.s32 %s16, 1
        // Predicated region
        $region13: #{simple_linear_model_forward.1} parent=11 // pred_check
          %p155 = pneg %p56
        $region14: #{simple_linear_model_forward.1} parent=11 // pred_check_branch
          %157 = sbr.rel (%p155) target = $region16
        $region15: #{simple_linear_model_forward.1} parent=11 // pred_region
          %s159 = ssub.s32 2048, 2048
          %160 = vsyncadd [#allocation4], %s159
          %s161 = sshll.u32 [#allocation3], 4
          %s162 = int_to_ptr.vmem [resolvable:$true] %s161
          %167 = dma.hbm_to_vmem [thread:$0]  %s0, 2048, %s162, [#allocation4], 1024, 1024, 64
        $region16: #{simple_linear_model_forward.1} parent=11 // pred_fallthru
          _
      $region12: #{simple_linear_model_forward.1} parent=5 // pred_fallthru
        _
      %p168 = scmp.lt.s32.totalorder %s16, 32
      // Predicated region
      $region17: #{simple_linear_model_forward.1} parent=5 // pred_check
        %p169 = pneg %p168
      $region18: #{simple_linear_model_forward.1} parent=5 // pred_check_branch
        %171 = sbr.rel (%p169) target = $region20
      $region19: #{simple_linear_model_forward.1} parent=5 // pred_region
        // Predicated region
        $region21: #{simple_linear_model_forward.1} parent=19 // pred_check
          %p172 = pneg %p80
        $region22: #{simple_linear_model_forward.1} parent=19 // pred_check_branch
          %174 = sbr.rel (%p172) target = $region24
        $region23: #{simple_linear_model_forward.1} parent=19 // pred_region
          %s175 = sand.u32 %s70, 1
          %s176 = scalar_lea.sflag [#allocation7], %s175
          %s177 = sand.u32 %s70, 1
          %s178 = smul.addr %s177, 8192
          %s179 = scalar_lea.vmem [#allocation6], %s178
          %s180 = smul.u32 128, %s25
          %s181 = smul.u32 8, %s24
          %s183 = ssub.s32 131072, 131072
          %184 = vsyncadd %s176, %s183
          %s185 = smul.addr %s180, 16
          %s186 = sadd.s32 %s181, %s185
          %s187 = smul.addr %s23, 4096
          %s188 = sadd.s32 %s186, %s187
          %s189 = smul.addr %s188, 128
          %s190 = scalar_lea.hbm %s1, %s189
          %s191 = sshll.u32 %s179, 4
          %s192 = int_to_ptr.vmem [resolvable:$true] %s191
          %197 = dma.hbm_to_vmem [thread:$0]  %s190, 131072, %s192, %s176, 2048, 1024, 64
        $region24: #{simple_linear_model_forward.1} parent=19 // pred_fallthru
          _
        // Predicated region
        $region25: #{simple_linear_model_forward.1} parent=19 // pred_check
          %p198 = pneg %p108
        $region26: #{simple_linear_model_forward.1} parent=19 // pred_check_branch
          %200 = sbr.rel (%p198) target = $region28
        $region27: #{simple_linear_model_forward.1} parent=19 // pred_region
          %s201 = smul.u32 8, %s24
          %p202 = scmp.lt.s32.totalorder %s23, 7
          %s203 = scalar_select %p202, %s23, 7
          %p204 = scmp.lt.s32.totalorder %s201, 15
          %s205 = scalar_select %p204, %s201, 15
          %s206 = smul.addr %s203, 16
          %s207 = sadd.s32 %s205, %s206
          %s208 = scalar_lea.vmem %s2, %s207
          %s209 = smul.u32 8, %s24
        $region28: #{simple_linear_model_forward.1} parent=19 // pred_fallthru
          _
      $region20: #{simple_linear_model_forward.1} parent=5 // pred_fallthru
        _
      %p210 = scmp.le.s32.totalorder 1, %s16
      %p211 = scmp.lt.s32.totalorder %s16, 33
      %p212 = pnand %p210, %p211
      %p213 = pneg %p212
      // Predicated region
      $region29: #{simple_linear_model_forward.1} parent=5 // pred_check
        _
      $region30: #{simple_linear_model_forward.1} parent=5 // pred_check_branch
        %215 = sbr.rel (%p212) target = $region32
      $region31: #{simple_linear_model_forward.1} parent=5 // pred_region
        %s216 = ssub.s32 %s16, 1
        // Predicated region
        $region33: #{simple_linear_model_forward.1} parent=31 // pred_check
          %p217 = pneg %p56
        $region34: #{simple_linear_model_forward.1} parent=31 // pred_check_branch
          %219 = sbr.rel (%p217) target = $region36
        $region35: #{simple_linear_model_forward.1} parent=31 // pred_region
          %220 = dma.done [#allocation4], 2048
        $region36: #{simple_linear_model_forward.1} parent=31 // pred_fallthru
          _
        %s221 = sand.u32 %s73, 1
        %s222 = scalar_lea.sflag [#allocation7], %s221
        %s223 = sand.u32 %s73, 1
        %s224 = smul.addr %s223, 8192
        %s225 = scalar_lea.vmem [#allocation6], %s224
        // Predicated region
        $region37: #{simple_linear_model_forward.1} parent=31 // pred_check
          %p226 = pneg %p86
        $region38: #{simple_linear_model_forward.1} parent=31 // pred_check_branch
          %228 = sbr.rel (%p226) target = $region40
        $region39: #{simple_linear_model_forward.1} parent=31 // pred_region
          %229 = dma.done %s222, 131072
        $region40: #{simple_linear_model_forward.1} parent=31 // pred_fallthru
          _
        %p230 = pneg %p56
        %p231 = pneg %p53
        %s232 = sand.u32 %s73, 1
        %s233 = scalar_lea.sflag [#allocation7], %s232
        %s234 = sand.u32 %s73, 1
        %s235 = smul.addr %s234, 8192
        %s236 = scalar_lea.vmem [#allocation6], %s235
        %p237 = pneg %p86
        %p238 = pneg %p83
        %s239 = smul.u32 8, %s27
        %p240 = scmp.lt.s32.totalorder %s26, 7
        %s241 = scalar_select %p240, %s26, 7
        %p242 = scmp.lt.s32.totalorder %s239, 15
        %s243 = scalar_select %p242, %s239, 15
        %s244 = smul.addr %s241, 16
        %s245 = sadd.s32 %s243, %s244
        %s246 = scalar_lea.vmem %s2, %s245
        %p247 = pneg %p114
        %p248 = pneg %p111
        %p249 = pneg %p140
        %p250 = pneg %p137
        %s251 = sand.u32 %s127, 1
        %s252 = scalar_lea.sflag [#allocation5], %s251
        %s253 = sand.u32 %s127, 1
        %s254 = smul.addr %s253, 64
        %s255 = scalar_lea.vmem [#allocation8], %s254
        %s256 = smul.u32 128, %s28
        %s257 = smul.u32 8, %s27
        %s258 = smul.u32 8, %s27
        %p259 = scmp.lt.s32.totalorder %s26, 7
        %s260 = scalar_select %p259, %s26, 7
        %p261 = scmp.lt.s32.totalorder %s258, 15
        %s262 = scalar_select %p261, %s258, 15
        %s263 = smul.addr %s260, 16
        %s264 = sadd.s32 %s262, %s263
        %s265 = scalar_lea.vmem %s2, %s264
        %s266 = smul.u32 8, %s27
        %s267 = smul.u32 8, %s27
        %p268 = scmp.lt.s32.totalorder %s26, 0
        %s269 = ssub.s32 0, %s26
        %s270 = scalar_select %p268, %s269, %s26
        %s271 = sand.u32 %s270, 1
        %s272 = ssub.s32 0, %s271
        %s273 = scalar_select %p268, %s272, %s271
        %p274 = scmp.ne.s32.totalorder %s273, 0
        %p275 = scmp.lt.s32.totalorder %s273, 0
        %p276 = pnand %p275, %p274
        %p277 = pneg %p276
        %s278 = sadd.s32 %s273, 2
        %s279 = scalar_select %p277, %s278, %s273
        %s280 = ssub.s32 1, %s279
        %p281 = scmp.eq.s32.totalorder %s26, 0
        %p282 = scmp.eq.s32.totalorder %s27, 0
        %p283 = pnand %p281, %p282
        %p284 = pneg %p283
        %p285 = scmp.eq.s32.totalorder %s28, 0
        %p286 = pnand %p284, %p285
        %p287 = pneg %p286
        // Predicated region
        $region41: #{simple_linear_model_forward.1} parent=31 // pred_check
          _
        $region42: #{simple_linear_model_forward.1} parent=31 // pred_check_branch
          %289 = sbr.rel (%p286) target = $region44
        $region43: #{simple_linear_model_forward.1} parent=31 // pred_region
          %v290 = vld [vmem:[#allocation3] sm:$0xff]
          %v291 = vld [vmem:[#allocation3 + $0x8] sm:$0xff]
          %v292 = vld [vmem:[#allocation3 + $0x10] sm:$0xff]
          %v293 = vld [vmem:[#allocation3 + $0x18] sm:$0xff]
          %v294 = vld [vmem:[#allocation3 + $0x20] sm:$0xff]
          %v295 = vld [vmem:[#allocation3 + $0x28] sm:$0xff]
          %v296 = vld [vmem:[#allocation3 + $0x30] sm:$0xff]
          %v297 = vld [vmem:[#allocation3 + $0x38] sm:$0xff]
          %v298 = vld [vmem:[#allocation3 + $0x40] sm:$0xff]
          %v299 = vld [vmem:[#allocation3 + $0x48] sm:$0xff]
          %v300 = vld [vmem:[#allocation3 + $0x50] sm:$0xff]
          %v301 = vld [vmem:[#allocation3 + $0x58] sm:$0xff]
          %v302 = vld [vmem:[#allocation3 + $0x60] sm:$0xff]
          %v303 = vld [vmem:[#allocation3 + $0x68] sm:$0xff]
          %v304 = vld [vmem:[#allocation3 + $0x70] sm:$0xff]
          %v305 = vld [vmem:[#allocation3 + $0x78] sm:$0xff]
          %306 = vst [vmem:[#allocation2] sm:$0xff] %v290
          %307 = vst [vmem:[#allocation2 + $0x8] sm:$0xff] %v291
          %308 = vst [vmem:[#allocation2 + $0x10] sm:$0xff] %v292
          %309 = vst [vmem:[#allocation2 + $0x18] sm:$0xff] %v293
          %310 = vst [vmem:[#allocation2 + $0x20] sm:$0xff] %v294
          %311 = vst [vmem:[#allocation2 + $0x28] sm:$0xff] %v295
          %312 = vst [vmem:[#allocation2 + $0x30] sm:$0xff] %v296
          %313 = vst [vmem:[#allocation2 + $0x38] sm:$0xff] %v297
          %314 = vst [vmem:[#allocation2 + $0x40] sm:$0xff] %v298
          %315 = vst [vmem:[#allocation2 + $0x48] sm:$0xff] %v299
          %316 = vst [vmem:[#allocation2 + $0x50] sm:$0xff] %v300
          %317 = vst [vmem:[#allocation2 + $0x58] sm:$0xff] %v301
          %318 = vst [vmem:[#allocation2 + $0x60] sm:$0xff] %v302
          %319 = vst [vmem:[#allocation2 + $0x68] sm:$0xff] %v303
          %320 = vst [vmem:[#allocation2 + $0x70] sm:$0xff] %v304
          %321 = vst [vmem:[#allocation2 + $0x78] sm:$0xff] %v305
        $region44: #{simple_linear_model_forward.1} parent=31 // pred_fallthru
          _
        // Predicated region
        $region45: #{simple_linear_model_forward.1} parent=31 // pred_check
          %p322 = pneg %p285
        $region46: #{simple_linear_model_forward.1} parent=31 // pred_check_branch
          %324 = sbr.rel (%p322) target = $region48
        $region47: #{simple_linear_model_forward.1} parent=31 // pred_region
          %v325 = vld [vmem:[%s265] sm:$0xff]
          %v327 = vlaneseq
          %v328 = vshrl.u32 %v327, 7
          %v329 = vsub.s32 0, %v328
          %v330 = vrot.slane %v325, %v329
          %v331 = vlaneseq
          %v332 = vshrl.u32 %v331, 7
          %v333 = vsub.s32 1, %v332
          %v334 = vrot.slane %v325, %v333
          %v335 = vlaneseq
          %v336 = vshrl.u32 %v335, 7
          %v337 = vsub.s32 2, %v336
          %v338 = vrot.slane %v325, %v337
          %v339 = vlaneseq
          %v340 = vshrl.u32 %v339, 7
          %v341 = vsub.s32 3, %v340
          %v342 = vrot.slane %v325, %v341
          %v343 = vlaneseq
          %v344 = vshrl.u32 %v343, 7
          %v345 = vsub.s32 4, %v344
          %v346 = vrot.slane %v325, %v345
          %v347 = vlaneseq
          %v348 = vshrl.u32 %v347, 7
          %v349 = vsub.s32 5, %v348
          %v350 = vrot.slane %v325, %v349
          %v351 = vlaneseq
          %v352 = vshrl.u32 %v351, 7
          %v353 = vsub.s32 6, %v352
          %v354 = vrot.slane %v325, %v353
          %v355 = vlaneseq
          %v356 = vshrl.u32 %v355, 7
          %v357 = vsub.s32 7, %v356
          %v358 = vrot.slane %v325, %v357
          %s367 = smul.u32 %s27, 8
          %s368 = smul.u32 %s280, 16
          %s369 = sadd.s32 %s367, %s368
          %s370 = smul.addr %s369, 8
          %s371 = scalar_lea.vmem [#allocation2], %s370
          %372 = vst [vmem:[%s371] sm:$0xff] %v330
          %373 = vst [vmem:[%s371 + $0x8] sm:$0xff] %v334
          %374 = vst [vmem:[%s371 + $0x10] sm:$0xff] %v338
          %375 = vst [vmem:[%s371 + $0x18] sm:$0xff] %v342
          %376 = vst [vmem:[%s371 + $0x20] sm:$0xff] %v346
          %377 = vst [vmem:[%s371 + $0x28] sm:$0xff] %v350
          %378 = vst [vmem:[%s371 + $0x30] sm:$0xff] %v354
          %379 = vst [vmem:[%s371 + $0x38] sm:$0xff] %v358
        $region48: #{simple_linear_model_forward.1} parent=31 // pred_fallthru
          _
        %s380 = smul.u32 %s28, 8
        %s381 = smul.u32 %s279, 16
        %s382 = sadd.s32 %s380, %s381
        %s383 = smul.addr %s382, 8
        %s384 = scalar_lea.vmem [#allocation2], %s383
        %v385 = vld [vmem:[%s384] sm:$0xff]
        %v386 = vld [vmem:[%s384 + $0x8] sm:$0xff]
        %v387 = vld [vmem:[%s384 + $0x10] sm:$0xff]
        %v388 = vld [vmem:[%s384 + $0x18] sm:$0xff]
        %v389 = vld [vmem:[%s384 + $0x20] sm:$0xff]
        %v390 = vld [vmem:[%s384 + $0x28] sm:$0xff]
        %v391 = vld [vmem:[%s384 + $0x30] sm:$0xff]
        %v392 = vld [vmem:[%s384 + $0x38] sm:$0xff]
        %s393 = smul.u32 %s27, 8
        %s394 = smul.u32 %s280, 16
        %s395 = sadd.s32 %s393, %s394
        %s396 = smul.addr %s395, 8
        %s397 = scalar_lea.vmem [#allocation2], %s396
        %v398 = vld [vmem:[%s397] sm:$0xff]
        %v399 = vld [vmem:[%s397 + $0x8] sm:$0xff]
        %v400 = vld [vmem:[%s397 + $0x10] sm:$0xff]
        %v401 = vld [vmem:[%s397 + $0x18] sm:$0xff]
        %v402 = vld [vmem:[%s397 + $0x20] sm:$0xff]
        %v403 = vld [vmem:[%s397 + $0x28] sm:$0xff]
        %v404 = vld [vmem:[%s397 + $0x30] sm:$0xff]
        %v405 = vld [vmem:[%s397 + $0x38] sm:$0xff]
        %v406 = vld [vmem:[%s225] sm:$0xff]
        %v407 = vld [vmem:[%s225 + $0x8] sm:$0xff]
        %v408 = vld [vmem:[%s225 + $0x10] sm:$0xff]
        %v409 = vld [vmem:[%s225 + $0x18] sm:$0xff]
        %v410 = vld [vmem:[%s225 + $0x20] sm:$0xff]
        %v411 = vld [vmem:[%s225 + $0x28] sm:$0xff]
        %v412 = vld [vmem:[%s225 + $0x30] sm:$0xff]
        %v413 = vld [vmem:[%s225 + $0x38] sm:$0xff]
        %v414 = vld [vmem:[%s225 + $0x40] sm:$0xff]
        %v415 = vld [vmem:[%s225 + $0x48] sm:$0xff]
        %v416 = vld [vmem:[%s225 + $0x50] sm:$0xff]
        %v417 = vld [vmem:[%s225 + $0x58] sm:$0xff]
        %v418 = vld [vmem:[%s225 + $0x60] sm:$0xff]
        %v419 = vld [vmem:[%s225 + $0x68] sm:$0xff]
        %v420 = vld [vmem:[%s225 + $0x70] sm:$0xff]
        %v421 = vld [vmem:[%s225 + $0x78] sm:$0xff]
        %v422 = vld [vmem:[%s225 + $0x80] sm:$0xff]
        %v423 = vld [vmem:[%s225 + $0x88] sm:$0xff]
        %v424 = vld [vmem:[%s225 + $0x90] sm:$0xff]
        %v425 = vld [vmem:[%s225 + $0x98] sm:$0xff]
        %v426 = vld [vmem:[%s225 + $0xa0] sm:$0xff]
        %v427 = vld [vmem:[%s225 + $0xa8] sm:$0xff]
        %v428 = vld [vmem:[%s225 + $0xb0] sm:$0xff]
        %v429 = vld [vmem:[%s225 + $0xb8] sm:$0xff]
        %v430 = vld [vmem:[%s225 + $0xc0] sm:$0xff]
        %v431 = vld [vmem:[%s225 + $0xc8] sm:$0xff]
        %v432 = vld [vmem:[%s225 + $0xd0] sm:$0xff]
        %v433 = vld [vmem:[%s225 + $0xd8] sm:$0xff]
        %v434 = vld [vmem:[%s225 + $0xe0] sm:$0xff]
        %v435 = vld [vmem:[%s225 + $0xe8] sm:$0xff]
        %v436 = vld [vmem:[%s225 + $0xf0] sm:$0xff]
        %v437 = vld [vmem:[%s225 + $0xf8] sm:$0xff]
        %v438 = vld [vmem:[%s225 + $0x100] sm:$0xff]
        %v439 = vld [vmem:[%s225 + $0x108] sm:$0xff]
        %v440 = vld [vmem:[%s225 + $0x110] sm:$0xff]
        %v441 = vld [vmem:[%s225 + $0x118] sm:$0xff]
        %v442 = vld [vmem:[%s225 + $0x120] sm:$0xff]
        %v443 = vld [vmem:[%s225 + $0x128] sm:$0xff]
        %v444 = vld [vmem:[%s225 + $0x130] sm:$0xff]
        %v445 = vld [vmem:[%s225 + $0x138] sm:$0xff]
        %v446 = vld [vmem:[%s225 + $0x140] sm:$0xff]
        %v447 = vld [vmem:[%s225 + $0x148] sm:$0xff]
        %v448 = vld [vmem:[%s225 + $0x150] sm:$0xff]
        %v449 = vld [vmem:[%s225 + $0x158] sm:$0xff]
        %v450 = vld [vmem:[%s225 + $0x160] sm:$0xff]
        %v451 = vld [vmem:[%s225 + $0x168] sm:$0xff]
        %v452 = vld [vmem:[%s225 + $0x170] sm:$0xff]
        %v453 = vld [vmem:[%s225 + $0x178] sm:$0xff]
        %v454 = vld [vmem:[%s225 + $0x180] sm:$0xff]
        %v455 = vld [vmem:[%s225 + $0x188] sm:$0xff]
        %v456 = vld [vmem:[%s225 + $0x190] sm:$0xff]
        %v457 = vld [vmem:[%s225 + $0x198] sm:$0xff]
        %v458 = vld [vmem:[%s225 + $0x1a0] sm:$0xff]
        %v459 = vld [vmem:[%s225 + $0x1a8] sm:$0xff]
        %v460 = vld [vmem:[%s225 + $0x1b0] sm:$0xff]
        %v461 = vld [vmem:[%s225 + $0x1b8] sm:$0xff]
        %v462 = vld [vmem:[%s225 + $0x1c0] sm:$0xff]
        %v463 = vld [vmem:[%s225 + $0x1c8] sm:$0xff]
        %v464 = vld [vmem:[%s225 + $0x1d0] sm:$0xff]
        %v465 = vld [vmem:[%s225 + $0x1d8] sm:$0xff]
        %v466 = vld [vmem:[%s225 + $0x1e0] sm:$0xff]
        %v467 = vld [vmem:[%s225 + $0x1e8] sm:$0xff]
        %v468 = vld [vmem:[%s225 + $0x1f0] sm:$0xff]
        %v469 = vld [vmem:[%s225 + $0x1f8] sm:$0xff]
        %v470 = vld [vmem:[%s225 + $0x200] sm:$0xff]
        %v471 = vld [vmem:[%s225 + $0x208] sm:$0xff]
        %v472 = vld [vmem:[%s225 + $0x210] sm:$0xff]
        %v473 = vld [vmem:[%s225 + $0x218] sm:$0xff]
        %v474 = vld [vmem:[%s225 + $0x220] sm:$0xff]
        %v475 = vld [vmem:[%s225 + $0x228] sm:$0xff]
        %v476 = vld [vmem:[%s225 + $0x230] sm:$0xff]
        %v477 = vld [vmem:[%s225 + $0x238] sm:$0xff]
        %v478 = vld [vmem:[%s225 + $0x240] sm:$0xff]
        %v479 = vld [vmem:[%s225 + $0x248] sm:$0xff]
        %v480 = vld [vmem:[%s225 + $0x250] sm:$0xff]
        %v481 = vld [vmem:[%s225 + $0x258] sm:$0xff]
        %v482 = vld [vmem:[%s225 + $0x260] sm:$0xff]
        %v483 = vld [vmem:[%s225 + $0x268] sm:$0xff]
        %v484 = vld [vmem:[%s225 + $0x270] sm:$0xff]
        %v485 = vld [vmem:[%s225 + $0x278] sm:$0xff]
        %v486 = vld [vmem:[%s225 + $0x280] sm:$0xff]
        %v487 = vld [vmem:[%s225 + $0x288] sm:$0xff]
        %v488 = vld [vmem:[%s225 + $0x290] sm:$0xff]
        %v489 = vld [vmem:[%s225 + $0x298] sm:$0xff]
        %v490 = vld [vmem:[%s225 + $0x2a0] sm:$0xff]
        %v491 = vld [vmem:[%s225 + $0x2a8] sm:$0xff]
        %v492 = vld [vmem:[%s225 + $0x2b0] sm:$0xff]
        %v493 = vld [vmem:[%s225 + $0x2b8] sm:$0xff]
        %v494 = vld [vmem:[%s225 + $0x2c0] sm:$0xff]
        %v495 = vld [vmem:[%s225 + $0x2c8] sm:$0xff]
        %v496 = vld [vmem:[%s225 + $0x2d0] sm:$0xff]
        %v497 = vld [vmem:[%s225 + $0x2d8] sm:$0xff]
        %v498 = vld [vmem:[%s225 + $0x2e0] sm:$0xff]
        %v499 = vld [vmem:[%s225 + $0x2e8] sm:$0xff]
        %v500 = vld [vmem:[%s225 + $0x2f0] sm:$0xff]
        %v501 = vld [vmem:[%s225 + $0x2f8] sm:$0xff]
        %v502 = vld [vmem:[%s225 + $0x300] sm:$0xff]
        %v503 = vld [vmem:[%s225 + $0x308] sm:$0xff]
        %v504 = vld [vmem:[%s225 + $0x310] sm:$0xff]
        %v505 = vld [vmem:[%s225 + $0x318] sm:$0xff]
        %v506 = vld [vmem:[%s225 + $0x320] sm:$0xff]
        %v507 = vld [vmem:[%s225 + $0x328] sm:$0xff]
        %v508 = vld [vmem:[%s225 + $0x330] sm:$0xff]
        %v509 = vld [vmem:[%s225 + $0x338] sm:$0xff]
        %v510 = vld [vmem:[%s225 + $0x340] sm:$0xff]
        %v511 = vld [vmem:[%s225 + $0x348] sm:$0xff]
        %v512 = vld [vmem:[%s225 + $0x350] sm:$0xff]
        %v513 = vld [vmem:[%s225 + $0x358] sm:$0xff]
        %v514 = vld [vmem:[%s225 + $0x360] sm:$0xff]
        %v515 = vld [vmem:[%s225 + $0x368] sm:$0xff]
        %v516 = vld [vmem:[%s225 + $0x370] sm:$0xff]
        %v517 = vld [vmem:[%s225 + $0x378] sm:$0xff]
        %v518 = vld [vmem:[%s225 + $0x380] sm:$0xff]
        %v519 = vld [vmem:[%s225 + $0x388] sm:$0xff]
        %v520 = vld [vmem:[%s225 + $0x390] sm:$0xff]
        %v521 = vld [vmem:[%s225 + $0x398] sm:$0xff]
        %v522 = vld [vmem:[%s225 + $0x3a0] sm:$0xff]
        %v523 = vld [vmem:[%s225 + $0x3a8] sm:$0xff]
        %v524 = vld [vmem:[%s225 + $0x3b0] sm:$0xff]
        %v525 = vld [vmem:[%s225 + $0x3b8] sm:$0xff]
        %v526 = vld [vmem:[%s225 + $0x3c0] sm:$0xff]
        %v527 = vld [vmem:[%s225 + $0x3c8] sm:$0xff]
        %v528 = vld [vmem:[%s225 + $0x3d0] sm:$0xff]
        %v529 = vld [vmem:[%s225 + $0x3d8] sm:$0xff]
        %v530 = vld [vmem:[%s225 + $0x3e0] sm:$0xff]
        %v531 = vld [vmem:[%s225 + $0x3e8] sm:$0xff]
        %v532 = vld [vmem:[%s225 + $0x3f0] sm:$0xff]
        %v533 = vld [vmem:[%s225 + $0x3f8] sm:$0xff]
        %v534 = vld [vmem:[%s225 + $0x400] sm:$0xff]
        %v535 = vld [vmem:[%s225 + $0x408] sm:$0xff]
        %v536 = vld [vmem:[%s225 + $0x410] sm:$0xff]
        %v537 = vld [vmem:[%s225 + $0x418] sm:$0xff]
        %v538 = vld [vmem:[%s225 + $0x420] sm:$0xff]
        %v539 = vld [vmem:[%s225 + $0x428] sm:$0xff]
        %v540 = vld [vmem:[%s225 + $0x430] sm:$0xff]
        %v541 = vld [vmem:[%s225 + $0x438] sm:$0xff]
        %v542 = vld [vmem:[%s225 + $0x440] sm:$0xff]
        %v543 = vld [vmem:[%s225 + $0x448] sm:$0xff]
        %v544 = vld [vmem:[%s225 + $0x450] sm:$0xff]
        %v545 = vld [vmem:[%s225 + $0x458] sm:$0xff]
        %v546 = vld [vmem:[%s225 + $0x460] sm:$0xff]
        %v547 = vld [vmem:[%s225 + $0x468] sm:$0xff]
        %v548 = vld [vmem:[%s225 + $0x470] sm:$0xff]
        %v549 = vld [vmem:[%s225 + $0x478] sm:$0xff]
        %v550 = vld [vmem:[%s225 + $0x480] sm:$0xff]
        %v551 = vld [vmem:[%s225 + $0x488] sm:$0xff]
        %v552 = vld [vmem:[%s225 + $0x490] sm:$0xff]
        %v553 = vld [vmem:[%s225 + $0x498] sm:$0xff]
        %v554 = vld [vmem:[%s225 + $0x4a0] sm:$0xff]
        %v555 = vld [vmem:[%s225 + $0x4a8] sm:$0xff]
        %v556 = vld [vmem:[%s225 + $0x4b0] sm:$0xff]
        %v557 = vld [vmem:[%s225 + $0x4b8] sm:$0xff]
        %v558 = vld [vmem:[%s225 + $0x4c0] sm:$0xff]
        %v559 = vld [vmem:[%s225 + $0x4c8] sm:$0xff]
        %v560 = vld [vmem:[%s225 + $0x4d0] sm:$0xff]
        %v561 = vld [vmem:[%s225 + $0x4d8] sm:$0xff]
        %v562 = vld [vmem:[%s225 + $0x4e0] sm:$0xff]
        %v563 = vld [vmem:[%s225 + $0x4e8] sm:$0xff]
        %v564 = vld [vmem:[%s225 + $0x4f0] sm:$0xff]
        %v565 = vld [vmem:[%s225 + $0x4f8] sm:$0xff]
        %v566 = vld [vmem:[%s225 + $0x500] sm:$0xff]
        %v567 = vld [vmem:[%s225 + $0x508] sm:$0xff]
        %v568 = vld [vmem:[%s225 + $0x510] sm:$0xff]
        %v569 = vld [vmem:[%s225 + $0x518] sm:$0xff]
        %v570 = vld [vmem:[%s225 + $0x520] sm:$0xff]
        %v571 = vld [vmem:[%s225 + $0x528] sm:$0xff]
        %v572 = vld [vmem:[%s225 + $0x530] sm:$0xff]
        %v573 = vld [vmem:[%s225 + $0x538] sm:$0xff]
        %v574 = vld [vmem:[%s225 + $0x540] sm:$0xff]
        %v575 = vld [vmem:[%s225 + $0x548] sm:$0xff]
        %v576 = vld [vmem:[%s225 + $0x550] sm:$0xff]
        %v577 = vld [vmem:[%s225 + $0x558] sm:$0xff]
        %v578 = vld [vmem:[%s225 + $0x560] sm:$0xff]
        %v579 = vld [vmem:[%s225 + $0x568] sm:$0xff]
        %v580 = vld [vmem:[%s225 + $0x570] sm:$0xff]
        %v581 = vld [vmem:[%s225 + $0x578] sm:$0xff]
        %v582 = vld [vmem:[%s225 + $0x580] sm:$0xff]
        %v583 = vld [vmem:[%s225 + $0x588] sm:$0xff]
        %v584 = vld [vmem:[%s225 + $0x590] sm:$0xff]
        %v585 = vld [vmem:[%s225 + $0x598] sm:$0xff]
        %v586 = vld [vmem:[%s225 + $0x5a0] sm:$0xff]
        %v587 = vld [vmem:[%s225 + $0x5a8] sm:$0xff]
        %v588 = vld [vmem:[%s225 + $0x5b0] sm:$0xff]
        %v589 = vld [vmem:[%s225 + $0x5b8] sm:$0xff]
        %v590 = vld [vmem:[%s225 + $0x5c0] sm:$0xff]
        %v591 = vld [vmem:[%s225 + $0x5c8] sm:$0xff]
        %v592 = vld [vmem:[%s225 + $0x5d0] sm:$0xff]
        %v593 = vld [vmem:[%s225 + $0x5d8] sm:$0xff]
        %v594 = vld [vmem:[%s225 + $0x5e0] sm:$0xff]
        %v595 = vld [vmem:[%s225 + $0x5e8] sm:$0xff]
        %v596 = vld [vmem:[%s225 + $0x5f0] sm:$0xff]
        %v597 = vld [vmem:[%s225 + $0x5f8] sm:$0xff]
        %v598 = vld [vmem:[%s225 + $0x600] sm:$0xff]
        %v599 = vld [vmem:[%s225 + $0x608] sm:$0xff]
        %v600 = vld [vmem:[%s225 + $0x610] sm:$0xff]
        %v601 = vld [vmem:[%s225 + $0x618] sm:$0xff]
        %v602 = vld [vmem:[%s225 + $0x620] sm:$0xff]
        %v603 = vld [vmem:[%s225 + $0x628] sm:$0xff]
        %v604 = vld [vmem:[%s225 + $0x630] sm:$0xff]
        %v605 = vld [vmem:[%s225 + $0x638] sm:$0xff]
        %v606 = vld [vmem:[%s225 + $0x640] sm:$0xff]
        %v607 = vld [vmem:[%s225 + $0x648] sm:$0xff]
        %v608 = vld [vmem:[%s225 + $0x650] sm:$0xff]
        %v609 = vld [vmem:[%s225 + $0x658] sm:$0xff]
        %v610 = vld [vmem:[%s225 + $0x660] sm:$0xff]
        %v611 = vld [vmem:[%s225 + $0x668] sm:$0xff]
        %v612 = vld [vmem:[%s225 + $0x670] sm:$0xff]
        %v613 = vld [vmem:[%s225 + $0x678] sm:$0xff]
        %v614 = vld [vmem:[%s225 + $0x680] sm:$0xff]
        %v615 = vld [vmem:[%s225 + $0x688] sm:$0xff]
        %v616 = vld [vmem:[%s225 + $0x690] sm:$0xff]
        %v617 = vld [vmem:[%s225 + $0x698] sm:$0xff]
        %v618 = vld [vmem:[%s225 + $0x6a0] sm:$0xff]
        %v619 = vld [vmem:[%s225 + $0x6a8] sm:$0xff]
        %v620 = vld [vmem:[%s225 + $0x6b0] sm:$0xff]
        %v621 = vld [vmem:[%s225 + $0x6b8] sm:$0xff]
        %v622 = vld [vmem:[%s225 + $0x6c0] sm:$0xff]
        %v623 = vld [vmem:[%s225 + $0x6c8] sm:$0xff]
        %v624 = vld [vmem:[%s225 + $0x6d0] sm:$0xff]
        %v625 = vld [vmem:[%s225 + $0x6d8] sm:$0xff]
        %v626 = vld [vmem:[%s225 + $0x6e0] sm:$0xff]
        %v627 = vld [vmem:[%s225 + $0x6e8] sm:$0xff]
        %v628 = vld [vmem:[%s225 + $0x6f0] sm:$0xff]
        %v629 = vld [vmem:[%s225 + $0x6f8] sm:$0xff]
        %v630 = vld [vmem:[%s225 + $0x700] sm:$0xff]
        %v631 = vld [vmem:[%s225 + $0x708] sm:$0xff]
        %v632 = vld [vmem:[%s225 + $0x710] sm:$0xff]
        %v633 = vld [vmem:[%s225 + $0x718] sm:$0xff]
        %v634 = vld [vmem:[%s225 + $0x720] sm:$0xff]
        %v635 = vld [vmem:[%s225 + $0x728] sm:$0xff]
        %v636 = vld [vmem:[%s225 + $0x730] sm:$0xff]
        %v637 = vld [vmem:[%s225 + $0x738] sm:$0xff]
        %v638 = vld [vmem:[%s225 + $0x740] sm:$0xff]
        %v639 = vld [vmem:[%s225 + $0x748] sm:$0xff]
        %v640 = vld [vmem:[%s225 + $0x750] sm:$0xff]
        %v641 = vld [vmem:[%s225 + $0x758] sm:$0xff]
        %v642 = vld [vmem:[%s225 + $0x760] sm:$0xff]
        %v643 = vld [vmem:[%s225 + $0x768] sm:$0xff]
        %v644 = vld [vmem:[%s225 + $0x770] sm:$0xff]
        %v645 = vld [vmem:[%s225 + $0x778] sm:$0xff]
        %v646 = vld [vmem:[%s225 + $0x780] sm:$0xff]
        %v647 = vld [vmem:[%s225 + $0x788] sm:$0xff]
        %v648 = vld [vmem:[%s225 + $0x790] sm:$0xff]
        %v649 = vld [vmem:[%s225 + $0x798] sm:$0xff]
        %v650 = vld [vmem:[%s225 + $0x7a0] sm:$0xff]
        %v651 = vld [vmem:[%s225 + $0x7a8] sm:$0xff]
        %v652 = vld [vmem:[%s225 + $0x7b0] sm:$0xff]
        %v653 = vld [vmem:[%s225 + $0x7b8] sm:$0xff]
        %v654 = vld [vmem:[%s225 + $0x7c0] sm:$0xff]
        %v655 = vld [vmem:[%s225 + $0x7c8] sm:$0xff]
        %v656 = vld [vmem:[%s225 + $0x7d0] sm:$0xff]
        %v657 = vld [vmem:[%s225 + $0x7d8] sm:$0xff]
        %v658 = vld [vmem:[%s225 + $0x7e0] sm:$0xff]
        %v659 = vld [vmem:[%s225 + $0x7e8] sm:$0xff]
        %v660 = vld [vmem:[%s225 + $0x7f0] sm:$0xff]
        %v661 = vld [vmem:[%s225 + $0x7f8] sm:$0xff]
        %v662 = vld [vmem:[%s225 + $0x800] sm:$0xff]
        %v663 = vld [vmem:[%s225 + $0x808] sm:$0xff]
        %v664 = vld [vmem:[%s225 + $0x810] sm:$0xff]
        %v665 = vld [vmem:[%s225 + $0x818] sm:$0xff]
        %v666 = vld [vmem:[%s225 + $0x820] sm:$0xff]
        %v667 = vld [vmem:[%s225 + $0x828] sm:$0xff]
        %v668 = vld [vmem:[%s225 + $0x830] sm:$0xff]
        %v669 = vld [vmem:[%s225 + $0x838] sm:$0xff]
        %v670 = vld [vmem:[%s225 + $0x840] sm:$0xff]
        %v671 = vld [vmem:[%s225 + $0x848] sm:$0xff]
        %v672 = vld [vmem:[%s225 + $0x850] sm:$0xff]
        %v673 = vld [vmem:[%s225 + $0x858] sm:$0xff]
        %v674 = vld [vmem:[%s225 + $0x860] sm:$0xff]
        %v675 = vld [vmem:[%s225 + $0x868] sm:$0xff]
        %v676 = vld [vmem:[%s225 + $0x870] sm:$0xff]
        %v677 = vld [vmem:[%s225 + $0x878] sm:$0xff]
        %v678 = vld [vmem:[%s225 + $0x880] sm:$0xff]
        %v679 = vld [vmem:[%s225 + $0x888] sm:$0xff]
        %v680 = vld [vmem:[%s225 + $0x890] sm:$0xff]
        %v681 = vld [vmem:[%s225 + $0x898] sm:$0xff]
        %v682 = vld [vmem:[%s225 + $0x8a0] sm:$0xff]
        %v683 = vld [vmem:[%s225 + $0x8a8] sm:$0xff]
        %v684 = vld [vmem:[%s225 + $0x8b0] sm:$0xff]
        %v685 = vld [vmem:[%s225 + $0x8b8] sm:$0xff]
        %v686 = vld [vmem:[%s225 + $0x8c0] sm:$0xff]
        %v687 = vld [vmem:[%s225 + $0x8c8] sm:$0xff]
        %v688 = vld [vmem:[%s225 + $0x8d0] sm:$0xff]
        %v689 = vld [vmem:[%s225 + $0x8d8] sm:$0xff]
        %v690 = vld [vmem:[%s225 + $0x8e0] sm:$0xff]
        %v691 = vld [vmem:[%s225 + $0x8e8] sm:$0xff]
        %v692 = vld [vmem:[%s225 + $0x8f0] sm:$0xff]
        %v693 = vld [vmem:[%s225 + $0x8f8] sm:$0xff]
        %v694 = vld [vmem:[%s225 + $0x900] sm:$0xff]
        %v695 = vld [vmem:[%s225 + $0x908] sm:$0xff]
        %v696 = vld [vmem:[%s225 + $0x910] sm:$0xff]
        %v697 = vld [vmem:[%s225 + $0x918] sm:$0xff]
        %v698 = vld [vmem:[%s225 + $0x920] sm:$0xff]
        %v699 = vld [vmem:[%s225 + $0x928] sm:$0xff]
        %v700 = vld [vmem:[%s225 + $0x930] sm:$0xff]
        %v701 = vld [vmem:[%s225 + $0x938] sm:$0xff]
        %v702 = vld [vmem:[%s225 + $0x940] sm:$0xff]
        %v703 = vld [vmem:[%s225 + $0x948] sm:$0xff]
        %v704 = vld [vmem:[%s225 + $0x950] sm:$0xff]
        %v705 = vld [vmem:[%s225 + $0x958] sm:$0xff]
        %v706 = vld [vmem:[%s225 + $0x960] sm:$0xff]
        %v707 = vld [vmem:[%s225 + $0x968] sm:$0xff]
        %v708 = vld [vmem:[%s225 + $0x970] sm:$0xff]
        %v709 = vld [vmem:[%s225 + $0x978] sm:$0xff]
        %v710 = vld [vmem:[%s225 + $0x980] sm:$0xff]
        %v711 = vld [vmem:[%s225 + $0x988] sm:$0xff]
        %v712 = vld [vmem:[%s225 + $0x990] sm:$0xff]
        %v713 = vld [vmem:[%s225 + $0x998] sm:$0xff]
        %v714 = vld [vmem:[%s225 + $0x9a0] sm:$0xff]
        %v715 = vld [vmem:[%s225 + $0x9a8] sm:$0xff]
        %v716 = vld [vmem:[%s225 + $0x9b0] sm:$0xff]
        %v717 = vld [vmem:[%s225 + $0x9b8] sm:$0xff]
        %v718 = vld [vmem:[%s225 + $0x9c0] sm:$0xff]
        %v719 = vld [vmem:[%s225 + $0x9c8] sm:$0xff]
        %v720 = vld [vmem:[%s225 + $0x9d0] sm:$0xff]
        %v721 = vld [vmem:[%s225 + $0x9d8] sm:$0xff]
        %v722 = vld [vmem:[%s225 + $0x9e0] sm:$0xff]
        %v723 = vld [vmem:[%s225 + $0x9e8] sm:$0xff]
        %v724 = vld [vmem:[%s225 + $0x9f0] sm:$0xff]
        %v725 = vld [vmem:[%s225 + $0x9f8] sm:$0xff]
        %v726 = vld [vmem:[%s225 + $0xa00] sm:$0xff]
        %v727 = vld [vmem:[%s225 + $0xa08] sm:$0xff]
        %v728 = vld [vmem:[%s225 + $0xa10] sm:$0xff]
        %v729 = vld [vmem:[%s225 + $0xa18] sm:$0xff]
        %v730 = vld [vmem:[%s225 + $0xa20] sm:$0xff]
        %v731 = vld [vmem:[%s225 + $0xa28] sm:$0xff]
        %v732 = vld [vmem:[%s225 + $0xa30] sm:$0xff]
        %v733 = vld [vmem:[%s225 + $0xa38] sm:$0xff]
        %v734 = vld [vmem:[%s225 + $0xa40] sm:$0xff]
        %v735 = vld [vmem:[%s225 + $0xa48] sm:$0xff]
        %v736 = vld [vmem:[%s225 + $0xa50] sm:$0xff]
        %v737 = vld [vmem:[%s225 + $0xa58] sm:$0xff]
        %v738 = vld [vmem:[%s225 + $0xa60] sm:$0xff]
        %v739 = vld [vmem:[%s225 + $0xa68] sm:$0xff]
        %v740 = vld [vmem:[%s225 + $0xa70] sm:$0xff]
        %v741 = vld [vmem:[%s225 + $0xa78] sm:$0xff]
        %v742 = vld [vmem:[%s225 + $0xa80] sm:$0xff]
        %v743 = vld [vmem:[%s225 + $0xa88] sm:$0xff]
        %v744 = vld [vmem:[%s225 + $0xa90] sm:$0xff]
        %v745 = vld [vmem:[%s225 + $0xa98] sm:$0xff]
        %v746 = vld [vmem:[%s225 + $0xaa0] sm:$0xff]
        %v747 = vld [vmem:[%s225 + $0xaa8] sm:$0xff]
        %v748 = vld [vmem:[%s225 + $0xab0] sm:$0xff]
        %v749 = vld [vmem:[%s225 + $0xab8] sm:$0xff]
        %v750 = vld [vmem:[%s225 + $0xac0] sm:$0xff]
        %v751 = vld [vmem:[%s225 + $0xac8] sm:$0xff]
        %v752 = vld [vmem:[%s225 + $0xad0] sm:$0xff]
        %v753 = vld [vmem:[%s225 + $0xad8] sm:$0xff]
        %v754 = vld [vmem:[%s225 + $0xae0] sm:$0xff]
        %v755 = vld [vmem:[%s225 + $0xae8] sm:$0xff]
        %v756 = vld [vmem:[%s225 + $0xaf0] sm:$0xff]
        %v757 = vld [vmem:[%s225 + $0xaf8] sm:$0xff]
        %v758 = vld [vmem:[%s225 + $0xb00] sm:$0xff]
        %v759 = vld [vmem:[%s225 + $0xb08] sm:$0xff]
        %v760 = vld [vmem:[%s225 + $0xb10] sm:$0xff]
        %v761 = vld [vmem:[%s225 + $0xb18] sm:$0xff]
        %v762 = vld [vmem:[%s225 + $0xb20] sm:$0xff]
        %v763 = vld [vmem:[%s225 + $0xb28] sm:$0xff]
        %v764 = vld [vmem:[%s225 + $0xb30] sm:$0xff]
        %v765 = vld [vmem:[%s225 + $0xb38] sm:$0xff]
        %v766 = vld [vmem:[%s225 + $0xb40] sm:$0xff]
        %v767 = vld [vmem:[%s225 + $0xb48] sm:$0xff]
        %v768 = vld [vmem:[%s225 + $0xb50] sm:$0xff]
        %v769 = vld [vmem:[%s225 + $0xb58] sm:$0xff]
        %v770 = vld [vmem:[%s225 + $0xb60] sm:$0xff]
        %v771 = vld [vmem:[%s225 + $0xb68] sm:$0xff]
        %v772 = vld [vmem:[%s225 + $0xb70] sm:$0xff]
        %v773 = vld [vmem:[%s225 + $0xb78] sm:$0xff]
        %v774 = vld [vmem:[%s225 + $0xb80] sm:$0xff]
        %v775 = vld [vmem:[%s225 + $0xb88] sm:$0xff]
        %v776 = vld [vmem:[%s225 + $0xb90] sm:$0xff]
        %v777 = vld [vmem:[%s225 + $0xb98] sm:$0xff]
        %v778 = vld [vmem:[%s225 + $0xba0] sm:$0xff]
        %v779 = vld [vmem:[%s225 + $0xba8] sm:$0xff]
        %v780 = vld [vmem:[%s225 + $0xbb0] sm:$0xff]
        %v781 = vld [vmem:[%s225 + $0xbb8] sm:$0xff]
        %v782 = vld [vmem:[%s225 + $0xbc0] sm:$0xff]
        %v783 = vld [vmem:[%s225 + $0xbc8] sm:$0xff]
        %v784 = vld [vmem:[%s225 + $0xbd0] sm:$0xff]
        %v785 = vld [vmem:[%s225 + $0xbd8] sm:$0xff]
        %v786 = vld [vmem:[%s225 + $0xbe0] sm:$0xff]
        %v787 = vld [vmem:[%s225 + $0xbe8] sm:$0xff]
        %v788 = vld [vmem:[%s225 + $0xbf0] sm:$0xff]
        %v789 = vld [vmem:[%s225 + $0xbf8] sm:$0xff]
        %v790 = vld [vmem:[%s225 + $0xc00] sm:$0xff]
        %v791 = vld [vmem:[%s225 + $0xc08] sm:$0xff]
        %v792 = vld [vmem:[%s225 + $0xc10] sm:$0xff]
        %v793 = vld [vmem:[%s225 + $0xc18] sm:$0xff]
        %v794 = vld [vmem:[%s225 + $0xc20] sm:$0xff]
        %v795 = vld [vmem:[%s225 + $0xc28] sm:$0xff]
        %v796 = vld [vmem:[%s225 + $0xc30] sm:$0xff]
        %v797 = vld [vmem:[%s225 + $0xc38] sm:$0xff]
        %v798 = vld [vmem:[%s225 + $0xc40] sm:$0xff]
        %v799 = vld [vmem:[%s225 + $0xc48] sm:$0xff]
        %v800 = vld [vmem:[%s225 + $0xc50] sm:$0xff]
        %v801 = vld [vmem:[%s225 + $0xc58] sm:$0xff]
        %v802 = vld [vmem:[%s225 + $0xc60] sm:$0xff]
        %v803 = vld [vmem:[%s225 + $0xc68] sm:$0xff]
        %v804 = vld [vmem:[%s225 + $0xc70] sm:$0xff]
        %v805 = vld [vmem:[%s225 + $0xc78] sm:$0xff]
        %v806 = vld [vmem:[%s225 + $0xc80] sm:$0xff]
        %v807 = vld [vmem:[%s225 + $0xc88] sm:$0xff]
        %v808 = vld [vmem:[%s225 + $0xc90] sm:$0xff]
        %v809 = vld [vmem:[%s225 + $0xc98] sm:$0xff]
        %v810 = vld [vmem:[%s225 + $0xca0] sm:$0xff]
        %v811 = vld [vmem:[%s225 + $0xca8] sm:$0xff]
        %v812 = vld [vmem:[%s225 + $0xcb0] sm:$0xff]
        %v813 = vld [vmem:[%s225 + $0xcb8] sm:$0xff]
        %v814 = vld [vmem:[%s225 + $0xcc0] sm:$0xff]
        %v815 = vld [vmem:[%s225 + $0xcc8] sm:$0xff]
        %v816 = vld [vmem:[%s225 + $0xcd0] sm:$0xff]
        %v817 = vld [vmem:[%s225 + $0xcd8] sm:$0xff]
        %v818 = vld [vmem:[%s225 + $0xce0] sm:$0xff]
        %v819 = vld [vmem:[%s225 + $0xce8] sm:$0xff]
        %v820 = vld [vmem:[%s225 + $0xcf0] sm:$0xff]
        %v821 = vld [vmem:[%s225 + $0xcf8] sm:$0xff]
        %v822 = vld [vmem:[%s225 + $0xd00] sm:$0xff]
        %v823 = vld [vmem:[%s225 + $0xd08] sm:$0xff]
        %v824 = vld [vmem:[%s225 + $0xd10] sm:$0xff]
        %v825 = vld [vmem:[%s225 + $0xd18] sm:$0xff]
        %v826 = vld [vmem:[%s225 + $0xd20] sm:$0xff]
        %v827 = vld [vmem:[%s225 + $0xd28] sm:$0xff]
        %v828 = vld [vmem:[%s225 + $0xd30] sm:$0xff]
        %v829 = vld [vmem:[%s225 + $0xd38] sm:$0xff]
        %v830 = vld [vmem:[%s225 + $0xd40] sm:$0xff]
        %v831 = vld [vmem:[%s225 + $0xd48] sm:$0xff]
        %v832 = vld [vmem:[%s225 + $0xd50] sm:$0xff]
        %v833 = vld [vmem:[%s225 + $0xd58] sm:$0xff]
        %v834 = vld [vmem:[%s225 + $0xd60] sm:$0xff]
        %v835 = vld [vmem:[%s225 + $0xd68] sm:$0xff]
        %v836 = vld [vmem:[%s225 + $0xd70] sm:$0xff]
        %v837 = vld [vmem:[%s225 + $0xd78] sm:$0xff]
        %v838 = vld [vmem:[%s225 + $0xd80] sm:$0xff]
        %v839 = vld [vmem:[%s225 + $0xd88] sm:$0xff]
        %v840 = vld [vmem:[%s225 + $0xd90] sm:$0xff]
        %v841 = vld [vmem:[%s225 + $0xd98] sm:$0xff]
        %v842 = vld [vmem:[%s225 + $0xda0] sm:$0xff]
        %v843 = vld [vmem:[%s225 + $0xda8] sm:$0xff]
        %v844 = vld [vmem:[%s225 + $0xdb0] sm:$0xff]
        %v845 = vld [vmem:[%s225 + $0xdb8] sm:$0xff]
        %v846 = vld [vmem:[%s225 + $0xdc0] sm:$0xff]
        %v847 = vld [vmem:[%s225 + $0xdc8] sm:$0xff]
        %v848 = vld [vmem:[%s225 + $0xdd0] sm:$0xff]
        %v849 = vld [vmem:[%s225 + $0xdd8] sm:$0xff]
        %v850 = vld [vmem:[%s225 + $0xde0] sm:$0xff]
        %v851 = vld [vmem:[%s225 + $0xde8] sm:$0xff]
        %v852 = vld [vmem:[%s225 + $0xdf0] sm:$0xff]
        %v853 = vld [vmem:[%s225 + $0xdf8] sm:$0xff]
        %v854 = vld [vmem:[%s225 + $0xe00] sm:$0xff]
        %v855 = vld [vmem:[%s225 + $0xe08] sm:$0xff]
        %v856 = vld [vmem:[%s225 + $0xe10] sm:$0xff]
        %v857 = vld [vmem:[%s225 + $0xe18] sm:$0xff]
        %v858 = vld [vmem:[%s225 + $0xe20] sm:$0xff]
        %v859 = vld [vmem:[%s225 + $0xe28] sm:$0xff]
        %v860 = vld [vmem:[%s225 + $0xe30] sm:$0xff]
        %v861 = vld [vmem:[%s225 + $0xe38] sm:$0xff]
        %v862 = vld [vmem:[%s225 + $0xe40] sm:$0xff]
        %v863 = vld [vmem:[%s225 + $0xe48] sm:$0xff]
        %v864 = vld [vmem:[%s225 + $0xe50] sm:$0xff]
        %v865 = vld [vmem:[%s225 + $0xe58] sm:$0xff]
        %v866 = vld [vmem:[%s225 + $0xe60] sm:$0xff]
        %v867 = vld [vmem:[%s225 + $0xe68] sm:$0xff]
        %v868 = vld [vmem:[%s225 + $0xe70] sm:$0xff]
        %v869 = vld [vmem:[%s225 + $0xe78] sm:$0xff]
        %v870 = vld [vmem:[%s225 + $0xe80] sm:$0xff]
        %v871 = vld [vmem:[%s225 + $0xe88] sm:$0xff]
        %v872 = vld [vmem:[%s225 + $0xe90] sm:$0xff]
        %v873 = vld [vmem:[%s225 + $0xe98] sm:$0xff]
        %v874 = vld [vmem:[%s225 + $0xea0] sm:$0xff]
        %v875 = vld [vmem:[%s225 + $0xea8] sm:$0xff]
        %v876 = vld [vmem:[%s225 + $0xeb0] sm:$0xff]
        %v877 = vld [vmem:[%s225 + $0xeb8] sm:$0xff]
        %v878 = vld [vmem:[%s225 + $0xec0] sm:$0xff]
        %v879 = vld [vmem:[%s225 + $0xec8] sm:$0xff]
        %v880 = vld [vmem:[%s225 + $0xed0] sm:$0xff]
        %v881 = vld [vmem:[%s225 + $0xed8] sm:$0xff]
        %v882 = vld [vmem:[%s225 + $0xee0] sm:$0xff]
        %v883 = vld [vmem:[%s225 + $0xee8] sm:$0xff]
        %v884 = vld [vmem:[%s225 + $0xef0] sm:$0xff]
        %v885 = vld [vmem:[%s225 + $0xef8] sm:$0xff]
        %v886 = vld [vmem:[%s225 + $0xf00] sm:$0xff]
        %v887 = vld [vmem:[%s225 + $0xf08] sm:$0xff]
        %v888 = vld [vmem:[%s225 + $0xf10] sm:$0xff]
        %v889 = vld [vmem:[%s225 + $0xf18] sm:$0xff]
        %v890 = vld [vmem:[%s225 + $0xf20] sm:$0xff]
        %v891 = vld [vmem:[%s225 + $0xf28] sm:$0xff]
        %v892 = vld [vmem:[%s225 + $0xf30] sm:$0xff]
        %v893 = vld [vmem:[%s225 + $0xf38] sm:$0xff]
        %v894 = vld [vmem:[%s225 + $0xf40] sm:$0xff]
        %v895 = vld [vmem:[%s225 + $0xf48] sm:$0xff]
        %v896 = vld [vmem:[%s225 + $0xf50] sm:$0xff]
        %v897 = vld [vmem:[%s225 + $0xf58] sm:$0xff]
        %v898 = vld [vmem:[%s225 + $0xf60] sm:$0xff]
        %v899 = vld [vmem:[%s225 + $0xf68] sm:$0xff]
        %v900 = vld [vmem:[%s225 + $0xf70] sm:$0xff]
        %v901 = vld [vmem:[%s225 + $0xf78] sm:$0xff]
        %v902 = vld [vmem:[%s225 + $0xf80] sm:$0xff]
        %v903 = vld [vmem:[%s225 + $0xf88] sm:$0xff]
        %v904 = vld [vmem:[%s225 + $0xf90] sm:$0xff]
        %v905 = vld [vmem:[%s225 + $0xf98] sm:$0xff]
        %v906 = vld [vmem:[%s225 + $0xfa0] sm:$0xff]
        %v907 = vld [vmem:[%s225 + $0xfa8] sm:$0xff]
        %v908 = vld [vmem:[%s225 + $0xfb0] sm:$0xff]
        %v909 = vld [vmem:[%s225 + $0xfb8] sm:$0xff]
        %v910 = vld [vmem:[%s225 + $0xfc0] sm:$0xff]
        %v911 = vld [vmem:[%s225 + $0xfc8] sm:$0xff]
        %v912 = vld [vmem:[%s225 + $0xfd0] sm:$0xff]
        %v913 = vld [vmem:[%s225 + $0xfd8] sm:$0xff]
        %v914 = vld [vmem:[%s225 + $0xfe0] sm:$0xff]
        %v915 = vld [vmem:[%s225 + $0xfe8] sm:$0xff]
        %v916 = vld [vmem:[%s225 + $0xff0] sm:$0xff]
        %v917 = vld [vmem:[%s225 + $0xff8] sm:$0xff]
        %v918 = vld [vmem:[%s225 + $0x1000] sm:$0xff]
        %v919 = vld [vmem:[%s225 + $0x1008] sm:$0xff]
        %v920 = vld [vmem:[%s225 + $0x1010] sm:$0xff]
        %v921 = vld [vmem:[%s225 + $0x1018] sm:$0xff]
        %v922 = vld [vmem:[%s225 + $0x1020] sm:$0xff]
        %v923 = vld [vmem:[%s225 + $0x1028] sm:$0xff]
        %v924 = vld [vmem:[%s225 + $0x1030] sm:$0xff]
        %v925 = vld [vmem:[%s225 + $0x1038] sm:$0xff]
        %v926 = vld [vmem:[%s225 + $0x1040] sm:$0xff]
        %v927 = vld [vmem:[%s225 + $0x1048] sm:$0xff]
        %v928 = vld [vmem:[%s225 + $0x1050] sm:$0xff]
        %v929 = vld [vmem:[%s225 + $0x1058] sm:$0xff]
        %v930 = vld [vmem:[%s225 + $0x1060] sm:$0xff]
        %v931 = vld [vmem:[%s225 + $0x1068] sm:$0xff]
        %v932 = vld [vmem:[%s225 + $0x1070] sm:$0xff]
        %v933 = vld [vmem:[%s225 + $0x1078] sm:$0xff]
        %v934 = vld [vmem:[%s225 + $0x1080] sm:$0xff]
        %v935 = vld [vmem:[%s225 + $0x1088] sm:$0xff]
        %v936 = vld [vmem:[%s225 + $0x1090] sm:$0xff]
        %v937 = vld [vmem:[%s225 + $0x1098] sm:$0xff]
        %v938 = vld [vmem:[%s225 + $0x10a0] sm:$0xff]
        %v939 = vld [vmem:[%s225 + $0x10a8] sm:$0xff]
        %v940 = vld [vmem:[%s225 + $0x10b0] sm:$0xff]
        %v941 = vld [vmem:[%s225 + $0x10b8] sm:$0xff]
        %v942 = vld [vmem:[%s225 + $0x10c0] sm:$0xff]
        %v943 = vld [vmem:[%s225 + $0x10c8] sm:$0xff]
        %v944 = vld [vmem:[%s225 + $0x10d0] sm:$0xff]
        %v945 = vld [vmem:[%s225 + $0x10d8] sm:$0xff]
        %v946 = vld [vmem:[%s225 + $0x10e0] sm:$0xff]
        %v947 = vld [vmem:[%s225 + $0x10e8] sm:$0xff]
        %v948 = vld [vmem:[%s225 + $0x10f0] sm:$0xff]
        %v949 = vld [vmem:[%s225 + $0x10f8] sm:$0xff]
        %v950 = vld [vmem:[%s225 + $0x1100] sm:$0xff]
        %v951 = vld [vmem:[%s225 + $0x1108] sm:$0xff]
        %v952 = vld [vmem:[%s225 + $0x1110] sm:$0xff]
        %v953 = vld [vmem:[%s225 + $0x1118] sm:$0xff]
        %v954 = vld [vmem:[%s225 + $0x1120] sm:$0xff]
        %v955 = vld [vmem:[%s225 + $0x1128] sm:$0xff]
        %v956 = vld [vmem:[%s225 + $0x1130] sm:$0xff]
        %v957 = vld [vmem:[%s225 + $0x1138] sm:$0xff]
        %v958 = vld [vmem:[%s225 + $0x1140] sm:$0xff]
        %v959 = vld [vmem:[%s225 + $0x1148] sm:$0xff]
        %v960 = vld [vmem:[%s225 + $0x1150] sm:$0xff]
        %v961 = vld [vmem:[%s225 + $0x1158] sm:$0xff]
        %v962 = vld [vmem:[%s225 + $0x1160] sm:$0xff]
        %v963 = vld [vmem:[%s225 + $0x1168] sm:$0xff]
        %v964 = vld [vmem:[%s225 + $0x1170] sm:$0xff]
        %v965 = vld [vmem:[%s225 + $0x1178] sm:$0xff]
        %v966 = vld [vmem:[%s225 + $0x1180] sm:$0xff]
        %v967 = vld [vmem:[%s225 + $0x1188] sm:$0xff]
        %v968 = vld [vmem:[%s225 + $0x1190] sm:$0xff]
        %v969 = vld [vmem:[%s225 + $0x1198] sm:$0xff]
        %v970 = vld [vmem:[%s225 + $0x11a0] sm:$0xff]
        %v971 = vld [vmem:[%s225 + $0x11a8] sm:$0xff]
        %v972 = vld [vmem:[%s225 + $0x11b0] sm:$0xff]
        %v973 = vld [vmem:[%s225 + $0x11b8] sm:$0xff]
        %v974 = vld [vmem:[%s225 + $0x11c0] sm:$0xff]
        %v975 = vld [vmem:[%s225 + $0x11c8] sm:$0xff]
        %v976 = vld [vmem:[%s225 + $0x11d0] sm:$0xff]
        %v977 = vld [vmem:[%s225 + $0x11d8] sm:$0xff]
        %v978 = vld [vmem:[%s225 + $0x11e0] sm:$0xff]
        %v979 = vld [vmem:[%s225 + $0x11e8] sm:$0xff]
        %v980 = vld [vmem:[%s225 + $0x11f0] sm:$0xff]
        %v981 = vld [vmem:[%s225 + $0x11f8] sm:$0xff]
        %v982 = vld [vmem:[%s225 + $0x1200] sm:$0xff]
        %v983 = vld [vmem:[%s225 + $0x1208] sm:$0xff]
        %v984 = vld [vmem:[%s225 + $0x1210] sm:$0xff]
        %v985 = vld [vmem:[%s225 + $0x1218] sm:$0xff]
        %v986 = vld [vmem:[%s225 + $0x1220] sm:$0xff]
        %v987 = vld [vmem:[%s225 + $0x1228] sm:$0xff]
        %v988 = vld [vmem:[%s225 + $0x1230] sm:$0xff]
        %v989 = vld [vmem:[%s225 + $0x1238] sm:$0xff]
        %v990 = vld [vmem:[%s225 + $0x1240] sm:$0xff]
        %v991 = vld [vmem:[%s225 + $0x1248] sm:$0xff]
        %v992 = vld [vmem:[%s225 + $0x1250] sm:$0xff]
        %v993 = vld [vmem:[%s225 + $0x1258] sm:$0xff]
        %v994 = vld [vmem:[%s225 + $0x1260] sm:$0xff]
        %v995 = vld [vmem:[%s225 + $0x1268] sm:$0xff]
        %v996 = vld [vmem:[%s225 + $0x1270] sm:$0xff]
        %v997 = vld [vmem:[%s225 + $0x1278] sm:$0xff]
        %v998 = vld [vmem:[%s225 + $0x1280] sm:$0xff]
        %v999 = vld [vmem:[%s225 + $0x1288] sm:$0xff]
        %v1000 = vld [vmem:[%s225 + $0x1290] sm:$0xff]
        %v1001 = vld [vmem:[%s225 + $0x1298] sm:$0xff]
        %v1002 = vld [vmem:[%s225 + $0x12a0] sm:$0xff]
        %v1003 = vld [vmem:[%s225 + $0x12a8] sm:$0xff]
        %v1004 = vld [vmem:[%s225 + $0x12b0] sm:$0xff]
        %v1005 = vld [vmem:[%s225 + $0x12b8] sm:$0xff]
        %v1006 = vld [vmem:[%s225 + $0x12c0] sm:$0xff]
        %v1007 = vld [vmem:[%s225 + $0x12c8] sm:$0xff]
        %v1008 = vld [vmem:[%s225 + $0x12d0] sm:$0xff]
        %v1009 = vld [vmem:[%s225 + $0x12d8] sm:$0xff]
        %v1010 = vld [vmem:[%s225 + $0x12e0] sm:$0xff]
        %v1011 = vld [vmem:[%s225 + $0x12e8] sm:$0xff]
        %v1012 = vld [vmem:[%s225 + $0x12f0] sm:$0xff]
        %v1013 = vld [vmem:[%s225 + $0x12f8] sm:$0xff]
        %v1014 = vld [vmem:[%s225 + $0x1300] sm:$0xff]
        %v1015 = vld [vmem:[%s225 + $0x1308] sm:$0xff]
        %v1016 = vld [vmem:[%s225 + $0x1310] sm:$0xff]
        %v1017 = vld [vmem:[%s225 + $0x1318] sm:$0xff]
        %v1018 = vld [vmem:[%s225 + $0x1320] sm:$0xff]
        %v1019 = vld [vmem:[%s225 + $0x1328] sm:$0xff]
        %v1020 = vld [vmem:[%s225 + $0x1330] sm:$0xff]
        %v1021 = vld [vmem:[%s225 + $0x1338] sm:$0xff]
        %v1022 = vld [vmem:[%s225 + $0x1340] sm:$0xff]
        %v1023 = vld [vmem:[%s225 + $0x1348] sm:$0xff]
        %v1024 = vld [vmem:[%s225 + $0x1350] sm:$0xff]
        %v1025 = vld [vmem:[%s225 + $0x1358] sm:$0xff]
        %v1026 = vld [vmem:[%s225 + $0x1360] sm:$0xff]
        %v1027 = vld [vmem:[%s225 + $0x1368] sm:$0xff]
        %v1028 = vld [vmem:[%s225 + $0x1370] sm:$0xff]
        %v1029 = vld [vmem:[%s225 + $0x1378] sm:$0xff]
        %v1030 = vld [vmem:[%s225 + $0x1380] sm:$0xff]
        %v1031 = vld [vmem:[%s225 + $0x1388] sm:$0xff]
        %v1032 = vld [vmem:[%s225 + $0x1390] sm:$0xff]
        %v1033 = vld [vmem:[%s225 + $0x1398] sm:$0xff]
        %v1034 = vld [vmem:[%s225 + $0x13a0] sm:$0xff]
        %v1035 = vld [vmem:[%s225 + $0x13a8] sm:$0xff]
        %v1036 = vld [vmem:[%s225 + $0x13b0] sm:$0xff]
        %v1037 = vld [vmem:[%s225 + $0x13b8] sm:$0xff]
        %v1038 = vld [vmem:[%s225 + $0x13c0] sm:$0xff]
        %v1039 = vld [vmem:[%s225 + $0x13c8] sm:$0xff]
        %v1040 = vld [vmem:[%s225 + $0x13d0] sm:$0xff]
        %v1041 = vld [vmem:[%s225 + $0x13d8] sm:$0xff]
        %v1042 = vld [vmem:[%s225 + $0x13e0] sm:$0xff]
        %v1043 = vld [vmem:[%s225 + $0x13e8] sm:$0xff]
        %v1044 = vld [vmem:[%s225 + $0x13f0] sm:$0xff]
        %v1045 = vld [vmem:[%s225 + $0x13f8] sm:$0xff]
        %v1046 = vld [vmem:[%s225 + $0x1400] sm:$0xff]
        %v1047 = vld [vmem:[%s225 + $0x1408] sm:$0xff]
        %v1048 = vld [vmem:[%s225 + $0x1410] sm:$0xff]
        %v1049 = vld [vmem:[%s225 + $0x1418] sm:$0xff]
        %v1050 = vld [vmem:[%s225 + $0x1420] sm:$0xff]
        %v1051 = vld [vmem:[%s225 + $0x1428] sm:$0xff]
        %v1052 = vld [vmem:[%s225 + $0x1430] sm:$0xff]
        %v1053 = vld [vmem:[%s225 + $0x1438] sm:$0xff]
        %v1054 = vld [vmem:[%s225 + $0x1440] sm:$0xff]
        %v1055 = vld [vmem:[%s225 + $0x1448] sm:$0xff]
        %v1056 = vld [vmem:[%s225 + $0x1450] sm:$0xff]
        %v1057 = vld [vmem:[%s225 + $0x1458] sm:$0xff]
        %v1058 = vld [vmem:[%s225 + $0x1460] sm:$0xff]
        %v1059 = vld [vmem:[%s225 + $0x1468] sm:$0xff]
        %v1060 = vld [vmem:[%s225 + $0x1470] sm:$0xff]
        %v1061 = vld [vmem:[%s225 + $0x1478] sm:$0xff]
        %v1062 = vld [vmem:[%s225 + $0x1480] sm:$0xff]
        %v1063 = vld [vmem:[%s225 + $0x1488] sm:$0xff]
        %v1064 = vld [vmem:[%s225 + $0x1490] sm:$0xff]
        %v1065 = vld [vmem:[%s225 + $0x1498] sm:$0xff]
        %v1066 = vld [vmem:[%s225 + $0x14a0] sm:$0xff]
        %v1067 = vld [vmem:[%s225 + $0x14a8] sm:$0xff]
        %v1068 = vld [vmem:[%s225 + $0x14b0] sm:$0xff]
        %v1069 = vld [vmem:[%s225 + $0x14b8] sm:$0xff]
        %v1070 = vld [vmem:[%s225 + $0x14c0] sm:$0xff]
        %v1071 = vld [vmem:[%s225 + $0x14c8] sm:$0xff]
        %v1072 = vld [vmem:[%s225 + $0x14d0] sm:$0xff]
        %v1073 = vld [vmem:[%s225 + $0x14d8] sm:$0xff]
        %v1074 = vld [vmem:[%s225 + $0x14e0] sm:$0xff]
        %v1075 = vld [vmem:[%s225 + $0x14e8] sm:$0xff]
        %v1076 = vld [vmem:[%s225 + $0x14f0] sm:$0xff]
        %v1077 = vld [vmem:[%s225 + $0x14f8] sm:$0xff]
        %v1078 = vld [vmem:[%s225 + $0x1500] sm:$0xff]
        %v1079 = vld [vmem:[%s225 + $0x1508] sm:$0xff]
        %v1080 = vld [vmem:[%s225 + $0x1510] sm:$0xff]
        %v1081 = vld [vmem:[%s225 + $0x1518] sm:$0xff]
        %v1082 = vld [vmem:[%s225 + $0x1520] sm:$0xff]
        %v1083 = vld [vmem:[%s225 + $0x1528] sm:$0xff]
        %v1084 = vld [vmem:[%s225 + $0x1530] sm:$0xff]
        %v1085 = vld [vmem:[%s225 + $0x1538] sm:$0xff]
        %v1086 = vld [vmem:[%s225 + $0x1540] sm:$0xff]
        %v1087 = vld [vmem:[%s225 + $0x1548] sm:$0xff]
        %v1088 = vld [vmem:[%s225 + $0x1550] sm:$0xff]
        %v1089 = vld [vmem:[%s225 + $0x1558] sm:$0xff]
        %v1090 = vld [vmem:[%s225 + $0x1560] sm:$0xff]
        %v1091 = vld [vmem:[%s225 + $0x1568] sm:$0xff]
        %v1092 = vld [vmem:[%s225 + $0x1570] sm:$0xff]
        %v1093 = vld [vmem:[%s225 + $0x1578] sm:$0xff]
        %v1094 = vld [vmem:[%s225 + $0x1580] sm:$0xff]
        %v1095 = vld [vmem:[%s225 + $0x1588] sm:$0xff]
        %v1096 = vld [vmem:[%s225 + $0x1590] sm:$0xff]
        %v1097 = vld [vmem:[%s225 + $0x1598] sm:$0xff]
        %v1098 = vld [vmem:[%s225 + $0x15a0] sm:$0xff]
        %v1099 = vld [vmem:[%s225 + $0x15a8] sm:$0xff]
        %v1100 = vld [vmem:[%s225 + $0x15b0] sm:$0xff]
        %v1101 = vld [vmem:[%s225 + $0x15b8] sm:$0xff]
        %v1102 = vld [vmem:[%s225 + $0x15c0] sm:$0xff]
        %v1103 = vld [vmem:[%s225 + $0x15c8] sm:$0xff]
        %v1104 = vld [vmem:[%s225 + $0x15d0] sm:$0xff]
        %v1105 = vld [vmem:[%s225 + $0x15d8] sm:$0xff]
        %v1106 = vld [vmem:[%s225 + $0x15e0] sm:$0xff]
        %v1107 = vld [vmem:[%s225 + $0x15e8] sm:$0xff]
        %v1108 = vld [vmem:[%s225 + $0x15f0] sm:$0xff]
        %v1109 = vld [vmem:[%s225 + $0x15f8] sm:$0xff]
        %v1110 = vld [vmem:[%s225 + $0x1600] sm:$0xff]
        %v1111 = vld [vmem:[%s225 + $0x1608] sm:$0xff]
        %v1112 = vld [vmem:[%s225 + $0x1610] sm:$0xff]
        %v1113 = vld [vmem:[%s225 + $0x1618] sm:$0xff]
        %v1114 = vld [vmem:[%s225 + $0x1620] sm:$0xff]
        %v1115 = vld [vmem:[%s225 + $0x1628] sm:$0xff]
        %v1116 = vld [vmem:[%s225 + $0x1630] sm:$0xff]
        %v1117 = vld [vmem:[%s225 + $0x1638] sm:$0xff]
        %v1118 = vld [vmem:[%s225 + $0x1640] sm:$0xff]
        %v1119 = vld [vmem:[%s225 + $0x1648] sm:$0xff]
        %v1120 = vld [vmem:[%s225 + $0x1650] sm:$0xff]
        %v1121 = vld [vmem:[%s225 + $0x1658] sm:$0xff]
        %v1122 = vld [vmem:[%s225 + $0x1660] sm:$0xff]
        %v1123 = vld [vmem:[%s225 + $0x1668] sm:$0xff]
        %v1124 = vld [vmem:[%s225 + $0x1670] sm:$0xff]
        %v1125 = vld [vmem:[%s225 + $0x1678] sm:$0xff]
        %v1126 = vld [vmem:[%s225 + $0x1680] sm:$0xff]
        %v1127 = vld [vmem:[%s225 + $0x1688] sm:$0xff]
        %v1128 = vld [vmem:[%s225 + $0x1690] sm:$0xff]
        %v1129 = vld [vmem:[%s225 + $0x1698] sm:$0xff]
        %v1130 = vld [vmem:[%s225 + $0x16a0] sm:$0xff]
        %v1131 = vld [vmem:[%s225 + $0x16a8] sm:$0xff]
        %v1132 = vld [vmem:[%s225 + $0x16b0] sm:$0xff]
        %v1133 = vld [vmem:[%s225 + $0x16b8] sm:$0xff]
        %v1134 = vld [vmem:[%s225 + $0x16c0] sm:$0xff]
        %v1135 = vld [vmem:[%s225 + $0x16c8] sm:$0xff]
        %v1136 = vld [vmem:[%s225 + $0x16d0] sm:$0xff]
        %v1137 = vld [vmem:[%s225 + $0x16d8] sm:$0xff]
        %v1138 = vld [vmem:[%s225 + $0x16e0] sm:$0xff]
        %v1139 = vld [vmem:[%s225 + $0x16e8] sm:$0xff]
        %v1140 = vld [vmem:[%s225 + $0x16f0] sm:$0xff]
        %v1141 = vld [vmem:[%s225 + $0x16f8] sm:$0xff]
        %v1142 = vld [vmem:[%s225 + $0x1700] sm:$0xff]
        %v1143 = vld [vmem:[%s225 + $0x1708] sm:$0xff]
        %v1144 = vld [vmem:[%s225 + $0x1710] sm:$0xff]
        %v1145 = vld [vmem:[%s225 + $0x1718] sm:$0xff]
        %v1146 = vld [vmem:[%s225 + $0x1720] sm:$0xff]
        %v1147 = vld [vmem:[%s225 + $0x1728] sm:$0xff]
        %v1148 = vld [vmem:[%s225 + $0x1730] sm:$0xff]
        %v1149 = vld [vmem:[%s225 + $0x1738] sm:$0xff]
        %v1150 = vld [vmem:[%s225 + $0x1740] sm:$0xff]
        %v1151 = vld [vmem:[%s225 + $0x1748] sm:$0xff]
        %v1152 = vld [vmem:[%s225 + $0x1750] sm:$0xff]
        %v1153 = vld [vmem:[%s225 + $0x1758] sm:$0xff]
        %v1154 = vld [vmem:[%s225 + $0x1760] sm:$0xff]
        %v1155 = vld [vmem:[%s225 + $0x1768] sm:$0xff]
        %v1156 = vld [vmem:[%s225 + $0x1770] sm:$0xff]
        %v1157 = vld [vmem:[%s225 + $0x1778] sm:$0xff]
        %v1158 = vld [vmem:[%s225 + $0x1780] sm:$0xff]
        %v1159 = vld [vmem:[%s225 + $0x1788] sm:$0xff]
        %v1160 = vld [vmem:[%s225 + $0x1790] sm:$0xff]
        %v1161 = vld [vmem:[%s225 + $0x1798] sm:$0xff]
        %v1162 = vld [vmem:[%s225 + $0x17a0] sm:$0xff]
        %v1163 = vld [vmem:[%s225 + $0x17a8] sm:$0xff]
        %v1164 = vld [vmem:[%s225 + $0x17b0] sm:$0xff]
        %v1165 = vld [vmem:[%s225 + $0x17b8] sm:$0xff]
        %v1166 = vld [vmem:[%s225 + $0x17c0] sm:$0xff]
        %v1167 = vld [vmem:[%s225 + $0x17c8] sm:$0xff]
        %v1168 = vld [vmem:[%s225 + $0x17d0] sm:$0xff]
        %v1169 = vld [vmem:[%s225 + $0x17d8] sm:$0xff]
        %v1170 = vld [vmem:[%s225 + $0x17e0] sm:$0xff]
        %v1171 = vld [vmem:[%s225 + $0x17e8] sm:$0xff]
        %v1172 = vld [vmem:[%s225 + $0x17f0] sm:$0xff]
        %v1173 = vld [vmem:[%s225 + $0x17f8] sm:$0xff]
        %v1174 = vld [vmem:[%s225 + $0x1800] sm:$0xff]
        %v1175 = vld [vmem:[%s225 + $0x1808] sm:$0xff]
        %v1176 = vld [vmem:[%s225 + $0x1810] sm:$0xff]
        %v1177 = vld [vmem:[%s225 + $0x1818] sm:$0xff]
        %v1178 = vld [vmem:[%s225 + $0x1820] sm:$0xff]
        %v1179 = vld [vmem:[%s225 + $0x1828] sm:$0xff]
        %v1180 = vld [vmem:[%s225 + $0x1830] sm:$0xff]
        %v1181 = vld [vmem:[%s225 + $0x1838] sm:$0xff]
        %v1182 = vld [vmem:[%s225 + $0x1840] sm:$0xff]
        %v1183 = vld [vmem:[%s225 + $0x1848] sm:$0xff]
        %v1184 = vld [vmem:[%s225 + $0x1850] sm:$0xff]
        %v1185 = vld [vmem:[%s225 + $0x1858] sm:$0xff]
        %v1186 = vld [vmem:[%s225 + $0x1860] sm:$0xff]
        %v1187 = vld [vmem:[%s225 + $0x1868] sm:$0xff]
        %v1188 = vld [vmem:[%s225 + $0x1870] sm:$0xff]
        %v1189 = vld [vmem:[%s225 + $0x1878] sm:$0xff]
        %v1190 = vld [vmem:[%s225 + $0x1880] sm:$0xff]
        %v1191 = vld [vmem:[%s225 + $0x1888] sm:$0xff]
        %v1192 = vld [vmem:[%s225 + $0x1890] sm:$0xff]
        %v1193 = vld [vmem:[%s225 + $0x1898] sm:$0xff]
        %v1194 = vld [vmem:[%s225 + $0x18a0] sm:$0xff]
        %v1195 = vld [vmem:[%s225 + $0x18a8] sm:$0xff]
        %v1196 = vld [vmem:[%s225 + $0x18b0] sm:$0xff]
        %v1197 = vld [vmem:[%s225 + $0x18b8] sm:$0xff]
        %v1198 = vld [vmem:[%s225 + $0x18c0] sm:$0xff]
        %v1199 = vld [vmem:[%s225 + $0x18c8] sm:$0xff]
        %v1200 = vld [vmem:[%s225 + $0x18d0] sm:$0xff]
        %v1201 = vld [vmem:[%s225 + $0x18d8] sm:$0xff]
        %v1202 = vld [vmem:[%s225 + $0x18e0] sm:$0xff]
        %v1203 = vld [vmem:[%s225 + $0x18e8] sm:$0xff]
        %v1204 = vld [vmem:[%s225 + $0x18f0] sm:$0xff]
        %v1205 = vld [vmem:[%s225 + $0x18f8] sm:$0xff]
        %v1206 = vld [vmem:[%s225 + $0x1900] sm:$0xff]
        %v1207 = vld [vmem:[%s225 + $0x1908] sm:$0xff]
        %v1208 = vld [vmem:[%s225 + $0x1910] sm:$0xff]
        %v1209 = vld [vmem:[%s225 + $0x1918] sm:$0xff]
        %v1210 = vld [vmem:[%s225 + $0x1920] sm:$0xff]
        %v1211 = vld [vmem:[%s225 + $0x1928] sm:$0xff]
        %v1212 = vld [vmem:[%s225 + $0x1930] sm:$0xff]
        %v1213 = vld [vmem:[%s225 + $0x1938] sm:$0xff]
        %v1214 = vld [vmem:[%s225 + $0x1940] sm:$0xff]
        %v1215 = vld [vmem:[%s225 + $0x1948] sm:$0xff]
        %v1216 = vld [vmem:[%s225 + $0x1950] sm:$0xff]
        %v1217 = vld [vmem:[%s225 + $0x1958] sm:$0xff]
        %v1218 = vld [vmem:[%s225 + $0x1960] sm:$0xff]
        %v1219 = vld [vmem:[%s225 + $0x1968] sm:$0xff]
        %v1220 = vld [vmem:[%s225 + $0x1970] sm:$0xff]
        %v1221 = vld [vmem:[%s225 + $0x1978] sm:$0xff]
        %v1222 = vld [vmem:[%s225 + $0x1980] sm:$0xff]
        %v1223 = vld [vmem:[%s225 + $0x1988] sm:$0xff]
        %v1224 = vld [vmem:[%s225 + $0x1990] sm:$0xff]
        %v1225 = vld [vmem:[%s225 + $0x1998] sm:$0xff]
        %v1226 = vld [vmem:[%s225 + $0x19a0] sm:$0xff]
        %v1227 = vld [vmem:[%s225 + $0x19a8] sm:$0xff]
        %v1228 = vld [vmem:[%s225 + $0x19b0] sm:$0xff]
        %v1229 = vld [vmem:[%s225 + $0x19b8] sm:$0xff]
        %v1230 = vld [vmem:[%s225 + $0x19c0] sm:$0xff]
        %v1231 = vld [vmem:[%s225 + $0x19c8] sm:$0xff]
        %v1232 = vld [vmem:[%s225 + $0x19d0] sm:$0xff]
        %v1233 = vld [vmem:[%s225 + $0x19d8] sm:$0xff]
        %v1234 = vld [vmem:[%s225 + $0x19e0] sm:$0xff]
        %v1235 = vld [vmem:[%s225 + $0x19e8] sm:$0xff]
        %v1236 = vld [vmem:[%s225 + $0x19f0] sm:$0xff]
        %v1237 = vld [vmem:[%s225 + $0x19f8] sm:$0xff]
        %v1238 = vld [vmem:[%s225 + $0x1a00] sm:$0xff]
        %v1239 = vld [vmem:[%s225 + $0x1a08] sm:$0xff]
        %v1240 = vld [vmem:[%s225 + $0x1a10] sm:$0xff]
        %v1241 = vld [vmem:[%s225 + $0x1a18] sm:$0xff]
        %v1242 = vld [vmem:[%s225 + $0x1a20] sm:$0xff]
        %v1243 = vld [vmem:[%s225 + $0x1a28] sm:$0xff]
        %v1244 = vld [vmem:[%s225 + $0x1a30] sm:$0xff]
        %v1245 = vld [vmem:[%s225 + $0x1a38] sm:$0xff]
        %v1246 = vld [vmem:[%s225 + $0x1a40] sm:$0xff]
        %v1247 = vld [vmem:[%s225 + $0x1a48] sm:$0xff]
        %v1248 = vld [vmem:[%s225 + $0x1a50] sm:$0xff]
        %v1249 = vld [vmem:[%s225 + $0x1a58] sm:$0xff]
        %v1250 = vld [vmem:[%s225 + $0x1a60] sm:$0xff]
        %v1251 = vld [vmem:[%s225 + $0x1a68] sm:$0xff]
        %v1252 = vld [vmem:[%s225 + $0x1a70] sm:$0xff]
        %v1253 = vld [vmem:[%s225 + $0x1a78] sm:$0xff]
        %v1254 = vld [vmem:[%s225 + $0x1a80] sm:$0xff]
        %v1255 = vld [vmem:[%s225 + $0x1a88] sm:$0xff]
        %v1256 = vld [vmem:[%s225 + $0x1a90] sm:$0xff]
        %v1257 = vld [vmem:[%s225 + $0x1a98] sm:$0xff]
        %v1258 = vld [vmem:[%s225 + $0x1aa0] sm:$0xff]
        %v1259 = vld [vmem:[%s225 + $0x1aa8] sm:$0xff]
        %v1260 = vld [vmem:[%s225 + $0x1ab0] sm:$0xff]
        %v1261 = vld [vmem:[%s225 + $0x1ab8] sm:$0xff]
        %v1262 = vld [vmem:[%s225 + $0x1ac0] sm:$0xff]
        %v1263 = vld [vmem:[%s225 + $0x1ac8] sm:$0xff]
        %v1264 = vld [vmem:[%s225 + $0x1ad0] sm:$0xff]
        %v1265 = vld [vmem:[%s225 + $0x1ad8] sm:$0xff]
        %v1266 = vld [vmem:[%s225 + $0x1ae0] sm:$0xff]
        %v1267 = vld [vmem:[%s225 + $0x1ae8] sm:$0xff]
        %v1268 = vld [vmem:[%s225 + $0x1af0] sm:$0xff]
        %v1269 = vld [vmem:[%s225 + $0x1af8] sm:$0xff]
        %v1270 = vld [vmem:[%s225 + $0x1b00] sm:$0xff]
        %v1271 = vld [vmem:[%s225 + $0x1b08] sm:$0xff]
        %v1272 = vld [vmem:[%s225 + $0x1b10] sm:$0xff]
        %v1273 = vld [vmem:[%s225 + $0x1b18] sm:$0xff]
        %v1274 = vld [vmem:[%s225 + $0x1b20] sm:$0xff]
        %v1275 = vld [vmem:[%s225 + $0x1b28] sm:$0xff]
        %v1276 = vld [vmem:[%s225 + $0x1b30] sm:$0xff]
        %v1277 = vld [vmem:[%s225 + $0x1b38] sm:$0xff]
        %v1278 = vld [vmem:[%s225 + $0x1b40] sm:$0xff]
        %v1279 = vld [vmem:[%s225 + $0x1b48] sm:$0xff]
        %v1280 = vld [vmem:[%s225 + $0x1b50] sm:$0xff]
        %v1281 = vld [vmem:[%s225 + $0x1b58] sm:$0xff]
        %v1282 = vld [vmem:[%s225 + $0x1b60] sm:$0xff]
        %v1283 = vld [vmem:[%s225 + $0x1b68] sm:$0xff]
        %v1284 = vld [vmem:[%s225 + $0x1b70] sm:$0xff]
        %v1285 = vld [vmem:[%s225 + $0x1b78] sm:$0xff]
        %v1286 = vld [vmem:[%s225 + $0x1b80] sm:$0xff]
        %v1287 = vld [vmem:[%s225 + $0x1b88] sm:$0xff]
        %v1288 = vld [vmem:[%s225 + $0x1b90] sm:$0xff]
        %v1289 = vld [vmem:[%s225 + $0x1b98] sm:$0xff]
        %v1290 = vld [vmem:[%s225 + $0x1ba0] sm:$0xff]
        %v1291 = vld [vmem:[%s225 + $0x1ba8] sm:$0xff]
        %v1292 = vld [vmem:[%s225 + $0x1bb0] sm:$0xff]
        %v1293 = vld [vmem:[%s225 + $0x1bb8] sm:$0xff]
        %v1294 = vld [vmem:[%s225 + $0x1bc0] sm:$0xff]
        %v1295 = vld [vmem:[%s225 + $0x1bc8] sm:$0xff]
        %v1296 = vld [vmem:[%s225 + $0x1bd0] sm:$0xff]
        %v1297 = vld [vmem:[%s225 + $0x1bd8] sm:$0xff]
        %v1298 = vld [vmem:[%s225 + $0x1be0] sm:$0xff]
        %v1299 = vld [vmem:[%s225 + $0x1be8] sm:$0xff]
        %v1300 = vld [vmem:[%s225 + $0x1bf0] sm:$0xff]
        %v1301 = vld [vmem:[%s225 + $0x1bf8] sm:$0xff]
        %v1302 = vld [vmem:[%s225 + $0x1c00] sm:$0xff]
        %v1303 = vld [vmem:[%s225 + $0x1c08] sm:$0xff]
        %v1304 = vld [vmem:[%s225 + $0x1c10] sm:$0xff]
        %v1305 = vld [vmem:[%s225 + $0x1c18] sm:$0xff]
        %v1306 = vld [vmem:[%s225 + $0x1c20] sm:$0xff]
        %v1307 = vld [vmem:[%s225 + $0x1c28] sm:$0xff]
        %v1308 = vld [vmem:[%s225 + $0x1c30] sm:$0xff]
        %v1309 = vld [vmem:[%s225 + $0x1c38] sm:$0xff]
        %v1310 = vld [vmem:[%s225 + $0x1c40] sm:$0xff]
        %v1311 = vld [vmem:[%s225 + $0x1c48] sm:$0xff]
        %v1312 = vld [vmem:[%s225 + $0x1c50] sm:$0xff]
        %v1313 = vld [vmem:[%s225 + $0x1c58] sm:$0xff]
        %v1314 = vld [vmem:[%s225 + $0x1c60] sm:$0xff]
        %v1315 = vld [vmem:[%s225 + $0x1c68] sm:$0xff]
        %v1316 = vld [vmem:[%s225 + $0x1c70] sm:$0xff]
        %v1317 = vld [vmem:[%s225 + $0x1c78] sm:$0xff]
        %v1318 = vld [vmem:[%s225 + $0x1c80] sm:$0xff]
        %v1319 = vld [vmem:[%s225 + $0x1c88] sm:$0xff]
        %v1320 = vld [vmem:[%s225 + $0x1c90] sm:$0xff]
        %v1321 = vld [vmem:[%s225 + $0x1c98] sm:$0xff]
        %v1322 = vld [vmem:[%s225 + $0x1ca0] sm:$0xff]
        %v1323 = vld [vmem:[%s225 + $0x1ca8] sm:$0xff]
        %v1324 = vld [vmem:[%s225 + $0x1cb0] sm:$0xff]
        %v1325 = vld [vmem:[%s225 + $0x1cb8] sm:$0xff]
        %v1326 = vld [vmem:[%s225 + $0x1cc0] sm:$0xff]
        %v1327 = vld [vmem:[%s225 + $0x1cc8] sm:$0xff]
        %v1328 = vld [vmem:[%s225 + $0x1cd0] sm:$0xff]
        %v1329 = vld [vmem:[%s225 + $0x1cd8] sm:$0xff]
        %v1330 = vld [vmem:[%s225 + $0x1ce0] sm:$0xff]
        %v1331 = vld [vmem:[%s225 + $0x1ce8] sm:$0xff]
        %v1332 = vld [vmem:[%s225 + $0x1cf0] sm:$0xff]
        %v1333 = vld [vmem:[%s225 + $0x1cf8] sm:$0xff]
        %v1334 = vld [vmem:[%s225 + $0x1d00] sm:$0xff]
        %v1335 = vld [vmem:[%s225 + $0x1d08] sm:$0xff]
        %v1336 = vld [vmem:[%s225 + $0x1d10] sm:$0xff]
        %v1337 = vld [vmem:[%s225 + $0x1d18] sm:$0xff]
        %v1338 = vld [vmem:[%s225 + $0x1d20] sm:$0xff]
        %v1339 = vld [vmem:[%s225 + $0x1d28] sm:$0xff]
        %v1340 = vld [vmem:[%s225 + $0x1d30] sm:$0xff]
        %v1341 = vld [vmem:[%s225 + $0x1d38] sm:$0xff]
        %v1342 = vld [vmem:[%s225 + $0x1d40] sm:$0xff]
        %v1343 = vld [vmem:[%s225 + $0x1d48] sm:$0xff]
        %v1344 = vld [vmem:[%s225 + $0x1d50] sm:$0xff]
        %v1345 = vld [vmem:[%s225 + $0x1d58] sm:$0xff]
        %v1346 = vld [vmem:[%s225 + $0x1d60] sm:$0xff]
        %v1347 = vld [vmem:[%s225 + $0x1d68] sm:$0xff]
        %v1348 = vld [vmem:[%s225 + $0x1d70] sm:$0xff]
        %v1349 = vld [vmem:[%s225 + $0x1d78] sm:$0xff]
        %v1350 = vld [vmem:[%s225 + $0x1d80] sm:$0xff]
        %v1351 = vld [vmem:[%s225 + $0x1d88] sm:$0xff]
        %v1352 = vld [vmem:[%s225 + $0x1d90] sm:$0xff]
        %v1353 = vld [vmem:[%s225 + $0x1d98] sm:$0xff]
        %v1354 = vld [vmem:[%s225 + $0x1da0] sm:$0xff]
        %v1355 = vld [vmem:[%s225 + $0x1da8] sm:$0xff]
        %v1356 = vld [vmem:[%s225 + $0x1db0] sm:$0xff]
        %v1357 = vld [vmem:[%s225 + $0x1db8] sm:$0xff]
        %v1358 = vld [vmem:[%s225 + $0x1dc0] sm:$0xff]
        %v1359 = vld [vmem:[%s225 + $0x1dc8] sm:$0xff]
        %v1360 = vld [vmem:[%s225 + $0x1dd0] sm:$0xff]
        %v1361 = vld [vmem:[%s225 + $0x1dd8] sm:$0xff]
        %v1362 = vld [vmem:[%s225 + $0x1de0] sm:$0xff]
        %v1363 = vld [vmem:[%s225 + $0x1de8] sm:$0xff]
        %v1364 = vld [vmem:[%s225 + $0x1df0] sm:$0xff]
        %v1365 = vld [vmem:[%s225 + $0x1df8] sm:$0xff]
        %v1366 = vld [vmem:[%s225 + $0x1e00] sm:$0xff]
        %v1367 = vld [vmem:[%s225 + $0x1e08] sm:$0xff]
        %v1368 = vld [vmem:[%s225 + $0x1e10] sm:$0xff]
        %v1369 = vld [vmem:[%s225 + $0x1e18] sm:$0xff]
        %v1370 = vld [vmem:[%s225 + $0x1e20] sm:$0xff]
        %v1371 = vld [vmem:[%s225 + $0x1e28] sm:$0xff]
        %v1372 = vld [vmem:[%s225 + $0x1e30] sm:$0xff]
        %v1373 = vld [vmem:[%s225 + $0x1e38] sm:$0xff]
        %v1374 = vld [vmem:[%s225 + $0x1e40] sm:$0xff]
        %v1375 = vld [vmem:[%s225 + $0x1e48] sm:$0xff]
        %v1376 = vld [vmem:[%s225 + $0x1e50] sm:$0xff]
        %v1377 = vld [vmem:[%s225 + $0x1e58] sm:$0xff]
        %v1378 = vld [vmem:[%s225 + $0x1e60] sm:$0xff]
        %v1379 = vld [vmem:[%s225 + $0x1e68] sm:$0xff]
        %v1380 = vld [vmem:[%s225 + $0x1e70] sm:$0xff]
        %v1381 = vld [vmem:[%s225 + $0x1e78] sm:$0xff]
        %v1382 = vld [vmem:[%s225 + $0x1e80] sm:$0xff]
        %v1383 = vld [vmem:[%s225 + $0x1e88] sm:$0xff]
        %v1384 = vld [vmem:[%s225 + $0x1e90] sm:$0xff]
        %v1385 = vld [vmem:[%s225 + $0x1e98] sm:$0xff]
        %v1386 = vld [vmem:[%s225 + $0x1ea0] sm:$0xff]
        %v1387 = vld [vmem:[%s225 + $0x1ea8] sm:$0xff]
        %v1388 = vld [vmem:[%s225 + $0x1eb0] sm:$0xff]
        %v1389 = vld [vmem:[%s225 + $0x1eb8] sm:$0xff]
        %v1390 = vld [vmem:[%s225 + $0x1ec0] sm:$0xff]
        %v1391 = vld [vmem:[%s225 + $0x1ec8] sm:$0xff]
        %v1392 = vld [vmem:[%s225 + $0x1ed0] sm:$0xff]
        %v1393 = vld [vmem:[%s225 + $0x1ed8] sm:$0xff]
        %v1394 = vld [vmem:[%s225 + $0x1ee0] sm:$0xff]
        %v1395 = vld [vmem:[%s225 + $0x1ee8] sm:$0xff]
        %v1396 = vld [vmem:[%s225 + $0x1ef0] sm:$0xff]
        %v1397 = vld [vmem:[%s225 + $0x1ef8] sm:$0xff]
        %v1398 = vld [vmem:[%s225 + $0x1f00] sm:$0xff]
        %v1399 = vld [vmem:[%s225 + $0x1f08] sm:$0xff]
        %v1400 = vld [vmem:[%s225 + $0x1f10] sm:$0xff]
        %v1401 = vld [vmem:[%s225 + $0x1f18] sm:$0xff]
        %v1402 = vld [vmem:[%s225 + $0x1f20] sm:$0xff]
        %v1403 = vld [vmem:[%s225 + $0x1f28] sm:$0xff]
        %v1404 = vld [vmem:[%s225 + $0x1f30] sm:$0xff]
        %v1405 = vld [vmem:[%s225 + $0x1f38] sm:$0xff]
        %v1406 = vld [vmem:[%s225 + $0x1f40] sm:$0xff]
        %v1407 = vld [vmem:[%s225 + $0x1f48] sm:$0xff]
        %v1408 = vld [vmem:[%s225 + $0x1f50] sm:$0xff]
        %v1409 = vld [vmem:[%s225 + $0x1f58] sm:$0xff]
        %v1410 = vld [vmem:[%s225 + $0x1f60] sm:$0xff]
        %v1411 = vld [vmem:[%s225 + $0x1f68] sm:$0xff]
        %v1412 = vld [vmem:[%s225 + $0x1f70] sm:$0xff]
        %v1413 = vld [vmem:[%s225 + $0x1f78] sm:$0xff]
        %v1414 = vld [vmem:[%s225 + $0x1f80] sm:$0xff]
        %v1415 = vld [vmem:[%s225 + $0x1f88] sm:$0xff]
        %v1416 = vld [vmem:[%s225 + $0x1f90] sm:$0xff]
        %v1417 = vld [vmem:[%s225 + $0x1f98] sm:$0xff]
        %v1418 = vld [vmem:[%s225 + $0x1fa0] sm:$0xff]
        %v1419 = vld [vmem:[%s225 + $0x1fa8] sm:$0xff]
        %v1420 = vld [vmem:[%s225 + $0x1fb0] sm:$0xff]
        %v1421 = vld [vmem:[%s225 + $0x1fb8] sm:$0xff]
        %v1422 = vld [vmem:[%s225 + $0x1fc0] sm:$0xff]
        %v1423 = vld [vmem:[%s225 + $0x1fc8] sm:$0xff]
        %v1424 = vld [vmem:[%s225 + $0x1fd0] sm:$0xff]
        %v1425 = vld [vmem:[%s225 + $0x1fd8] sm:$0xff]
        %v1426 = vld [vmem:[%s225 + $0x1fe0] sm:$0xff]
        %v1427 = vld [vmem:[%s225 + $0x1fe8] sm:$0xff]
        %v1428 = vld [vmem:[%s225 + $0x1ff0] sm:$0xff]
        %v1429 = vld [vmem:[%s225 + $0x1ff8] sm:$0xff]
        %1430 = vmatprep.subr.mxu0 %v407
        %1431 = vmatpush1.msra.mxu0 %v406
        %1432 = vmatprep.subr.mxu0 %v415
        %1433 = vmatpush1.msra.mxu0 %v414
        %1434 = vmatprep.subr.mxu0 %v423
        %1435 = vmatpush1.msra.mxu0 %v422
        %1436 = vmatprep.subr.mxu0 %v431
        %1437 = vmatpush1.msra.mxu0 %v430
        %1438 = vmatprep.subr.mxu0 %v439
        %1439 = vmatpush1.msra.mxu0 %v438
        %1440 = vmatprep.subr.mxu0 %v447
        %1441 = vmatpush1.msra.mxu0 %v446
        %1442 = vmatprep.subr.mxu0 %v455
        %1443 = vmatpush1.msra.mxu0 %v454
        %1444 = vmatprep.subr.mxu0 %v463
        %1445 = vmatpush1.msra.mxu0 %v462
        %1446 = vmatprep.subr.mxu0 %v471
        %1447 = vmatpush1.msra.mxu0 %v470
        %1448 = vmatprep.subr.mxu0 %v479
        %1449 = vmatpush1.msra.mxu0 %v478
        %1450 = vmatprep.subr.mxu0 %v487
        %1451 = vmatpush1.msra.mxu0 %v486
        %1452 = vmatprep.subr.mxu0 %v495
        %1453 = vmatpush1.msra.mxu0 %v494
        %1454 = vmatprep.subr.mxu0 %v503
        %1455 = vmatpush1.msra.mxu0 %v502
        %1456 = vmatprep.subr.mxu0 %v511
        %1457 = vmatpush1.msra.mxu0 %v510
        %1458 = vmatprep.subr.mxu0 %v519
        %1459 = vmatpush1.msra.mxu0 %v518
        %1460 = vmatprep.subr.mxu0 %v527
        %1461 = vmatpush1.msra.mxu0 %v526
        %1462 = vmatprep.subr.mxu0 %v535
        %1463 = vmatpush1.msra.mxu0 %v534
        %1464 = vmatprep.subr.mxu0 %v543
        %1465 = vmatpush1.msra.mxu0 %v542
        %1466 = vmatprep.subr.mxu0 %v551
        %1467 = vmatpush1.msra.mxu0 %v550
        %1468 = vmatprep.subr.mxu0 %v559
        %1469 = vmatpush1.msra.mxu0 %v558
        %1470 = vmatprep.subr.mxu0 %v567
        %1471 = vmatpush1.msra.mxu0 %v566
        %1472 = vmatprep.subr.mxu0 %v575
        %1473 = vmatpush1.msra.mxu0 %v574
        %1474 = vmatprep.subr.mxu0 %v583
        %1475 = vmatpush1.msra.mxu0 %v582
        %1476 = vmatprep.subr.mxu0 %v591
        %1477 = vmatpush1.msra.mxu0 %v590
        %1478 = vmatprep.subr.mxu0 %v599
        %1479 = vmatpush1.msra.mxu0 %v598
        %1480 = vmatprep.subr.mxu0 %v607
        %1481 = vmatpush1.msra.mxu0 %v606
        %1482 = vmatprep.subr.mxu0 %v615
        %1483 = vmatpush1.msra.mxu0 %v614
        %1484 = vmatprep.subr.mxu0 %v623
        %1485 = vmatpush1.msra.mxu0 %v622
        %1486 = vmatprep.subr.mxu0 %v631
        %1487 = vmatpush1.msra.mxu0 %v630
        %1488 = vmatprep.subr.mxu0 %v639
        %1489 = vmatpush1.msra.mxu0 %v638
        %1490 = vmatprep.subr.mxu0 %v647
        %1491 = vmatpush1.msra.mxu0 %v646
        %1492 = vmatprep.subr.mxu0 %v655
        %1493 = vmatpush1.msra.mxu0 %v654
        %1494 = vmatprep.mubr.f32.mxu0 %v386
        %1495 = vmatmul.mubr.f32.gmra.mrb[0].mxu0 %v385
        %v1496 = vpop.f32.mrb[0].mxu0
        %v1497 = vadd.f32 0.0, %v1496
        %v1498 = vpop.f32.mrb[0].mxu0
        %v1499 = vadd.f32 0.0, %v1498
        %1500 = vdwg.mxu0
        %1501 = vmatprep.subr.mxu0 %v663
        %1502 = vmatpush1.msra.mxu0 %v662
        %1503 = vmatprep.subr.mxu0 %v671
        %1504 = vmatpush1.msra.mxu0 %v670
        %1505 = vmatprep.subr.mxu0 %v679
        %1506 = vmatpush1.msra.mxu0 %v678
        %1507 = vmatprep.subr.mxu0 %v687
        %1508 = vmatpush1.msra.mxu0 %v686
        %1509 = vmatprep.subr.mxu0 %v695
        %1510 = vmatpush1.msra.mxu0 %v694
        %1511 = vmatprep.subr.mxu0 %v703
        %1512 = vmatpush1.msra.mxu0 %v702
        %1513 = vmatprep.subr.mxu0 %v711
        %1514 = vmatpush1.msra.mxu0 %v710
        %1515 = vmatprep.subr.mxu0 %v719
        %1516 = vmatpush1.msra.mxu0 %v718
        %1517 = vmatprep.subr.mxu0 %v727
        %1518 = vmatpush1.msra.mxu0 %v726
        %1519 = vmatprep.subr.mxu0 %v735
        %1520 = vmatpush1.msra.mxu0 %v734
        %1521 = vmatprep.subr.mxu0 %v743
        %1522 = vmatpush1.msra.mxu0 %v742
        %1523 = vmatprep.subr.mxu0 %v751
        %1524 = vmatpush1.msra.mxu0 %v750
        %1525 = vmatprep.subr.mxu0 %v759
        %1526 = vmatpush1.msra.mxu0 %v758
        %1527 = vmatprep.subr.mxu0 %v767
        %1528 = vmatpush1.msra.mxu0 %v766
        %1529 = vmatprep.subr.mxu0 %v775
        %1530 = vmatpush1.msra.mxu0 %v774
        %1531 = vmatprep.subr.mxu0 %v783
        %1532 = vmatpush1.msra.mxu0 %v782
        %1533 = vmatprep.subr.mxu0 %v791
        %1534 = vmatpush1.msra.mxu0 %v790
        %1535 = vmatprep.subr.mxu0 %v799
        %1536 = vmatpush1.msra.mxu0 %v798
        %1537 = vmatprep.subr.mxu0 %v807
        %1538 = vmatpush1.msra.mxu0 %v806
        %1539 = vmatprep.subr.mxu0 %v815
        %1540 = vmatpush1.msra.mxu0 %v814
        %1541 = vmatprep.subr.mxu0 %v823
        %1542 = vmatpush1.msra.mxu0 %v822
        %1543 = vmatprep.subr.mxu0 %v831
        %1544 = vmatpush1.msra.mxu0 %v830
        %1545 = vmatprep.subr.mxu0 %v839
        %1546 = vmatpush1.msra.mxu0 %v838
        %1547 = vmatprep.subr.mxu0 %v847
        %1548 = vmatpush1.msra.mxu0 %v846
        %1549 = vmatprep.subr.mxu0 %v855
        %1550 = vmatpush1.msra.mxu0 %v854
        %1551 = vmatprep.subr.mxu0 %v863
        %1552 = vmatpush1.msra.mxu0 %v862
        %1553 = vmatprep.subr.mxu0 %v871
        %1554 = vmatpush1.msra.mxu0 %v870
        %1555 = vmatprep.subr.mxu0 %v879
        %1556 = vmatpush1.msra.mxu0 %v878
        %1557 = vmatprep.subr.mxu0 %v887
        %1558 = vmatpush1.msra.mxu0 %v886
        %1559 = vmatprep.subr.mxu0 %v895
        %1560 = vmatpush1.msra.mxu0 %v894
        %1561 = vmatprep.subr.mxu0 %v903
        %1562 = vmatpush1.msra.mxu0 %v902
        %1563 = vmatprep.subr.mxu0 %v911
        %1564 = vmatpush1.msra.mxu0 %v910
        %1565 = vmatprep.mubr.f32.mxu0 %v388
        %1566 = vmatmul.mubr.f32.gmra.mrb[0].mxu0 %v387
        %v1567 = vpop.f32.mrb[0].mxu0
        %v1568 = vadd.f32 %v1497, %v1567
        %v1569 = vpop.f32.mrb[0].mxu0
        %v1570 = vadd.f32 %v1499, %v1569
        %1571 = vdwg.mxu0
        %1572 = vmatprep.subr.mxu0 %v919
        %1573 = vmatpush1.msra.mxu0 %v918
        %1574 = vmatprep.subr.mxu0 %v927
        %1575 = vmatpush1.msra.mxu0 %v926
        %1576 = vmatprep.subr.mxu0 %v935
        %1577 = vmatpush1.msra.mxu0 %v934
        %1578 = vmatprep.subr.mxu0 %v943
        %1579 = vmatpush1.msra.mxu0 %v942
        %1580 = vmatprep.subr.mxu0 %v951
        %1581 = vmatpush1.msra.mxu0 %v950
        %1582 = vmatprep.subr.mxu0 %v959
        %1583 = vmatpush1.msra.mxu0 %v958
        %1584 = vmatprep.subr.mxu0 %v967
        %1585 = vmatpush1.msra.mxu0 %v966
        %1586 = vmatprep.subr.mxu0 %v975
        %1587 = vmatpush1.msra.mxu0 %v974
        %1588 = vmatprep.subr.mxu0 %v983
        %1589 = vmatpush1.msra.mxu0 %v982
        %1590 = vmatprep.subr.mxu0 %v991
        %1591 = vmatpush1.msra.mxu0 %v990
        %1592 = vmatprep.subr.mxu0 %v999
        %1593 = vmatpush1.msra.mxu0 %v998
        %1594 = vmatprep.subr.mxu0 %v1007
        %1595 = vmatpush1.msra.mxu0 %v1006
        %1596 = vmatprep.subr.mxu0 %v1015
        %1597 = vmatpush1.msra.mxu0 %v1014
        %1598 = vmatprep.subr.mxu0 %v1023
        %1599 = vmatpush1.msra.mxu0 %v1022
        %1600 = vmatprep.subr.mxu0 %v1031
        %1601 = vmatpush1.msra.mxu0 %v1030
        %1602 = vmatprep.subr.mxu0 %v1039
        %1603 = vmatpush1.msra.mxu0 %v1038
        %1604 = vmatprep.subr.mxu0 %v1047
        %1605 = vmatpush1.msra.mxu0 %v1046
        %1606 = vmatprep.subr.mxu0 %v1055
        %1607 = vmatpush1.msra.mxu0 %v1054
        %1608 = vmatprep.subr.mxu0 %v1063
        %1609 = vmatpush1.msra.mxu0 %v1062
        %1610 = vmatprep.subr.mxu0 %v1071
        %1611 = vmatpush1.msra.mxu0 %v1070
        %1612 = vmatprep.subr.mxu0 %v1079
        %1613 = vmatpush1.msra.mxu0 %v1078
        %1614 = vmatprep.subr.mxu0 %v1087
        %1615 = vmatpush1.msra.mxu0 %v1086
        %1616 = vmatprep.subr.mxu0 %v1095
        %1617 = vmatpush1.msra.mxu0 %v1094
        %1618 = vmatprep.subr.mxu0 %v1103
        %1619 = vmatpush1.msra.mxu0 %v1102
        %1620 = vmatprep.subr.mxu0 %v1111
        %1621 = vmatpush1.msra.mxu0 %v1110
        %1622 = vmatprep.subr.mxu0 %v1119
        %1623 = vmatpush1.msra.mxu0 %v1118
        %1624 = vmatprep.subr.mxu0 %v1127
        %1625 = vmatpush1.msra.mxu0 %v1126
        %1626 = vmatprep.subr.mxu0 %v1135
        %1627 = vmatpush1.msra.mxu0 %v1134
        %1628 = vmatprep.subr.mxu0 %v1143
        %1629 = vmatpush1.msra.mxu0 %v1142
        %1630 = vmatprep.subr.mxu0 %v1151
        %1631 = vmatpush1.msra.mxu0 %v1150
        %1632 = vmatprep.subr.mxu0 %v1159
        %1633 = vmatpush1.msra.mxu0 %v1158
        %1634 = vmatprep.subr.mxu0 %v1167
        %1635 = vmatpush1.msra.mxu0 %v1166
        %1636 = vmatprep.mubr.f32.mxu0 %v390
        %1637 = vmatmul.mubr.f32.gmra.mrb[0].mxu0 %v389
        %v1638 = vpop.f32.mrb[0].mxu0
        %v1639 = vadd.f32 %v1568, %v1638
        %v1640 = vpop.f32.mrb[0].mxu0
        %v1641 = vadd.f32 %v1570, %v1640
        %1642 = vdwg.mxu0
        %1643 = vmatprep.subr.mxu0 %v1175
        %1644 = vmatpush1.msra.mxu0 %v1174
        %1645 = vmatprep.subr.mxu0 %v1183
        %1646 = vmatpush1.msra.mxu0 %v1182
        %1647 = vmatprep.subr.mxu0 %v1191
        %1648 = vmatpush1.msra.mxu0 %v1190
        %1649 = vmatprep.subr.mxu0 %v1199
        %1650 = vmatpush1.msra.mxu0 %v1198
        %1651 = vmatprep.subr.mxu0 %v1207
        %1652 = vmatpush1.msra.mxu0 %v1206
        %1653 = vmatprep.subr.mxu0 %v1215
        %1654 = vmatpush1.msra.mxu0 %v1214
        %1655 = vmatprep.subr.mxu0 %v1223
        %1656 = vmatpush1.msra.mxu0 %v1222
        %1657 = vmatprep.subr.mxu0 %v1231
        %1658 = vmatpush1.msra.mxu0 %v1230
        %1659 = vmatprep.subr.mxu0 %v1239
        %1660 = vmatpush1.msra.mxu0 %v1238
        %1661 = vmatprep.subr.mxu0 %v1247
        %1662 = vmatpush1.msra.mxu0 %v1246
        %1663 = vmatprep.subr.mxu0 %v1255
        %1664 = vmatpush1.msra.mxu0 %v1254
        %1665 = vmatprep.subr.mxu0 %v1263
        %1666 = vmatpush1.msra.mxu0 %v1262
        %1667 = vmatprep.subr.mxu0 %v1271
        %1668 = vmatpush1.msra.mxu0 %v1270
        %1669 = vmatprep.subr.mxu0 %v1279
        %1670 = vmatpush1.msra.mxu0 %v1278
        %1671 = vmatprep.subr.mxu0 %v1287
        %1672 = vmatpush1.msra.mxu0 %v1286
        %1673 = vmatprep.subr.mxu0 %v1295
        %1674 = vmatpush1.msra.mxu0 %v1294
        %1675 = vmatprep.subr.mxu0 %v1303
        %1676 = vmatpush1.msra.mxu0 %v1302
        %1677 = vmatprep.subr.mxu0 %v1311
        %1678 = vmatpush1.msra.mxu0 %v1310
        %1679 = vmatprep.subr.mxu0 %v1319
        %1680 = vmatpush1.msra.mxu0 %v1318
        %1681 = vmatprep.subr.mxu0 %v1327
        %1682 = vmatpush1.msra.mxu0 %v1326
        %1683 = vmatprep.subr.mxu0 %v1335
        %1684 = vmatpush1.msra.mxu0 %v1334
        %1685 = vmatprep.subr.mxu0 %v1343
        %1686 = vmatpush1.msra.mxu0 %v1342
        %1687 = vmatprep.subr.mxu0 %v1351
        %1688 = vmatpush1.msra.mxu0 %v1350
        %1689 = vmatprep.subr.mxu0 %v1359
        %1690 = vmatpush1.msra.mxu0 %v1358
        %1691 = vmatprep.subr.mxu0 %v1367
        %1692 = vmatpush1.msra.mxu0 %v1366
        %1693 = vmatprep.subr.mxu0 %v1375
        %1694 = vmatpush1.msra.mxu0 %v1374
        %1695 = vmatprep.subr.mxu0 %v1383
        %1696 = vmatpush1.msra.mxu0 %v1382
        %1697 = vmatprep.subr.mxu0 %v1391
        %1698 = vmatpush1.msra.mxu0 %v1390
        %1699 = vmatprep.subr.mxu0 %v1399
        %1700 = vmatpush1.msra.mxu0 %v1398
        %1701 = vmatprep.subr.mxu0 %v1407
        %1702 = vmatpush1.msra.mxu0 %v1406
        %1703 = vmatprep.subr.mxu0 %v1415
        %1704 = vmatpush1.msra.mxu0 %v1414
        %1705 = vmatprep.subr.mxu0 %v1423
        %1706 = vmatpush1.msra.mxu0 %v1422
        %1707 = vmatprep.mubr.f32.mxu0 %v392
        %1708 = vmatmul.mubr.f32.gmra.mrb[0].mxu0 %v391
        %v1709 = vpop.f32.mrb[0].mxu0
        %v1710 = vadd.f32 %v1639, %v1709
        %v1711 = vpop.f32.mrb[0].mxu0
        %v1712 = vadd.f32 %v1641, %v1711
        %1713 = vdwg.mxu0
        %1714 = vmatprep.subr.mxu0 %v409
        %1715 = vmatpush1.msra.mxu0 %v408
        %1716 = vmatprep.subr.mxu0 %v417
        %1717 = vmatpush1.msra.mxu0 %v416
        %1718 = vmatprep.subr.mxu0 %v425
        %1719 = vmatpush1.msra.mxu0 %v424
        %1720 = vmatprep.subr.mxu0 %v433
        %1721 = vmatpush1.msra.mxu0 %v432
        %1722 = vmatprep.subr.mxu0 %v441
        %1723 = vmatpush1.msra.mxu0 %v440
        %1724 = vmatprep.subr.mxu0 %v449
        %1725 = vmatpush1.msra.mxu0 %v448
        %1726 = vmatprep.subr.mxu0 %v457
        %1727 = vmatpush1.msra.mxu0 %v456
        %1728 = vmatprep.subr.mxu0 %v465
        %1729 = vmatpush1.msra.mxu0 %v464
        %1730 = vmatprep.subr.mxu0 %v473
        %1731 = vmatpush1.msra.mxu0 %v472
        %1732 = vmatprep.subr.mxu0 %v481
        %1733 = vmatpush1.msra.mxu0 %v480
        %1734 = vmatprep.subr.mxu0 %v489
        %1735 = vmatpush1.msra.mxu0 %v488
        %1736 = vmatprep.subr.mxu0 %v497
        %1737 = vmatpush1.msra.mxu0 %v496
        %1738 = vmatprep.subr.mxu0 %v505
        %1739 = vmatpush1.msra.mxu0 %v504
        %1740 = vmatprep.subr.mxu0 %v513
        %1741 = vmatpush1.msra.mxu0 %v512
        %1742 = vmatprep.subr.mxu0 %v521
        %1743 = vmatpush1.msra.mxu0 %v520
        %1744 = vmatprep.subr.mxu0 %v529
        %1745 = vmatpush1.msra.mxu0 %v528
        %1746 = vmatprep.subr.mxu0 %v537
        %1747 = vmatpush1.msra.mxu0 %v536
        %1748 = vmatprep.subr.mxu0 %v545
        %1749 = vmatpush1.msra.mxu0 %v544
        %1750 = vmatprep.subr.mxu0 %v553
        %1751 = vmatpush1.msra.mxu0 %v552
        %1752 = vmatprep.subr.mxu0 %v561
        %1753 = vmatpush1.msra.mxu0 %v560
        %1754 = vmatprep.subr.mxu0 %v569
        %1755 = vmatpush1.msra.mxu0 %v568
        %1756 = vmatprep.subr.mxu0 %v577
        %1757 = vmatpush1.msra.mxu0 %v576
        %1758 = vmatprep.subr.mxu0 %v585
        %1759 = vmatpush1.msra.mxu0 %v584
        %1760 = vmatprep.subr.mxu0 %v593
        %1761 = vmatpush1.msra.mxu0 %v592
        %1762 = vmatprep.subr.mxu0 %v601
        %1763 = vmatpush1.msra.mxu0 %v600
        %1764 = vmatprep.subr.mxu0 %v609
        %1765 = vmatpush1.msra.mxu0 %v608
        %1766 = vmatprep.subr.mxu0 %v617
        %1767 = vmatpush1.msra.mxu0 %v616
        %1768 = vmatprep.subr.mxu0 %v625
        %1769 = vmatpush1.msra.mxu0 %v624
        %1770 = vmatprep.subr.mxu0 %v633
        %1771 = vmatpush1.msra.mxu0 %v632
        %1772 = vmatprep.subr.mxu0 %v641
        %1773 = vmatpush1.msra.mxu0 %v640
        %1774 = vmatprep.subr.mxu0 %v649
        %1775 = vmatpush1.msra.mxu0 %v648
        %1776 = vmatprep.subr.mxu0 %v657
        %1777 = vmatpush1.msra.mxu0 %v656
        %1778 = vmatprep.mubr.f32.mxu0 %v386
        %1779 = vmatmul.mubr.f32.gmra.mrb[0].mxu0 %v385
        %v1780 = vpop.f32.mrb[0].mxu0
        %v1781 = vadd.f32 0.0, %v1780
        %v1782 = vpop.f32.mrb[0].mxu0
        %v1783 = vadd.f32 0.0, %v1782
        %1784 = vdwg.mxu0
        %1785 = vmatprep.subr.mxu0 %v665
        %1786 = vmatpush1.msra.mxu0 %v664
        %1787 = vmatprep.subr.mxu0 %v673
        %1788 = vmatpush1.msra.mxu0 %v672
        %1789 = vmatprep.subr.mxu0 %v681
        %1790 = vmatpush1.msra.mxu0 %v680
        %1791 = vmatprep.subr.mxu0 %v689
        %1792 = vmatpush1.msra.mxu0 %v688
        %1793 = vmatprep.subr.mxu0 %v697
        %1794 = vmatpush1.msra.mxu0 %v696
        %1795 = vmatprep.subr.mxu0 %v705
        %1796 = vmatpush1.msra.mxu0 %v704
        %1797 = vmatprep.subr.mxu0 %v713
        %1798 = vmatpush1.msra.mxu0 %v712
        %1799 = vmatprep.subr.mxu0 %v721
        %1800 = vmatpush1.msra.mxu0 %v720
        %1801 = vmatprep.subr.mxu0 %v729
        %1802 = vmatpush1.msra.mxu0 %v728
        %1803 = vmatprep.subr.mxu0 %v737
        %1804 = vmatpush1.msra.mxu0 %v736
        %1805 = vmatprep.subr.mxu0 %v745
        %1806 = vmatpush1.msra.mxu0 %v744
        %1807 = vmatprep.subr.mxu0 %v753
        %1808 = vmatpush1.msra.mxu0 %v752
        %1809 = vmatprep.subr.mxu0 %v761
        %1810 = vmatpush1.msra.mxu0 %v760
        %1811 = vmatprep.subr.mxu0 %v769
        %1812 = vmatpush1.msra.mxu0 %v768
        %1813 = vmatprep.subr.mxu0 %v777
        %1814 = vmatpush1.msra.mxu0 %v776
        %1815 = vmatprep.subr.mxu0 %v785
        %1816 = vmatpush1.msra.mxu0 %v784
        %1817 = vmatprep.subr.mxu0 %v793
        %1818 = vmatpush1.msra.mxu0 %v792
        %1819 = vmatprep.subr.mxu0 %v801
        %1820 = vmatpush1.msra.mxu0 %v800
        %1821 = vmatprep.subr.mxu0 %v809
        %1822 = vmatpush1.msra.mxu0 %v808
        %1823 = vmatprep.subr.mxu0 %v817
        %1824 = vmatpush1.msra.mxu0 %v816
        %1825 = vmatprep.subr.mxu0 %v825
        %1826 = vmatpush1.msra.mxu0 %v824
        %1827 = vmatprep.subr.mxu0 %v833
        %1828 = vmatpush1.msra.mxu0 %v832
        %1829 = vmatprep.subr.mxu0 %v841
        %1830 = vmatpush1.msra.mxu0 %v840
        %1831 = vmatprep.subr.mxu0 %v849
        %1832 = vmatpush1.msra.mxu0 %v848
        %1833 = vmatprep.subr.mxu0 %v857
        %1834 = vmatpush1.msra.mxu0 %v856
        %1835 = vmatprep.subr.mxu0 %v865
        %1836 = vmatpush1.msra.mxu0 %v864
        %1837 = vmatprep.subr.mxu0 %v873
        %1838 = vmatpush1.msra.mxu0 %v872
        %1839 = vmatprep.subr.mxu0 %v881
        %1840 = vmatpush1.msra.mxu0 %v880
        %1841 = vmatprep.subr.mxu0 %v889
        %1842 = vmatpush1.msra.mxu0 %v888
        %1843 = vmatprep.subr.mxu0 %v897
        %1844 = vmatpush1.msra.mxu0 %v896
        %1845 = vmatprep.subr.mxu0 %v905
        %1846 = vmatpush1.msra.mxu0 %v904
        %1847 = vmatprep.subr.mxu0 %v913
        %1848 = vmatpush1.msra.mxu0 %v912
        %1849 = vmatprep.mubr.f32.mxu0 %v388
        %1850 = vmatmul.mubr.f32.gmra.mrb[0].mxu0 %v387
        %v1851 = vpop.f32.mrb[0].mxu0
        %v1852 = vadd.f32 %v1781, %v1851
        %v1853 = vpop.f32.mrb[0].mxu0
        %v1854 = vadd.f32 %v1783, %v1853
        %1855 = vdwg.mxu0
        %1856 = vmatprep.subr.mxu0 %v921
        %1857 = vmatpush1.msra.mxu0 %v920
        %1858 = vmatprep.subr.mxu0 %v929
        %1859 = vmatpush1.msra.mxu0 %v928
        %1860 = vmatprep.subr.mxu0 %v937
        %1861 = vmatpush1.msra.mxu0 %v936
        %1862 = vmatprep.subr.mxu0 %v945
        %1863 = vmatpush1.msra.mxu0 %v944
        %1864 = vmatprep.subr.mxu0 %v953
        %1865 = vmatpush1.msra.mxu0 %v952
        %1866 = vmatprep.subr.mxu0 %v961
        %1867 = vmatpush1.msra.mxu0 %v960
        %1868 = vmatprep.subr.mxu0 %v969
        %1869 = vmatpush1.msra.mxu0 %v968
        %1870 = vmatprep.subr.mxu0 %v977
        %1871 = vmatpush1.msra.mxu0 %v976
        %1872 = vmatprep.subr.mxu0 %v985
        %1873 = vmatpush1.msra.mxu0 %v984
        %1874 = vmatprep.subr.mxu0 %v993
        %1875 = vmatpush1.msra.mxu0 %v992
        %1876 = vmatprep.subr.mxu0 %v1001
        %1877 = vmatpush1.msra.mxu0 %v1000
        %1878 = vmatprep.subr.mxu0 %v1009
        %1879 = vmatpush1.msra.mxu0 %v1008
        %1880 = vmatprep.subr.mxu0 %v1017
        %1881 = vmatpush1.msra.mxu0 %v1016
        %1882 = vmatprep.subr.mxu0 %v1025
        %1883 = vmatpush1.msra.mxu0 %v1024
        %1884 = vmatprep.subr.mxu0 %v1033
        %1885 = vmatpush1.msra.mxu0 %v1032
        %1886 = vmatprep.subr.mxu0 %v1041
        %1887 = vmatpush1.msra.mxu0 %v1040
        %1888 = vmatprep.subr.mxu0 %v1049
        %1889 = vmatpush1.msra.mxu0 %v1048
        %1890 = vmatprep.subr.mxu0 %v1057
        %1891 = vmatpush1.msra.mxu0 %v1056
        %1892 = vmatprep.subr.mxu0 %v1065
        %1893 = vmatpush1.msra.mxu0 %v1064
        %1894 = vmatprep.subr.mxu0 %v1073
        %1895 = vmatpush1.msra.mxu0 %v1072
        %1896 = vmatprep.subr.mxu0 %v1081
        %1897 = vmatpush1.msra.mxu0 %v1080
        %1898 = vmatprep.subr.mxu0 %v1089
        %1899 = vmatpush1.msra.mxu0 %v1088
        %1900 = vmatprep.subr.mxu0 %v1097
        %1901 = vmatpush1.msra.mxu0 %v1096
        %1902 = vmatprep.subr.mxu0 %v1105
        %1903 = vmatpush1.msra.mxu0 %v1104
        %1904 = vmatprep.subr.mxu0 %v1113
        %1905 = vmatpush1.msra.mxu0 %v1112
        %1906 = vmatprep.subr.mxu0 %v1121
        %1907 = vmatpush1.msra.mxu0 %v1120
        %1908 = vmatprep.subr.mxu0 %v1129
        %1909 = vmatpush1.msra.mxu0 %v1128
        %1910 = vmatprep.subr.mxu0 %v1137
        %1911 = vmatpush1.msra.mxu0 %v1136
        %1912 = vmatprep.subr.mxu0 %v1145
        %1913 = vmatpush1.msra.mxu0 %v1144
        %1914 = vmatprep.subr.mxu0 %v1153
        %1915 = vmatpush1.msra.mxu0 %v1152
        %1916 = vmatprep.subr.mxu0 %v1161
        %1917 = vmatpush1.msra.mxu0 %v1160
        %1918 = vmatprep.subr.mxu0 %v1169
        %1919 = vmatpush1.msra.mxu0 %v1168
        %1920 = vmatprep.mubr.f32.mxu0 %v390
        %1921 = vmatmul.mubr.f32.gmra.mrb[0].mxu0 %v389
        %v1922 = vpop.f32.mrb[0].mxu0
        %v1923 = vadd.f32 %v1852, %v1922
        %v1924 = vpop.f32.mrb[0].mxu0
        %v1925 = vadd.f32 %v1854, %v1924
        %1926 = vdwg.mxu0
        %1927 = vmatprep.subr.mxu0 %v1177
        %1928 = vmatpush1.msra.mxu0 %v1176
        %1929 = vmatprep.subr.mxu0 %v1185
        %1930 = vmatpush1.msra.mxu0 %v1184
        %1931 = vmatprep.subr.mxu0 %v1193
        %1932 = vmatpush1.msra.mxu0 %v1192
        %1933 = vmatprep.subr.mxu0 %v1201
        %1934 = vmatpush1.msra.mxu0 %v1200
        %1935 = vmatprep.subr.mxu0 %v1209
        %1936 = vmatpush1.msra.mxu0 %v1208
        %1937 = vmatprep.subr.mxu0 %v1217
        %1938 = vmatpush1.msra.mxu0 %v1216
        %1939 = vmatprep.subr.mxu0 %v1225
        %1940 = vmatpush1.msra.mxu0 %v1224
        %1941 = vmatprep.subr.mxu0 %v1233
        %1942 = vmatpush1.msra.mxu0 %v1232
        %1943 = vmatprep.subr.mxu0 %v1241
        %1944 = vmatpush1.msra.mxu0 %v1240
        %1945 = vmatprep.subr.mxu0 %v1249
        %1946 = vmatpush1.msra.mxu0 %v1248
        %1947 = vmatprep.subr.mxu0 %v1257
        %1948 = vmatpush1.msra.mxu0 %v1256
        %1949 = vmatprep.subr.mxu0 %v1265
        %1950 = vmatpush1.msra.mxu0 %v1264
        %1951 = vmatprep.subr.mxu0 %v1273
        %1952 = vmatpush1.msra.mxu0 %v1272
        %1953 = vmatprep.subr.mxu0 %v1281
        %1954 = vmatpush1.msra.mxu0 %v1280
        %1955 = vmatprep.subr.mxu0 %v1289
        %1956 = vmatpush1.msra.mxu0 %v1288
        %1957 = vmatprep.subr.mxu0 %v1297
        %1958 = vmatpush1.msra.mxu0 %v1296
        %1959 = vmatprep.subr.mxu0 %v1305
        %1960 = vmatpush1.msra.mxu0 %v1304
        %1961 = vmatprep.subr.mxu0 %v1313
        %1962 = vmatpush1.msra.mxu0 %v1312
        %1963 = vmatprep.subr.mxu0 %v1321
        %1964 = vmatpush1.msra.mxu0 %v1320
        %1965 = vmatprep.subr.mxu0 %v1329
        %1966 = vmatpush1.msra.mxu0 %v1328
        %1967 = vmatprep.subr.mxu0 %v1337
        %1968 = vmatpush1.msra.mxu0 %v1336
        %1969 = vmatprep.subr.mxu0 %v1345
        %1970 = vmatpush1.msra.mxu0 %v1344
        %1971 = vmatprep.subr.mxu0 %v1353
        %1972 = vmatpush1.msra.mxu0 %v1352
        %1973 = vmatprep.subr.mxu0 %v1361
        %1974 = vmatpush1.msra.mxu0 %v1360
        %1975 = vmatprep.subr.mxu0 %v1369
        %1976 = vmatpush1.msra.mxu0 %v1368
        %1977 = vmatprep.subr.mxu0 %v1377
        %1978 = vmatpush1.msra.mxu0 %v1376
        %1979 = vmatprep.subr.mxu0 %v1385
        %1980 = vmatpush1.msra.mxu0 %v1384
        %1981 = vmatprep.subr.mxu0 %v1393
        %1982 = vmatpush1.msra.mxu0 %v1392
        %1983 = vmatprep.subr.mxu0 %v1401
        %1984 = vmatpush1.msra.mxu0 %v1400
        %1985 = vmatprep.subr.mxu0 %v1409
        %1986 = vmatpush1.msra.mxu0 %v1408
        %1987 = vmatprep.subr.mxu0 %v1417
        %1988 = vmatpush1.msra.mxu0 %v1416
        %1989 = vmatprep.subr.mxu0 %v1425
        %1990 = vmatpush1.msra.mxu0 %v1424
        %1991 = vmatprep.mubr.f32.mxu0 %v392
        %1992 = vmatmul.mubr.f32.gmra.mrb[0].mxu0 %v391
        %v1993 = vpop.f32.mrb[0].mxu0
        %v1994 = vadd.f32 %v1923, %v1993
        %v1995 = vpop.f32.mrb[0].mxu0
        %v1996 = vadd.f32 %v1925, %v1995
        %1997 = vdwg.mxu0
        %1998 = vmatprep.subr.mxu0 %v411
        %1999 = vmatpush1.msra.mxu0 %v410
        %2000 = vmatprep.subr.mxu0 %v419
        %2001 = vmatpush1.msra.mxu0 %v418
        %2002 = vmatprep.subr.mxu0 %v427
        %2003 = vmatpush1.msra.mxu0 %v426
        %2004 = vmatprep.subr.mxu0 %v435
        %2005 = vmatpush1.msra.mxu0 %v434
        %2006 = vmatprep.subr.mxu0 %v443
        %2007 = vmatpush1.msra.mxu0 %v442
        %2008 = vmatprep.subr.mxu0 %v451
        %2009 = vmatpush1.msra.mxu0 %v450
        %2010 = vmatprep.subr.mxu0 %v459
        %2011 = vmatpush1.msra.mxu0 %v458
        %2012 = vmatprep.subr.mxu0 %v467
        %2013 = vmatpush1.msra.mxu0 %v466
        %2014 = vmatprep.subr.mxu0 %v475
        %2015 = vmatpush1.msra.mxu0 %v474
        %2016 = vmatprep.subr.mxu0 %v483
        %2017 = vmatpush1.msra.mxu0 %v482
        %2018 = vmatprep.subr.mxu0 %v491
        %2019 = vmatpush1.msra.mxu0 %v490
        %2020 = vmatprep.subr.mxu0 %v499
        %2021 = vmatpush1.msra.mxu0 %v498
        %2022 = vmatprep.subr.mxu0 %v507
        %2023 = vmatpush1.msra.mxu0 %v506
        %2024 = vmatprep.subr.mxu0 %v515
        %2025 = vmatpush1.msra.mxu0 %v514
        %2026 = vmatprep.subr.mxu0 %v523
        %2027 = vmatpush1.msra.mxu0 %v522
        %2028 = vmatprep.subr.mxu0 %v531
        %2029 = vmatpush1.msra.mxu0 %v530
        %2030 = vmatprep.subr.mxu0 %v539
        %2031 = vmatpush1.msra.mxu0 %v538
        %2032 = vmatprep.subr.mxu0 %v547
        %2033 = vmatpush1.msra.mxu0 %v546
        %2034 = vmatprep.subr.mxu0 %v555
        %2035 = vmatpush1.msra.mxu0 %v554
        %2036 = vmatprep.subr.mxu0 %v563
        %2037 = vmatpush1.msra.mxu0 %v562
        %2038 = vmatprep.subr.mxu0 %v571
        %2039 = vmatpush1.msra.mxu0 %v570
        %2040 = vmatprep.subr.mxu0 %v579
        %2041 = vmatpush1.msra.mxu0 %v578
        %2042 = vmatprep.subr.mxu0 %v587
        %2043 = vmatpush1.msra.mxu0 %v586
        %2044 = vmatprep.subr.mxu0 %v595
        %2045 = vmatpush1.msra.mxu0 %v594
        %2046 = vmatprep.subr.mxu0 %v603
        %2047 = vmatpush1.msra.mxu0 %v602
        %2048 = vmatprep.subr.mxu0 %v611
        %2049 = vmatpush1.msra.mxu0 %v610
        %2050 = vmatprep.subr.mxu0 %v619
        %2051 = vmatpush1.msra.mxu0 %v618
        %2052 = vmatprep.subr.mxu0 %v627
        %2053 = vmatpush1.msra.mxu0 %v626
        %2054 = vmatprep.subr.mxu0 %v635
        %2055 = vmatpush1.msra.mxu0 %v634
        %2056 = vmatprep.subr.mxu0 %v643
        %2057 = vmatpush1.msra.mxu0 %v642
        %2058 = vmatprep.subr.mxu0 %v651
        %2059 = vmatpush1.msra.mxu0 %v650
        %2060 = vmatprep.subr.mxu0 %v659
        %2061 = vmatpush1.msra.mxu0 %v658
        %2062 = vmatprep.mubr.f32.mxu0 %v386
        %2063 = vmatmul.mubr.f32.gmra.mrb[0].mxu0 %v385
        %v2064 = vpop.f32.mrb[0].mxu0
        %v2065 = vadd.f32 0.0, %v2064
        %v2066 = vpop.f32.mrb[0].mxu0
        %v2067 = vadd.f32 0.0, %v2066
        %2068 = vdwg.mxu0
        %2069 = vmatprep.subr.mxu0 %v667
        %2070 = vmatpush1.msra.mxu0 %v666
        %2071 = vmatprep.subr.mxu0 %v675
        %2072 = vmatpush1.msra.mxu0 %v674
        %2073 = vmatprep.subr.mxu0 %v683
        %2074 = vmatpush1.msra.mxu0 %v682
        %2075 = vmatprep.subr.mxu0 %v691
        %2076 = vmatpush1.msra.mxu0 %v690
        %2077 = vmatprep.subr.mxu0 %v699
        %2078 = vmatpush1.msra.mxu0 %v698
        %2079 = vmatprep.subr.mxu0 %v707
        %2080 = vmatpush1.msra.mxu0 %v706
        %2081 = vmatprep.subr.mxu0 %v715
        %2082 = vmatpush1.msra.mxu0 %v714
        %2083 = vmatprep.subr.mxu0 %v723
        %2084 = vmatpush1.msra.mxu0 %v722
        %2085 = vmatprep.subr.mxu0 %v731
        %2086 = vmatpush1.msra.mxu0 %v730
        %2087 = vmatprep.subr.mxu0 %v739
        %2088 = vmatpush1.msra.mxu0 %v738
        %2089 = vmatprep.subr.mxu0 %v747
        %2090 = vmatpush1.msra.mxu0 %v746
        %2091 = vmatprep.subr.mxu0 %v755
        %2092 = vmatpush1.msra.mxu0 %v754
        %2093 = vmatprep.subr.mxu0 %v763
        %2094 = vmatpush1.msra.mxu0 %v762
        %2095 = vmatprep.subr.mxu0 %v771
        %2096 = vmatpush1.msra.mxu0 %v770
        %2097 = vmatprep.subr.mxu0 %v779
        %2098 = vmatpush1.msra.mxu0 %v778
        %2099 = vmatprep.subr.mxu0 %v787
        %2100 = vmatpush1.msra.mxu0 %v786
        %2101 = vmatprep.subr.mxu0 %v795
        %2102 = vmatpush1.msra.mxu0 %v794
        %2103 = vmatprep.subr.mxu0 %v803
        %2104 = vmatpush1.msra.mxu0 %v802
        %2105 = vmatprep.subr.mxu0 %v811
        %2106 = vmatpush1.msra.mxu0 %v810
        %2107 = vmatprep.subr.mxu0 %v819
        %2108 = vmatpush1.msra.mxu0 %v818
        %2109 = vmatprep.subr.mxu0 %v827
        %2110 = vmatpush1.msra.mxu0 %v826
        %2111 = vmatprep.subr.mxu0 %v835
        %2112 = vmatpush1.msra.mxu0 %v834
        %2113 = vmatprep.subr.mxu0 %v843
        %2114 = vmatpush1.msra.mxu0 %v842
        %2115 = vmatprep.subr.mxu0 %v851
        %2116 = vmatpush1.msra.mxu0 %v850
        %2117 = vmatprep.subr.mxu0 %v859
        %2118 = vmatpush1.msra.mxu0 %v858
        %2119 = vmatprep.subr.mxu0 %v867
        %2120 = vmatpush1.msra.mxu0 %v866
        %2121 = vmatprep.subr.mxu0 %v875
        %2122 = vmatpush1.msra.mxu0 %v874
        %2123 = vmatprep.subr.mxu0 %v883
        %2124 = vmatpush1.msra.mxu0 %v882
        %2125 = vmatprep.subr.mxu0 %v891
        %2126 = vmatpush1.msra.mxu0 %v890
        %2127 = vmatprep.subr.mxu0 %v899
        %2128 = vmatpush1.msra.mxu0 %v898
        %2129 = vmatprep.subr.mxu0 %v907
        %2130 = vmatpush1.msra.mxu0 %v906
        %2131 = vmatprep.subr.mxu0 %v915
        %2132 = vmatpush1.msra.mxu0 %v914
        %2133 = vmatprep.mubr.f32.mxu0 %v388
        %2134 = vmatmul.mubr.f32.gmra.mrb[0].mxu0 %v387
        %v2135 = vpop.f32.mrb[0].mxu0
        %v2136 = vadd.f32 %v2065, %v2135
        %v2137 = vpop.f32.mrb[0].mxu0
        %v2138 = vadd.f32 %v2067, %v2137
        %2139 = vdwg.mxu0
        %2140 = vmatprep.subr.mxu0 %v923
        %2141 = vmatpush1.msra.mxu0 %v922
        %2142 = vmatprep.subr.mxu0 %v931
        %2143 = vmatpush1.msra.mxu0 %v930
        %2144 = vmatprep.subr.mxu0 %v939
        %2145 = vmatpush1.msra.mxu0 %v938
        %2146 = vmatprep.subr.mxu0 %v947
        %2147 = vmatpush1.msra.mxu0 %v946
        %2148 = vmatprep.subr.mxu0 %v955
        %2149 = vmatpush1.msra.mxu0 %v954
        %2150 = vmatprep.subr.mxu0 %v963
        %2151 = vmatpush1.msra.mxu0 %v962
        %2152 = vmatprep.subr.mxu0 %v971
        %2153 = vmatpush1.msra.mxu0 %v970
        %2154 = vmatprep.subr.mxu0 %v979
        %2155 = vmatpush1.msra.mxu0 %v978
        %2156 = vmatprep.subr.mxu0 %v987
        %2157 = vmatpush1.msra.mxu0 %v986
        %2158 = vmatprep.subr.mxu0 %v995
        %2159 = vmatpush1.msra.mxu0 %v994
        %2160 = vmatprep.subr.mxu0 %v1003
        %2161 = vmatpush1.msra.mxu0 %v1002
        %2162 = vmatprep.subr.mxu0 %v1011
        %2163 = vmatpush1.msra.mxu0 %v1010
        %2164 = vmatprep.subr.mxu0 %v1019
        %2165 = vmatpush1.msra.mxu0 %v1018
        %2166 = vmatprep.subr.mxu0 %v1027
        %2167 = vmatpush1.msra.mxu0 %v1026
        %2168 = vmatprep.subr.mxu0 %v1035
        %2169 = vmatpush1.msra.mxu0 %v1034
        %2170 = vmatprep.subr.mxu0 %v1043
        %2171 = vmatpush1.msra.mxu0 %v1042
        %2172 = vmatprep.subr.mxu0 %v1051
        %2173 = vmatpush1.msra.mxu0 %v1050
        %2174 = vmatprep.subr.mxu0 %v1059
        %2175 = vmatpush1.msra.mxu0 %v1058
        %2176 = vmatprep.subr.mxu0 %v1067
        %2177 = vmatpush1.msra.mxu0 %v1066
        %2178 = vmatprep.subr.mxu0 %v1075
        %2179 = vmatpush1.msra.mxu0 %v1074
        %2180 = vmatprep.subr.mxu0 %v1083
        %2181 = vmatpush1.msra.mxu0 %v1082
        %2182 = vmatprep.subr.mxu0 %v1091
        %2183 = vmatpush1.msra.mxu0 %v1090
        %2184 = vmatprep.subr.mxu0 %v1099
        %2185 = vmatpush1.msra.mxu0 %v1098
        %2186 = vmatprep.subr.mxu0 %v1107
        %2187 = vmatpush1.msra.mxu0 %v1106
        %2188 = vmatprep.subr.mxu0 %v1115
        %2189 = vmatpush1.msra.mxu0 %v1114
        %2190 = vmatprep.subr.mxu0 %v1123
        %2191 = vmatpush1.msra.mxu0 %v1122
        %2192 = vmatprep.subr.mxu0 %v1131
        %2193 = vmatpush1.msra.mxu0 %v1130
        %2194 = vmatprep.subr.mxu0 %v1139
        %2195 = vmatpush1.msra.mxu0 %v1138
        %2196 = vmatprep.subr.mxu0 %v1147
        %2197 = vmatpush1.msra.mxu0 %v1146
        %2198 = vmatprep.subr.mxu0 %v1155
        %2199 = vmatpush1.msra.mxu0 %v1154
        %2200 = vmatprep.subr.mxu0 %v1163
        %2201 = vmatpush1.msra.mxu0 %v1162
        %2202 = vmatprep.subr.mxu0 %v1171
        %2203 = vmatpush1.msra.mxu0 %v1170
        %2204 = vmatprep.mubr.f32.mxu0 %v390
        %2205 = vmatmul.mubr.f32.gmra.mrb[0].mxu0 %v389
        %v2206 = vpop.f32.mrb[0].mxu0
        %v2207 = vadd.f32 %v2136, %v2206
        %v2208 = vpop.f32.mrb[0].mxu0
        %v2209 = vadd.f32 %v2138, %v2208
        %2210 = vdwg.mxu0
        %2211 = vmatprep.subr.mxu0 %v1179
        %2212 = vmatpush1.msra.mxu0 %v1178
        %2213 = vmatprep.subr.mxu0 %v1187
        %2214 = vmatpush1.msra.mxu0 %v1186
        %2215 = vmatprep.subr.mxu0 %v1195
        %2216 = vmatpush1.msra.mxu0 %v1194
        %2217 = vmatprep.subr.mxu0 %v1203
        %2218 = vmatpush1.msra.mxu0 %v1202
        %2219 = vmatprep.subr.mxu0 %v1211
        %2220 = vmatpush1.msra.mxu0 %v1210
        %2221 = vmatprep.subr.mxu0 %v1219
        %2222 = vmatpush1.msra.mxu0 %v1218
        %2223 = vmatprep.subr.mxu0 %v1227
        %2224 = vmatpush1.msra.mxu0 %v1226
        %2225 = vmatprep.subr.mxu0 %v1235
        %2226 = vmatpush1.msra.mxu0 %v1234
        %2227 = vmatprep.subr.mxu0 %v1243
        %2228 = vmatpush1.msra.mxu0 %v1242
        %2229 = vmatprep.subr.mxu0 %v1251
        %2230 = vmatpush1.msra.mxu0 %v1250
        %2231 = vmatprep.subr.mxu0 %v1259
        %2232 = vmatpush1.msra.mxu0 %v1258
        %2233 = vmatprep.subr.mxu0 %v1267
        %2234 = vmatpush1.msra.mxu0 %v1266
        %2235 = vmatprep.subr.mxu0 %v1275
        %2236 = vmatpush1.msra.mxu0 %v1274
        %2237 = vmatprep.subr.mxu0 %v1283
        %2238 = vmatpush1.msra.mxu0 %v1282
        %2239 = vmatprep.subr.mxu0 %v1291
        %2240 = vmatpush1.msra.mxu0 %v1290
        %2241 = vmatprep.subr.mxu0 %v1299
        %2242 = vmatpush1.msra.mxu0 %v1298
        %2243 = vmatprep.subr.mxu0 %v1307
        %2244 = vmatpush1.msra.mxu0 %v1306
        %2245 = vmatprep.subr.mxu0 %v1315
        %2246 = vmatpush1.msra.mxu0 %v1314
        %2247 = vmatprep.subr.mxu0 %v1323
        %2248 = vmatpush1.msra.mxu0 %v1322
        %2249 = vmatprep.subr.mxu0 %v1331
        %2250 = vmatpush1.msra.mxu0 %v1330
        %2251 = vmatprep.subr.mxu0 %v1339
        %2252 = vmatpush1.msra.mxu0 %v1338
        %2253 = vmatprep.subr.mxu0 %v1347
        %2254 = vmatpush1.msra.mxu0 %v1346
        %2255 = vmatprep.subr.mxu0 %v1355
        %2256 = vmatpush1.msra.mxu0 %v1354
        %2257 = vmatprep.subr.mxu0 %v1363
        %2258 = vmatpush1.msra.mxu0 %v1362
        %2259 = vmatprep.subr.mxu0 %v1371
        %2260 = vmatpush1.msra.mxu0 %v1370
        %2261 = vmatprep.subr.mxu0 %v1379
        %2262 = vmatpush1.msra.mxu0 %v1378
        %2263 = vmatprep.subr.mxu0 %v1387
        %2264 = vmatpush1.msra.mxu0 %v1386
        %2265 = vmatprep.subr.mxu0 %v1395
        %2266 = vmatpush1.msra.mxu0 %v1394
        %2267 = vmatprep.subr.mxu0 %v1403
        %2268 = vmatpush1.msra.mxu0 %v1402
        %2269 = vmatprep.subr.mxu0 %v1411
        %2270 = vmatpush1.msra.mxu0 %v1410
        %2271 = vmatprep.subr.mxu0 %v1419
        %2272 = vmatpush1.msra.mxu0 %v1418
        %2273 = vmatprep.subr.mxu0 %v1427
        %2274 = vmatpush1.msra.mxu0 %v1426
        %2275 = vmatprep.mubr.f32.mxu0 %v392
        %2276 = vmatmul.mubr.f32.gmra.mrb[0].mxu0 %v391
        %v2277 = vpop.f32.mrb[0].mxu0
        %v2278 = vadd.f32 %v2207, %v2277
        %v2279 = vpop.f32.mrb[0].mxu0
        %v2280 = vadd.f32 %v2209, %v2279
        %2281 = vdwg.mxu0
        %2282 = vmatprep.subr.mxu0 %v413
        %2283 = vmatpush1.msra.mxu0 %v412
        %2284 = vmatprep.subr.mxu0 %v421
        %2285 = vmatpush1.msra.mxu0 %v420
        %2286 = vmatprep.subr.mxu0 %v429
        %2287 = vmatpush1.msra.mxu0 %v428
        %2288 = vmatprep.subr.mxu0 %v437
        %2289 = vmatpush1.msra.mxu0 %v436
        %2290 = vmatprep.subr.mxu0 %v445
        %2291 = vmatpush1.msra.mxu0 %v444
        %2292 = vmatprep.subr.mxu0 %v453
        %2293 = vmatpush1.msra.mxu0 %v452
        %2294 = vmatprep.subr.mxu0 %v461
        %2295 = vmatpush1.msra.mxu0 %v460
        %2296 = vmatprep.subr.mxu0 %v469
        %2297 = vmatpush1.msra.mxu0 %v468
        %2298 = vmatprep.subr.mxu0 %v477
        %2299 = vmatpush1.msra.mxu0 %v476
        %2300 = vmatprep.subr.mxu0 %v485
        %2301 = vmatpush1.msra.mxu0 %v484
        %2302 = vmatprep.subr.mxu0 %v493
        %2303 = vmatpush1.msra.mxu0 %v492
        %2304 = vmatprep.subr.mxu0 %v501
        %2305 = vmatpush1.msra.mxu0 %v500
        %2306 = vmatprep.subr.mxu0 %v509
        %2307 = vmatpush1.msra.mxu0 %v508
        %2308 = vmatprep.subr.mxu0 %v517
        %2309 = vmatpush1.msra.mxu0 %v516
        %2310 = vmatprep.subr.mxu0 %v525
        %2311 = vmatpush1.msra.mxu0 %v524
        %2312 = vmatprep.subr.mxu0 %v533
        %2313 = vmatpush1.msra.mxu0 %v532
        %2314 = vmatprep.subr.mxu0 %v541
        %2315 = vmatpush1.msra.mxu0 %v540
        %2316 = vmatprep.subr.mxu0 %v549
        %2317 = vmatpush1.msra.mxu0 %v548
        %2318 = vmatprep.subr.mxu0 %v557
        %2319 = vmatpush1.msra.mxu0 %v556
        %2320 = vmatprep.subr.mxu0 %v565
        %2321 = vmatpush1.msra.mxu0 %v564
        %2322 = vmatprep.subr.mxu0 %v573
        %2323 = vmatpush1.msra.mxu0 %v572
        %2324 = vmatprep.subr.mxu0 %v581
        %2325 = vmatpush1.msra.mxu0 %v580
        %2326 = vmatprep.subr.mxu0 %v589
        %2327 = vmatpush1.msra.mxu0 %v588
        %2328 = vmatprep.subr.mxu0 %v597
        %2329 = vmatpush1.msra.mxu0 %v596
        %2330 = vmatprep.subr.mxu0 %v605
        %2331 = vmatpush1.msra.mxu0 %v604
        %2332 = vmatprep.subr.mxu0 %v613
        %2333 = vmatpush1.msra.mxu0 %v612
        %2334 = vmatprep.subr.mxu0 %v621
        %2335 = vmatpush1.msra.mxu0 %v620
        %2336 = vmatprep.subr.mxu0 %v629
        %2337 = vmatpush1.msra.mxu0 %v628
        %2338 = vmatprep.subr.mxu0 %v637
        %2339 = vmatpush1.msra.mxu0 %v636
        %2340 = vmatprep.subr.mxu0 %v645
        %2341 = vmatpush1.msra.mxu0 %v644
        %2342 = vmatprep.subr.mxu0 %v653
        %2343 = vmatpush1.msra.mxu0 %v652
        %2344 = vmatprep.subr.mxu0 %v661
        %2345 = vmatpush1.msra.mxu0 %v660
        %2346 = vmatprep.mubr.f32.mxu0 %v386
        %2347 = vmatmul.mubr.f32.gmra.mrb[0].mxu0 %v385
        %v2348 = vpop.f32.mrb[0].mxu0
        %v2349 = vadd.f32 0.0, %v2348
        %v2350 = vpop.f32.mrb[0].mxu0
        %v2351 = vadd.f32 0.0, %v2350
        %2352 = vdwg.mxu0
        %2353 = vmatprep.subr.mxu0 %v669
        %2354 = vmatpush1.msra.mxu0 %v668
        %2355 = vmatprep.subr.mxu0 %v677
        %2356 = vmatpush1.msra.mxu0 %v676
        %2357 = vmatprep.subr.mxu0 %v685
        %2358 = vmatpush1.msra.mxu0 %v684
        %2359 = vmatprep.subr.mxu0 %v693
        %2360 = vmatpush1.msra.mxu0 %v692
        %2361 = vmatprep.subr.mxu0 %v701
        %2362 = vmatpush1.msra.mxu0 %v700
        %2363 = vmatprep.subr.mxu0 %v709
        %2364 = vmatpush1.msra.mxu0 %v708
        %2365 = vmatprep.subr.mxu0 %v717
        %2366 = vmatpush1.msra.mxu0 %v716
        %2367 = vmatprep.subr.mxu0 %v725
        %2368 = vmatpush1.msra.mxu0 %v724
        %2369 = vmatprep.subr.mxu0 %v733
        %2370 = vmatpush1.msra.mxu0 %v732
        %2371 = vmatprep.subr.mxu0 %v741
        %2372 = vmatpush1.msra.mxu0 %v740
        %2373 = vmatprep.subr.mxu0 %v749
        %2374 = vmatpush1.msra.mxu0 %v748
        %2375 = vmatprep.subr.mxu0 %v757
        %2376 = vmatpush1.msra.mxu0 %v756
        %2377 = vmatprep.subr.mxu0 %v765
        %2378 = vmatpush1.msra.mxu0 %v764
        %2379 = vmatprep.subr.mxu0 %v773
        %2380 = vmatpush1.msra.mxu0 %v772
        %2381 = vmatprep.subr.mxu0 %v781
        %2382 = vmatpush1.msra.mxu0 %v780
        %2383 = vmatprep.subr.mxu0 %v789
        %2384 = vmatpush1.msra.mxu0 %v788
        %2385 = vmatprep.subr.mxu0 %v797
        %2386 = vmatpush1.msra.mxu0 %v796
        %2387 = vmatprep.subr.mxu0 %v805
        %2388 = vmatpush1.msra.mxu0 %v804
        %2389 = vmatprep.subr.mxu0 %v813
        %2390 = vmatpush1.msra.mxu0 %v812
        %2391 = vmatprep.subr.mxu0 %v821
        %2392 = vmatpush1.msra.mxu0 %v820
        %2393 = vmatprep.subr.mxu0 %v829
        %2394 = vmatpush1.msra.mxu0 %v828
        %2395 = vmatprep.subr.mxu0 %v837
        %2396 = vmatpush1.msra.mxu0 %v836
        %2397 = vmatprep.subr.mxu0 %v845
        %2398 = vmatpush1.msra.mxu0 %v844
        %2399 = vmatprep.subr.mxu0 %v853
        %2400 = vmatpush1.msra.mxu0 %v852
        %2401 = vmatprep.subr.mxu0 %v861
        %2402 = vmatpush1.msra.mxu0 %v860
        %2403 = vmatprep.subr.mxu0 %v869
        %2404 = vmatpush1.msra.mxu0 %v868
        %2405 = vmatprep.subr.mxu0 %v877
        %2406 = vmatpush1.msra.mxu0 %v876
        %2407 = vmatprep.subr.mxu0 %v885
        %2408 = vmatpush1.msra.mxu0 %v884
        %2409 = vmatprep.subr.mxu0 %v893
        %2410 = vmatpush1.msra.mxu0 %v892
        %2411 = vmatprep.subr.mxu0 %v901
        %2412 = vmatpush1.msra.mxu0 %v900
        %2413 = vmatprep.subr.mxu0 %v909
        %2414 = vmatpush1.msra.mxu0 %v908
        %2415 = vmatprep.subr.mxu0 %v917
        %2416 = vmatpush1.msra.mxu0 %v916
        %2417 = vmatprep.mubr.f32.mxu0 %v388
        %2418 = vmatmul.mubr.f32.gmra.mrb[0].mxu0 %v387
        %v2419 = vpop.f32.mrb[0].mxu0
        %v2420 = vadd.f32 %v2349, %v2419
        %v2421 = vpop.f32.mrb[0].mxu0
        %v2422 = vadd.f32 %v2351, %v2421
        %2423 = vdwg.mxu0
        %2424 = vmatprep.subr.mxu0 %v925
        %2425 = vmatpush1.msra.mxu0 %v924
        %2426 = vmatprep.subr.mxu0 %v933
        %2427 = vmatpush1.msra.mxu0 %v932
        %2428 = vmatprep.subr.mxu0 %v941
        %2429 = vmatpush1.msra.mxu0 %v940
        %2430 = vmatprep.subr.mxu0 %v949
        %2431 = vmatpush1.msra.mxu0 %v948
        %2432 = vmatprep.subr.mxu0 %v957
        %2433 = vmatpush1.msra.mxu0 %v956
        %2434 = vmatprep.subr.mxu0 %v965
        %2435 = vmatpush1.msra.mxu0 %v964
        %2436 = vmatprep.subr.mxu0 %v973
        %2437 = vmatpush1.msra.mxu0 %v972
        %2438 = vmatprep.subr.mxu0 %v981
        %2439 = vmatpush1.msra.mxu0 %v980
        %2440 = vmatprep.subr.mxu0 %v989
        %2441 = vmatpush1.msra.mxu0 %v988
        %2442 = vmatprep.subr.mxu0 %v997
        %2443 = vmatpush1.msra.mxu0 %v996
        %2444 = vmatprep.subr.mxu0 %v1005
        %2445 = vmatpush1.msra.mxu0 %v1004
        %2446 = vmatprep.subr.mxu0 %v1013
        %2447 = vmatpush1.msra.mxu0 %v1012
        %2448 = vmatprep.subr.mxu0 %v1021
        %2449 = vmatpush1.msra.mxu0 %v1020
        %2450 = vmatprep.subr.mxu0 %v1029
        %2451 = vmatpush1.msra.mxu0 %v1028
        %2452 = vmatprep.subr.mxu0 %v1037
        %2453 = vmatpush1.msra.mxu0 %v1036
        %2454 = vmatprep.subr.mxu0 %v1045
        %2455 = vmatpush1.msra.mxu0 %v1044
        %2456 = vmatprep.subr.mxu0 %v1053
        %2457 = vmatpush1.msra.mxu0 %v1052
        %2458 = vmatprep.subr.mxu0 %v1061
        %2459 = vmatpush1.msra.mxu0 %v1060
        %2460 = vmatprep.subr.mxu0 %v1069
        %2461 = vmatpush1.msra.mxu0 %v1068
        %2462 = vmatprep.subr.mxu0 %v1077
        %2463 = vmatpush1.msra.mxu0 %v1076
        %2464 = vmatprep.subr.mxu0 %v1085
        %2465 = vmatpush1.msra.mxu0 %v1084
        %2466 = vmatprep.subr.mxu0 %v1093
        %2467 = vmatpush1.msra.mxu0 %v1092
        %2468 = vmatprep.subr.mxu0 %v1101
        %2469 = vmatpush1.msra.mxu0 %v1100
        %2470 = vmatprep.subr.mxu0 %v1109
        %2471 = vmatpush1.msra.mxu0 %v1108
        %2472 = vmatprep.subr.mxu0 %v1117
        %2473 = vmatpush1.msra.mxu0 %v1116
        %2474 = vmatprep.subr.mxu0 %v1125
        %2475 = vmatpush1.msra.mxu0 %v1124
        %2476 = vmatprep.subr.mxu0 %v1133
        %2477 = vmatpush1.msra.mxu0 %v1132
        %2478 = vmatprep.subr.mxu0 %v1141
        %2479 = vmatpush1.msra.mxu0 %v1140
        %2480 = vmatprep.subr.mxu0 %v1149
        %2481 = vmatpush1.msra.mxu0 %v1148
        %2482 = vmatprep.subr.mxu0 %v1157
        %2483 = vmatpush1.msra.mxu0 %v1156
        %2484 = vmatprep.subr.mxu0 %v1165
        %2485 = vmatpush1.msra.mxu0 %v1164
        %2486 = vmatprep.subr.mxu0 %v1173
        %2487 = vmatpush1.msra.mxu0 %v1172
        %2488 = vmatprep.mubr.f32.mxu0 %v390
        %2489 = vmatmul.mubr.f32.gmra.mrb[0].mxu0 %v389
        %v2490 = vpop.f32.mrb[0].mxu0
        %v2491 = vadd.f32 %v2420, %v2490
        %v2492 = vpop.f32.mrb[0].mxu0
        %v2493 = vadd.f32 %v2422, %v2492
        %2494 = vdwg.mxu0
        %2495 = vmatprep.subr.mxu0 %v1181
        %2496 = vmatpush1.msra.mxu0 %v1180
        %2497 = vmatprep.subr.mxu0 %v1189
        %2498 = vmatpush1.msra.mxu0 %v1188
        %2499 = vmatprep.subr.mxu0 %v1197
        %2500 = vmatpush1.msra.mxu0 %v1196
        %2501 = vmatprep.subr.mxu0 %v1205
        %2502 = vmatpush1.msra.mxu0 %v1204
        %2503 = vmatprep.subr.mxu0 %v1213
        %2504 = vmatpush1.msra.mxu0 %v1212
        %2505 = vmatprep.subr.mxu0 %v1221
        %2506 = vmatpush1.msra.mxu0 %v1220
        %2507 = vmatprep.subr.mxu0 %v1229
        %2508 = vmatpush1.msra.mxu0 %v1228
        %2509 = vmatprep.subr.mxu0 %v1237
        %2510 = vmatpush1.msra.mxu0 %v1236
        %2511 = vmatprep.subr.mxu0 %v1245
        %2512 = vmatpush1.msra.mxu0 %v1244
        %2513 = vmatprep.subr.mxu0 %v1253
        %2514 = vmatpush1.msra.mxu0 %v1252
        %2515 = vmatprep.subr.mxu0 %v1261
        %2516 = vmatpush1.msra.mxu0 %v1260
        %2517 = vmatprep.subr.mxu0 %v1269
        %2518 = vmatpush1.msra.mxu0 %v1268
        %2519 = vmatprep.subr.mxu0 %v1277
        %2520 = vmatpush1.msra.mxu0 %v1276
        %2521 = vmatprep.subr.mxu0 %v1285
        %2522 = vmatpush1.msra.mxu0 %v1284
        %2523 = vmatprep.subr.mxu0 %v1293
        %2524 = vmatpush1.msra.mxu0 %v1292
        %2525 = vmatprep.subr.mxu0 %v1301
        %2526 = vmatpush1.msra.mxu0 %v1300
        %2527 = vmatprep.subr.mxu0 %v1309
        %2528 = vmatpush1.msra.mxu0 %v1308
        %2529 = vmatprep.subr.mxu0 %v1317
        %2530 = vmatpush1.msra.mxu0 %v1316
        %2531 = vmatprep.subr.mxu0 %v1325
        %2532 = vmatpush1.msra.mxu0 %v1324
        %2533 = vmatprep.subr.mxu0 %v1333
        %2534 = vmatpush1.msra.mxu0 %v1332
        %2535 = vmatprep.subr.mxu0 %v1341
        %2536 = vmatpush1.msra.mxu0 %v1340
        %2537 = vmatprep.subr.mxu0 %v1349
        %2538 = vmatpush1.msra.mxu0 %v1348
        %2539 = vmatprep.subr.mxu0 %v1357
        %2540 = vmatpush1.msra.mxu0 %v1356
        %2541 = vmatprep.subr.mxu0 %v1365
        %2542 = vmatpush1.msra.mxu0 %v1364
        %2543 = vmatprep.subr.mxu0 %v1373
        %2544 = vmatpush1.msra.mxu0 %v1372
        %2545 = vmatprep.subr.mxu0 %v1381
        %2546 = vmatpush1.msra.mxu0 %v1380
        %2547 = vmatprep.subr.mxu0 %v1389
        %2548 = vmatpush1.msra.mxu0 %v1388
        %2549 = vmatprep.subr.mxu0 %v1397
        %2550 = vmatpush1.msra.mxu0 %v1396
        %2551 = vmatprep.subr.mxu0 %v1405
        %2552 = vmatpush1.msra.mxu0 %v1404
        %2553 = vmatprep.subr.mxu0 %v1413
        %2554 = vmatpush1.msra.mxu0 %v1412
        %2555 = vmatprep.subr.mxu0 %v1421
        %2556 = vmatpush1.msra.mxu0 %v1420
        %2557 = vmatprep.subr.mxu0 %v1429
        %2558 = vmatpush1.msra.mxu0 %v1428
        %2559 = vmatprep.mubr.f32.mxu0 %v392
        %2560 = vmatmul.mubr.f32.gmra.mrb[0].mxu0 %v391
        %v2561 = vpop.f32.mrb[0].mxu0
        %v2562 = vadd.f32 %v2491, %v2561
        %v2563 = vpop.f32.mrb[0].mxu0
        %v2564 = vadd.f32 %v2493, %v2563
        %2565 = vdwg.mxu0
        %v2566 = vadd.f32 %v398, %v1710
        %v2567 = vadd.f32 %v399, %v1712
        %v2568 = vadd.f32 %v400, %v1994
        %v2569 = vadd.f32 %v401, %v1996
        %v2570 = vadd.f32 %v402, %v2278
        %v2571 = vadd.f32 %v403, %v2280
        %v2572 = vadd.f32 %v404, %v2562
        %v2573 = vadd.f32 %v405, %v2564
        %2574 = vst [vmem:[%s397] sm:$0xff] %v2566
        %2575 = vst [vmem:[%s397 + $0x8] sm:$0xff] %v2567
        %2576 = vst [vmem:[%s397 + $0x10] sm:$0xff] %v2568
        %2577 = vst [vmem:[%s397 + $0x18] sm:$0xff] %v2569
        %2578 = vst [vmem:[%s397 + $0x20] sm:$0xff] %v2570
        %2579 = vst [vmem:[%s397 + $0x28] sm:$0xff] %v2571
        %2580 = vst [vmem:[%s397 + $0x30] sm:$0xff] %v2572
        %2581 = vst [vmem:[%s397 + $0x38] sm:$0xff] %v2573
        %p2582 = scmp.eq.s32.totalorder %s28, 1
        // Predicated region
        $region49: #{simple_linear_model_forward.1} parent=31 // pred_check
          %p2583 = pneg %p2582
        $region50: #{simple_linear_model_forward.1} parent=31 // pred_check_branch
          %2585 = sbr.rel (%p2583) target = $region52
        $region51: #{simple_linear_model_forward.1} parent=31 // pred_region
          %v2586 = vld [vmem:[%s397] sm:$0xff]
          %v2587 = vld [vmem:[%s397 + $0x8] sm:$0xff]
          %v2588 = vld [vmem:[%s397 + $0x10] sm:$0xff]
          %v2589 = vld [vmem:[%s397 + $0x18] sm:$0xff]
          %v2590 = vld [vmem:[%s397 + $0x20] sm:$0xff]
          %v2591 = vld [vmem:[%s397 + $0x28] sm:$0xff]
          %v2592 = vld [vmem:[%s397 + $0x30] sm:$0xff]
          %v2593 = vld [vmem:[%s397 + $0x38] sm:$0xff]
          %2594 = vst [vmem:[%s255] sm:$0xff] %v2586
          %2595 = vst [vmem:[%s255 + $0x8] sm:$0xff] %v2587
          %2596 = vst [vmem:[%s255 + $0x10] sm:$0xff] %v2588
          %2597 = vst [vmem:[%s255 + $0x18] sm:$0xff] %v2589
          %2598 = vst [vmem:[%s255 + $0x20] sm:$0xff] %v2590
          %2599 = vst [vmem:[%s255 + $0x28] sm:$0xff] %v2591
          %2600 = vst [vmem:[%s255 + $0x30] sm:$0xff] %v2592
          %2601 = vst [vmem:[%s255 + $0x38] sm:$0xff] %v2593
        $region52: #{simple_linear_model_forward.1} parent=31 // pred_fallthru
          _
        %s2602 = sand.u32 %s127, 1
        %s2603 = scalar_lea.sflag [#allocation5], %s2602
        %s2604 = sand.u32 %s127, 1
        %s2605 = smul.addr %s2604, 64
        %s2606 = scalar_lea.vmem [#allocation8], %s2605
        // Predicated region
        $region53: #{simple_linear_model_forward.1} parent=31 // pred_check
          %p2607 = pneg %p137
        $region54: #{simple_linear_model_forward.1} parent=31 // pred_check_branch
          %2609 = sbr.rel (%p2607) target = $region56
        $region55: #{simple_linear_model_forward.1} parent=31 // pred_region
          %s2610 = smul.u32 8, %s27
          %s2612 = ssub.s32 1024, 1024
          %2613 = vsyncadd %s2603, %s2612
          %s2614 = smul.addr %s2610, 128
          %s2615 = scalar_lea.hbm %s3, %s2614
          %s2617 = sshll.u32 %s2606, 4
          %s2618 = int_to_ptr.vmem [resolvable:$true] %s2617
          %2620 = dma.vmem_to_hbm [thread:$0]  %s2618, 1024, %s2615, %s2603
        $region56: #{simple_linear_model_forward.1} parent=31 // pred_fallthru
          _
      $region32: #{simple_linear_model_forward.1} parent=5 // pred_fallthru
        _
      %p2621 = scmp.le.s32.totalorder 2, %s16
      // Predicated region
      $region57: #{simple_linear_model_forward.1} parent=5 // pred_check
        %p2622 = pneg %p2621
      $region58: #{simple_linear_model_forward.1} parent=5 // pred_check_branch
        %2624 = sbr.rel (%p2622) target = $region60
      $region59: #{simple_linear_model_forward.1} parent=5 // pred_region
        %s2625 = ssub.s32 %s16, 2
        // Predicated region
        $region61: #{simple_linear_model_forward.1} parent=59 // pred_check
          %p2626 = pneg %p143
        $region62: #{simple_linear_model_forward.1} parent=59 // pred_check_branch
          %2628 = sbr.rel (%p2626) target = $region64
        $region63: #{simple_linear_model_forward.1} parent=59 // pred_region
          %s2629 = sand.u32 %s128, 1
          %s2630 = scalar_lea.sflag [#allocation5], %s2629
          %s2631 = sand.u32 %s128, 1
          %s2632 = smul.addr %s2631, 64
          %s2633 = scalar_lea.vmem [#allocation8], %s2632
          %2634 = dma.done %s2630, 1024
        $region64: #{simple_linear_model_forward.1} parent=59 // pred_fallthru
          _
      $region60: #{simple_linear_model_forward.1} parent=5 // pred_fallthru
        _
    $region6: #{simple_linear_model_forward.1} parent=1 // loop_footer
      %s20 = sadd.s32 1, %s16
    $region7: #{simple_linear_model_forward.1} parent=1 // loop_footer_branch
      %15 = sbr.rel target = $region3
    $region8: #{simple_linear_model_forward.1} parent=1 // loop_exit
      _
    %2635 = vsyncpa [#allocation4], 1
    %s2636 = scalar_lea.sflag [#allocation4], 1
    %2637 = vsyncpa %s2636, 1
    %2638 = vsyncpa [#allocation7], 1
    %s2639 = scalar_lea.sflag [#allocation7], 1
    %2640 = vsyncpa %s2639, 1
    %2641 = vsyncpa [#allocation5], 1
    %s2642 = scalar_lea.sflag [#allocation5], 1
    %2643 = vsyncpa %s2642, 1

</llo_original>
